<compile_context>
chip_gen: v6e
topology: v6e:2x2x1
jax: 0.10.0
libtpu: 0.0.40
codegen_flags: <defaults>
</compile_context>

<pallas_src>
import functools
import math

import jax
import jax.numpy as jnp
from jax.experimental import pallas as pl
from jax.experimental.pallas import tpu as pltpu


# -----------------------------------------------------------------------------
# Fused kernel: all encoder layers + stream mean (single grid step)
# -----------------------------------------------------------------------------
def _layer_norm(x, gamma, beta, eps=1e-5):
    # x: [N, H] f32, gamma/beta: [1, H] f32
    mu = jnp.mean(x, axis=-1, keepdims=True)
    xc = x - mu
    var = jnp.mean(xc * xc, axis=-1, keepdims=True)
    inv = jax.lax.rsqrt(var + eps)
    return xc * inv * gamma + beta


_NT_DIMS = (((1,), (1,)), ((), ()))   # contract last dim of both operands (A @ B^T)


def fused_forward_kernel(x0_ref, bias_ref, wqkv_ref, bqkv_ref, wo_ref, vecs_ref,
                         w1_ref, b1_ref, w2_ref, out_ref, *, num_heads, num_layers):
    B, S, H = x0_ref.shape
    N = B * S
    hd = H // num_heads
    scale = 1.0 / math.sqrt(hd)

    bias = bias_ref[...]                       # [N, N] additive mask (0 / -1e9)
    x = x0_ref[...].reshape(N, H)              # f32 activation carry (stays on-chip)

    # Static unroll over layers (L is small); weights for every layer are already
    # resident in VMEM as full blocks, so there is no per-layer DMA at all.
    # TODO(synk): for large num_layers switch to pl.loop with dynamic ref indexing
    # to bound code size / live ranges.
    for l in range(num_layers):
        xb = x.astype(jnp.bfloat16)

        # ---- fused QKV projection: one MXU push -----------------------------
        qkv = (jnp.dot(xb, wqkv_ref[l], preferred_element_type=jnp.float32)
               + bqkv_ref[l])                                   # [N, 3H] f32
        qb = qkv[:, 0:H].astype(jnp.bfloat16)
        kb = qkv[:, H:2 * H].astype(jnp.bfloat16)
        vb = qkv[:, 2 * H:3 * H].astype(jnp.bfloat16)

        # ---- multi-head self-attention over all batch rows at once ----------
        # Per head: one [N,hd]x[N,hd]^T score matmul and one [N,N]x[N,hd] PV
        # matmul; cross-batch pairs are masked by the additive bias.
        head_outs = []
        for h in range(num_heads):
            lo = h * hd
            qh = qb[:, lo:lo + hd]
            kh = kb[:, lo:lo + hd]
            vh = vb[:, lo:lo + hd]
            s = jax.lax.dot_general(qh, kh, _NT_DIMS,
                                    preferred_element_type=jnp.float32)   # [N, N]
            s = s * scale + bias
            s = s - jnp.max(s, axis=-1, keepdims=True)
            p = jnp.exp(s)
            p = p * pl.reciprocal(jnp.sum(p, axis=-1, keepdims=True), approx=True)
            head_outs.append(
                jnp.dot(p.astype(jnp.bfloat16), vh,
                        preferred_element_type=jnp.float32))              # [N, hd]
        attn_cat = jnp.concatenate(head_outs, axis=-1)                    # [N, H]

        vecs = vecs_ref[l]                      # [6, H]: bo, g1, b1, b2, g2, b2n
        attn = (jnp.dot(attn_cat.astype(jnp.bfloat16), wo_ref[l],
                        preferred_element_type=jnp.float32) + vecs[0:1])

        # ---- residual + LayerNorm 1 -----------------------------------------
        y = _layer_norm(x + attn, vecs[1:2], vecs[2:3])

        # ---- feed-forward (relu) ---------------------------------------------
        h1 = (jnp.dot(y.astype(jnp.bfloat16), w1_ref[l],
                      preferred_element_type=jnp.float32) + b1_ref[l])
        h1 = jnp.maximum(h1, 0.0)
        # w2 kept in dense PyTorch [H, F] layout; contract on F (A @ W2^T).
        h2 = (jax.lax.dot_general(h1.astype(jnp.bfloat16), w2_ref[l], _NT_DIMS,
                                  preferred_element_type=jnp.float32) + vecs[3:4])

        # ---- residual + LayerNorm 2 -----------------------------------------
        x = _layer_norm(y + h2, vecs[4:5], vecs[5:6])

    # Epilogue (runs once): mean over the stream axis.
    out_ref[...] = jnp.mean(x.reshape(B, S, H), axis=1)


# -----------------------------------------------------------------------------
# pallas_call wrapper: single call, single grid step, all weights VMEM-resident
# -----------------------------------------------------------------------------
def _fused_call(prep, x0, attn_bias, *, num_heads):
    B, S, H = x0.shape
    N = B * S
    L, _, F = prep["w1"].shape

    def full(shape):
        n = len(shape)
        return pl.BlockSpec(tuple(shape), lambda i, n=n: (0,) * n)

    in_specs = [
        full((B, S, H)),         # x0 (prompt fusion already applied)
        full((N, N)),            # additive attention bias (block-diag over batch)
        full((L, H, 3 * H)),     # wqkv  bf16
        full((L, 1, 3 * H)),     # bqkv  f32
        full((L, H, H)),         # wo    bf16
        full((L, 6, H)),         # packed per-layer vectors f32
        full((L, H, F)),         # w1    bf16 ([in, out], dense both dims)
        full((L, 1, F)),         # b1    f32
        full((L, H, F)),         # w2    bf16 (PyTorch [out=H, in=F], contracted on F)
    ]

    return pl.pallas_call(
        functools.partial(fused_forward_kernel, num_heads=num_heads, num_layers=L),
        out_shape=jax.ShapeDtypeStruct((B, H), jnp.float32),
        grid=(1,),
        in_specs=in_specs,
        out_specs=pl.BlockSpec((B, H), lambda i: (0, 0)),
        compiler_params=pltpu.CompilerParams(
            dimension_semantics=("arbitrary",),
            # generous but safe on all generations (v7x physical VMEM = 64 MiB)
            vmem_limit_bytes=32 * 1024 * 1024),
    )(x0, attn_bias, prep["wqkv"], prep["bqkv"], prep["wo"], prep["vecs"],
      prep["w1"], prep["b1"], prep["w2"])


@functools.partial(jax.jit, static_argnames=("num_heads",))
def _forward_jit(prep, feats, prompts, num_heads):
    B, S, H = feats.shape
    N = B * S
    # Prompt fusion hoisted out of the kernel (tiny matmul; removes 3 kernel
    # inputs and the layer-0 prologue branch).
    x0 = feats + jnp.einsum("bsd,dh->bsh", prompts, prep["pw"]) + prep["pb"]
    # Additive mask so each batch row only attends within its own S streams.
    bid = jnp.arange(N, dtype=jnp.int32) // S
    attn_bias = jnp.where(bid[:, None] == bid[None, :], 0.0, -1e9).astype(jnp.float32)
    return _fused_call(prep, x0, attn_bias, num_heads=num_heads)


def multi_stream_transformer(prep, modality_feats, quality_prompts, *, num_heads):
    names = list(modality_feats.keys())
    feats = jnp.stack([modality_feats[n] for n in names], axis=1)      # [B, S, H]
    prompts = jnp.stack([quality_prompts[n] for n in names], axis=1)   # [B, S, Dp]
    return _forward_jit(prep, feats, prompts, num_heads)


# -----------------------------------------------------------------------------
# Parameter construction (PyTorch [out, in] convention) + one-time prep
# -----------------------------------------------------------------------------
def init_params(key, hidden_dim, num_heads, num_layers, prompt_dim, ffn_dim=2048):
    def nrm(k, shape, scale=0.02):
        return (scale * jax.random.normal(k, shape)).astype(jnp.float32)

    keys = jax.random.split(key, 1 + num_layers)
    params = {
        "prompt_w": nrm(keys[0], (hidden_dim, prompt_dim)),   # [out, in]
        "prompt_b": jnp.zeros((hidden_dim,), jnp.float32),
        "layers": [],
    }
    for l in range(num_layers):
        ks = jax.random.split(keys[1 + l], 4)
        params["layers"].append({
            "wqkv": nrm(ks[0], (3 * hidden_dim, hidden_dim)),
            "bqkv": jnp.zeros((3 * hidden_dim,), jnp.float32),
            "wo":   nrm(ks[1], (hidden_dim, hidden_dim)),
            "bo":   jnp.zeros((hidden_dim,), jnp.float32),
            "ln1_g": jnp.ones((hidden_dim,), jnp.float32),
            "ln1_b": jnp.zeros((hidden_dim,), jnp.float32),
            "w1":   nrm(ks[2], (ffn_dim, hidden_dim)),
            "b1":   jnp.zeros((ffn_dim,), jnp.float32),
            "w2":   nrm(ks[3], (hidden_dim, ffn_dim)),
            "b2":   jnp.zeros((hidden_dim,), jnp.float32),
            "ln2_g": jnp.ones((hidden_dim,), jnp.float32),
            "ln2_b": jnp.zeros((hidden_dim,), jnp.float32),
        })
    return params


def prepare_params(params, num_heads):
    """One-time layout plumbing: fuse QKV weights, transpose to [in, out],
    stack layers on a leading [L] axis, pack tiny per-layer vectors, cast the
    matmul weights to bf16."""
    H = params["prompt_w"].shape[0]
    layers = params["layers"]

    def stack(fn):
        return jnp.stack([fn(lp) for lp in layers], axis=0)

    return {
        # Prompt projection is applied in the jitted wrapper, not in the kernel.
        "pw": params["prompt_w"].T,                                   # [Dp, H] f32
        "pb": params["prompt_b"],                                     # [H] f32
        "wqkv": stack(lambda lp: lp["wqkv"].T.astype(jnp.bfloat16)),  # [L, H, 3H]
        "bqkv": stack(lambda lp: lp["bqkv"].reshape(1, 3 * H)),       # [L, 1, 3H]
        "wo":   stack(lambda lp: lp["wo"].T.astype(jnp.bfloat16)),    # [L, H, H]
        # Packed per-layer vectors: [bo, ln1_g, ln1_b, ffn_b2, ln2_g, ln2_b]
        "vecs": stack(lambda lp: jnp.stack(
            [lp["bo"], lp["ln1_g"], lp["ln1_b"],
             lp["b2"], lp["ln2_g"], lp["ln2_b"]], axis=0)),           # [L, 6, H]
        "w1":   stack(lambda lp: lp["w1"].T.astype(jnp.bfloat16)),    # [L, H, F]
        "b1":   stack(lambda lp: lp["b1"].reshape(1, -1)),            # [L, 1, F]
        "w2":   stack(lambda lp: lp["w2"].astype(jnp.bfloat16)),      # [L, H, F] (PyTorch layout)
    }


# -----------------------------------------------------------------------------
if __name__ == "__main__":
    B = 2
    hidden_dim = 32
    num_heads = 4
    num_layers = 2
    prompt_dim = 16
    modalities = ["rgb", "depth", "thermal"]   # S = 3 streams

    key = jax.random.PRNGKey(0)
    kp, kf, kq = jax.random.split(key, 3)
    params = init_params(kp, hidden_dim, num_heads, num_layers, prompt_dim)
    prep = prepare_params(params, num_heads)       # hoisted, runs once

    fkeys = jax.random.split(kf, len(modalities))
    qkeys = jax.random.split(kq, len(modalities))
    modality_feats = {
        name: jax.random.normal(fkeys[i], (B, hidden_dim), jnp.float32)
        for i, name in enumerate(modalities)
    }
    quality_prompts = {
        name: jax.random.normal(qkeys[i], (B, prompt_dim), jnp.float32)
        for i, name in enumerate(modalities)
    }

    out = multi_stream_transformer(prep, modality_feats, quality_prompts,
                                   num_heads=num_heads)
    out = jax.block_until_ready(out)
    assert out.shape == (B, hidden_dim)
    assert bool(jnp.all(jnp.isfinite(out)))
    # TODO(synk): no padding mask — all S streams are assumed present (matches the module).
    print("KERNEL_OK")
</pallas_src>

<mosaic_0001>
module attributes {stable_mosaic.version = 11 : i64} {
  func.func @fused_forward_kernel(%arg0: i32, %arg1: memref<2x3x32xf32, #tpu.memory_space<vmem>>, %arg2: memref<6x6xf32, #tpu.memory_space<vmem>>, %arg3: memref<2x32x96xbf16, #tpu.memory_space<vmem>>, %arg4: memref<2x1x96xf32, #tpu.memory_space<vmem>>, %arg5: memref<2x32x32xbf16, #tpu.memory_space<vmem>>, %arg6: memref<2x6x32xf32, #tpu.memory_space<vmem>>, %arg7: memref<2x32x2048xbf16, #tpu.memory_space<vmem>>, %arg8: memref<2x1x2048xf32, #tpu.memory_space<vmem>>, %arg9: memref<2x32x2048xbf16, #tpu.memory_space<vmem>>, %arg10: memref<2x32xf32, #tpu.memory_space<vmem>>) attributes {dimension_semantics = [#tpu.dimension_semantics<arbitrary>], iteration_bounds = array<i64: 1>, scalar_prefetch = 0 : i64, scratch_operands = 0 : i64, tpu.core_type = #tpu.core_type<tc>, window_params = [{pipeline_mode = #tpu.pipeline_mode<synchronous>, transform_indices = @transform_0, window_bounds = array<i64: 2, 3, 32>}, {pipeline_mode = #tpu.pipeline_mode<synchronous>, transform_indices = @transform_1, window_bounds = array<i64: 6, 6>}, {pipeline_mode = #tpu.pipeline_mode<synchronous>, transform_indices = @transform_2, window_bounds = array<i64: 2, 32, 96>}, {pipeline_mode = #tpu.pipeline_mode<synchronous>, transform_indices = @transform_3, window_bounds = array<i64: 2, 1, 96>}, {pipeline_mode = #tpu.pipeline_mode<synchronous>, transform_indices = @transform_4, window_bounds = array<i64: 2, 32, 32>}, {pipeline_mode = #tpu.pipeline_mode<synchronous>, transform_indices = @transform_5, window_bounds = array<i64: 2, 6, 32>}, {pipeline_mode = #tpu.pipeline_mode<synchronous>, transform_indices = @transform_6, window_bounds = array<i64: 2, 32, 2048>}, {pipeline_mode = #tpu.pipeline_mode<synchronous>, transform_indices = @transform_7, window_bounds = array<i64: 2, 1, 2048>}, {pipeline_mode = #tpu.pipeline_mode<synchronous>, transform_indices = @transform_8, window_bounds = array<i64: 2, 32, 2048>}, {pipeline_mode = #tpu.pipeline_mode<synchronous>, transform_indices = @transform_9, window_bounds = array<i64: 2, 32>}]} {
    %c0 = arith.constant 0 : index
    %c0_0 = arith.constant 0 : index
    %0 = vector.load %arg2[%c0, %c0_0] : memref<6x6xf32, #tpu.memory_space<vmem>>, vector<6x6xf32>
    %c0_1 = arith.constant 0 : index
    %c0_2 = arith.constant 0 : index
    %c0_3 = arith.constant 0 : index
    %1 = vector.load %arg1[%c0_1, %c0_2, %c0_3] : memref<2x3x32xf32, #tpu.memory_space<vmem>>, vector<2x3x32xf32>
    %2 = vector.shape_cast %1 : vector<2x3x32xf32> to vector<6x32xf32>
    %3 = arith.truncf %2 : vector<6x32xf32> to vector<6x32xbf16>
    %c0_4 = arith.constant 0 : index
    %c0_5 = arith.constant 0 : index
    %c0_6 = arith.constant 0 : index
    %4 = vector.load %arg3[%c0_4, %c0_5, %c0_6] : memref<2x32x96xbf16, #tpu.memory_space<vmem>>, vector<1x32x96xbf16>
    %5 = vector.shape_cast %4 : vector<1x32x96xbf16> to vector<32x96xbf16>
    %cst = arith.constant dense<0.000000e+00> : vector<6x96xf32>
    %6 = tpu.matmul %3, %5, %cst {dimension_numbers = #tpu.dot_dimension_numbers<[1], [0], [0], [1], [0, 0, 1, 1], [], []>} : vector<6x32xbf16>, vector<32x96xbf16>, vector<6x96xf32> -> vector<6x96xf32>
    %c0_7 = arith.constant 0 : index
    %c0_8 = arith.constant 0 : index
    %c0_9 = arith.constant 0 : index
    %7 = vector.load %arg4[%c0_7, %c0_8, %c0_9] : memref<2x1x96xf32, #tpu.memory_space<vmem>>, vector<1x1x96xf32>
    %8 = vector.shape_cast %7 : vector<1x1x96xf32> to vector<1x96xf32>
    %9 = vector.broadcast %8 : vector<1x96xf32> to vector<6x96xf32>
    %10 = arith.addf %6, %9 : vector<6x96xf32>
    %11 = vector.extract_strided_slice %10 {offsets = [0, 0], sizes = [6, 32], strides = [1, 1]} : vector<6x96xf32> to vector<6x32xf32>
    %12 = arith.truncf %11 : vector<6x32xf32> to vector<6x32xbf16>
    %13 = vector.extract_strided_slice %10 {offsets = [0, 32], sizes = [6, 32], strides = [1, 1]} : vector<6x96xf32> to vector<6x32xf32>
    %14 = arith.truncf %13 : vector<6x32xf32> to vector<6x32xbf16>
    %15 = vector.extract_strided_slice %10 {offsets = [0, 64], sizes = [6, 32], strides = [1, 1]} : vector<6x96xf32> to vector<6x32xf32>
    %16 = arith.truncf %15 : vector<6x32xf32> to vector<6x32xbf16>
    %17 = vector.extract_strided_slice %12 {offsets = [0, 0], sizes = [6, 8], strides = [1, 1]} : vector<6x32xbf16> to vector<6x8xbf16>
    %18 = vector.extract_strided_slice %14 {offsets = [0, 0], sizes = [6, 8], strides = [1, 1]} : vector<6x32xbf16> to vector<6x8xbf16>
    %19 = vector.extract_strided_slice %16 {offsets = [0, 0], sizes = [6, 8], strides = [1, 1]} : vector<6x32xbf16> to vector<6x8xbf16>
    %cst_10 = arith.constant dense<0.000000e+00> : vector<6x6xf32>
    %20 = tpu.matmul %17, %18, %cst_10 {dimension_numbers = #tpu.dot_dimension_numbers<[1], [1], [0], [0], [0, 0, 1, 0], [], []>} : vector<6x8xbf16>, vector<6x8xbf16>, vector<6x6xf32> -> vector<6x6xf32>
    %cst_11 = arith.constant 0.353553385 : f32
    %21 = vector.broadcast %cst_11 : f32 to vector<6x6xf32>
    %22 = arith.mulf %20, %21 : vector<6x6xf32>
    %23 = arith.addf %22, %0 : vector<6x6xf32>
    %cst_12 = arith.constant dense<0xFF800000> : vector<6xf32>
    %24 = vector.multi_reduction <maximumf>, %23, %cst_12 [1] : vector<6x6xf32> to vector<6xf32>
    %25 = vector.shape_cast %24 : vector<6xf32> to vector<6x1xf32>
    %26 = vector.broadcast %25 : vector<6x1xf32> to vector<6x6xf32>
    %27 = arith.subf %23, %26 : vector<6x6xf32>
    %28 = math.exp %27 : vector<6x6xf32>
    %cst_13 = arith.constant dense<0.000000e+00> : vector<6xf32>
    %29 = vector.multi_reduction <add>, %28, %cst_13 [1] : vector<6x6xf32> to vector<6xf32>
    %30 = vector.shape_cast %29 : vector<6xf32> to vector<6x1xf32>
    %31 = tpu.reciprocal %30 {approx = true} : vector<6x1xf32> -> vector<6x1xf32>
    %32 = vector.broadcast %31 : vector<6x1xf32> to vector<6x6xf32>
    %33 = arith.mulf %28, %32 : vector<6x6xf32>
    %34 = arith.truncf %33 : vector<6x6xf32> to vector<6x6xbf16>
    %cst_14 = arith.constant dense<0.000000e+00> : vector<6x8xf32>
    %35 = tpu.matmul %34, %19, %cst_14 {dimension_numbers = #tpu.dot_dimension_numbers<[1], [0], [0], [1], [0, 0, 1, 1], [], []>} : vector<6x6xbf16>, vector<6x8xbf16>, vector<6x8xf32> -> vector<6x8xf32>
    %36 = vector.extract_strided_slice %12 {offsets = [0, 8], sizes = [6, 8], strides = [1, 1]} : vector<6x32xbf16> to vector<6x8xbf16>
    %37 = vector.extract_strided_slice %14 {offsets = [0, 8], sizes = [6, 8], strides = [1, 1]} : vector<6x32xbf16> to vector<6x8xbf16>
    %38 = vector.extract_strided_slice %16 {offsets = [0, 8], sizes = [6, 8], strides = [1, 1]} : vector<6x32xbf16> to vector<6x8xbf16>
    %cst_15 = arith.constant dense<0.000000e+00> : vector<6x6xf32>
    %39 = tpu.matmul %36, %37, %cst_15 {dimension_numbers = #tpu.dot_dimension_numbers<[1], [1], [0], [0], [0, 0, 1, 0], [], []>} : vector<6x8xbf16>, vector<6x8xbf16>, vector<6x6xf32> -> vector<6x6xf32>
    %cst_16 = arith.constant 0.353553385 : f32
    %40 = vector.broadcast %cst_16 : f32 to vector<6x6xf32>
    %41 = arith.mulf %39, %40 : vector<6x6xf32>
    %42 = arith.addf %41, %0 : vector<6x6xf32>
    %cst_17 = arith.constant dense<0xFF800000> : vector<6xf32>
    %43 = vector.multi_reduction <maximumf>, %42, %cst_17 [1] : vector<6x6xf32> to vector<6xf32>
    %44 = vector.shape_cast %43 : vector<6xf32> to vector<6x1xf32>
    %45 = vector.broadcast %44 : vector<6x1xf32> to vector<6x6xf32>
    %46 = arith.subf %42, %45 : vector<6x6xf32>
    %47 = math.exp %46 : vector<6x6xf32>
    %cst_18 = arith.constant dense<0.000000e+00> : vector<6xf32>
    %48 = vector.multi_reduction <add>, %47, %cst_18 [1] : vector<6x6xf32> to vector<6xf32>
    %49 = vector.shape_cast %48 : vector<6xf32> to vector<6x1xf32>
    %50 = tpu.reciprocal %49 {approx = true} : vector<6x1xf32> -> vector<6x1xf32>
    %51 = vector.broadcast %50 : vector<6x1xf32> to vector<6x6xf32>
    %52 = arith.mulf %47, %51 : vector<6x6xf32>
    %53 = arith.truncf %52 : vector<6x6xf32> to vector<6x6xbf16>
    %cst_19 = arith.constant dense<0.000000e+00> : vector<6x8xf32>
    %54 = tpu.matmul %53, %38, %cst_19 {dimension_numbers = #tpu.dot_dimension_numbers<[1], [0], [0], [1], [0, 0, 1, 1], [], []>} : vector<6x6xbf16>, vector<6x8xbf16>, vector<6x8xf32> -> vector<6x8xf32>
    %55 = vector.extract_strided_slice %12 {offsets = [0, 16], sizes = [6, 8], strides = [1, 1]} : vector<6x32xbf16> to vector<6x8xbf16>
    %56 = vector.extract_strided_slice %14 {offsets = [0, 16], sizes = [6, 8], strides = [1, 1]} : vector<6x32xbf16> to vector<6x8xbf16>
    %57 = vector.extract_strided_slice %16 {offsets = [0, 16], sizes = [6, 8], strides = [1, 1]} : vector<6x32xbf16> to vector<6x8xbf16>
    %cst_20 = arith.constant dense<0.000000e+00> : vector<6x6xf32>
    %58 = tpu.matmul %55, %56, %cst_20 {dimension_numbers = #tpu.dot_dimension_numbers<[1], [1], [0], [0], [0, 0, 1, 0], [], []>} : vector<6x8xbf16>, vector<6x8xbf16>, vector<6x6xf32> -> vector<6x6xf32>
    %cst_21 = arith.constant 0.353553385 : f32
    %59 = vector.broadcast %cst_21 : f32 to vector<6x6xf32>
    %60 = arith.mulf %58, %59 : vector<6x6xf32>
    %61 = arith.addf %60, %0 : vector<6x6xf32>
    %cst_22 = arith.constant dense<0xFF800000> : vector<6xf32>
    %62 = vector.multi_reduction <maximumf>, %61, %cst_22 [1] : vector<6x6xf32> to vector<6xf32>
    %63 = vector.shape_cast %62 : vector<6xf32> to vector<6x1xf32>
    %64 = vector.broadcast %63 : vector<6x1xf32> to vector<6x6xf32>
    %65 = arith.subf %61, %64 : vector<6x6xf32>
    %66 = math.exp %65 : vector<6x6xf32>
    %cst_23 = arith.constant dense<0.000000e+00> : vector<6xf32>
    %67 = vector.multi_reduction <add>, %66, %cst_23 [1] : vector<6x6xf32> to vector<6xf32>
    %68 = vector.shape_cast %67 : vector<6xf32> to vector<6x1xf32>
    %69 = tpu.reciprocal %68 {approx = true} : vector<6x1xf32> -> vector<6x1xf32>
    %70 = vector.broadcast %69 : vector<6x1xf32> to vector<6x6xf32>
    %71 = arith.mulf %66, %70 : vector<6x6xf32>
    %72 = arith.truncf %71 : vector<6x6xf32> to vector<6x6xbf16>
    %cst_24 = arith.constant dense<0.000000e+00> : vector<6x8xf32>
    %73 = tpu.matmul %72, %57, %cst_24 {dimension_numbers = #tpu.dot_dimension_numbers<[1], [0], [0], [1], [0, 0, 1, 1], [], []>} : vector<6x6xbf16>, vector<6x8xbf16>, vector<6x8xf32> -> vector<6x8xf32>
    %74 = vector.extract_strided_slice %12 {offsets = [0, 24], sizes = [6, 8], strides = [1, 1]} : vector<6x32xbf16> to vector<6x8xbf16>
    %75 = vector.extract_strided_slice %14 {offsets = [0, 24], sizes = [6, 8], strides = [1, 1]} : vector<6x32xbf16> to vector<6x8xbf16>
    %76 = vector.extract_strided_slice %16 {offsets = [0, 24], sizes = [6, 8], strides = [1, 1]} : vector<6x32xbf16> to vector<6x8xbf16>
    %cst_25 = arith.constant dense<0.000000e+00> : vector<6x6xf32>
    %77 = tpu.matmul %74, %75, %cst_25 {dimension_numbers = #tpu.dot_dimension_numbers<[1], [1], [0], [0], [0, 0, 1, 0], [], []>} : vector<6x8xbf16>, vector<6x8xbf16>, vector<6x6xf32> -> vector<6x6xf32>
    %cst_26 = arith.constant 0.353553385 : f32
    %78 = vector.broadcast %cst_26 : f32 to vector<6x6xf32>
    %79 = arith.mulf %77, %78 : vector<6x6xf32>
    %80 = arith.addf %79, %0 : vector<6x6xf32>
    %cst_27 = arith.constant dense<0xFF800000> : vector<6xf32>
    %81 = vector.multi_reduction <maximumf>, %80, %cst_27 [1] : vector<6x6xf32> to vector<6xf32>
    %82 = vector.shape_cast %81 : vector<6xf32> to vector<6x1xf32>
    %83 = vector.broadcast %82 : vector<6x1xf32> to vector<6x6xf32>
    %84 = arith.subf %80, %83 : vector<6x6xf32>
    %85 = math.exp %84 : vector<6x6xf32>
    %cst_28 = arith.constant dense<0.000000e+00> : vector<6xf32>
    %86 = vector.multi_reduction <add>, %85, %cst_28 [1] : vector<6x6xf32> to vector<6xf32>
    %87 = vector.shape_cast %86 : vector<6xf32> to vector<6x1xf32>
    %88 = tpu.reciprocal %87 {approx = true} : vector<6x1xf32> -> vector<6x1xf32>
    %89 = vector.broadcast %88 : vector<6x1xf32> to vector<6x6xf32>
    %90 = arith.mulf %85, %89 : vector<6x6xf32>
    %91 = arith.truncf %90 : vector<6x6xf32> to vector<6x6xbf16>
    %cst_29 = arith.constant dense<0.000000e+00> : vector<6x8xf32>
    %92 = tpu.matmul %91, %76, %cst_29 {dimension_numbers = #tpu.dot_dimension_numbers<[1], [0], [0], [1], [0, 0, 1, 1], [], []>} : vector<6x6xbf16>, vector<6x8xbf16>, vector<6x8xf32> -> vector<6x8xf32>
    %93 = tpu.concatenate %35, %54, %73, %92 in 1 : vector<6x8xf32>, vector<6x8xf32>, vector<6x8xf32>, vector<6x8xf32> -> vector<6x32xf32>
    %c0_30 = arith.constant 0 : index
    %c0_31 = arith.constant 0 : index
    %c0_32 = arith.constant 0 : index
    %94 = vector.load %arg6[%c0_30, %c0_31, %c0_32] : memref<2x6x32xf32, #tpu.memory_space<vmem>>, vector<1x6x32xf32>
    %95 = vector.shape_cast %94 : vector<1x6x32xf32> to vector<6x32xf32>
    %96 = arith.truncf %93 : vector<6x32xf32> to vector<6x32xbf16>
    %c0_33 = arith.constant 0 : index
    %c0_34 = arith.constant 0 : index
    %c0_35 = arith.constant 0 : index
    %97 = vector.load %arg5[%c0_33, %c0_34, %c0_35] : memref<2x32x32xbf16, #tpu.memory_space<vmem>>, vector<1x32x32xbf16>
    %98 = vector.shape_cast %97 : vector<1x32x32xbf16> to vector<32x32xbf16>
    %cst_36 = arith.constant dense<0.000000e+00> : vector<6x32xf32>
    %99 = tpu.matmul %96, %98, %cst_36 {dimension_numbers = #tpu.dot_dimension_numbers<[1], [0], [0], [1], [0, 0, 1, 1], [], []>} : vector<6x32xbf16>, vector<32x32xbf16>, vector<6x32xf32> -> vector<6x32xf32>
    %100 = vector.extract_strided_slice %95 {offsets = [0, 0], sizes = [1, 32], strides = [1, 1]} : vector<6x32xf32> to vector<1x32xf32>
    %101 = vector.broadcast %100 : vector<1x32xf32> to vector<6x32xf32>
    %102 = arith.addf %99, %101 : vector<6x32xf32>
    %103 = arith.addf %2, %102 : vector<6x32xf32>
    %104 = vector.extract_strided_slice %95 {offsets = [1, 0], sizes = [1, 32], strides = [1, 1]} : vector<6x32xf32> to vector<1x32xf32>
    %105 = vector.extract_strided_slice %95 {offsets = [2, 0], sizes = [1, 32], strides = [1, 1]} : vector<6x32xf32> to vector<1x32xf32>
    %cst_37 = arith.constant dense<0.000000e+00> : vector<6xf32>
    %106 = vector.multi_reduction <add>, %103, %cst_37 [1] : vector<6x32xf32> to vector<6xf32>
    %107 = vector.shape_cast %106 : vector<6xf32> to vector<6x1xf32>
    %cst_38 = arith.constant 3.200000e+01 : f32
    %108 = vector.broadcast %cst_38 : f32 to vector<6x1xf32>
    %109 = arith.divf %107, %108 : vector<6x1xf32>
    %110 = vector.broadcast %109 : vector<6x1xf32> to vector<6x32xf32>
    %111 = arith.subf %103, %110 : vector<6x32xf32>
    %112 = arith.mulf %111, %111 : vector<6x32xf32>
    %cst_39 = arith.constant dense<0.000000e+00> : vector<6xf32>
    %113 = vector.multi_reduction <add>, %112, %cst_39 [1] : vector<6x32xf32> to vector<6xf32>
    %114 = vector.shape_cast %113 : vector<6xf32> to vector<6x1xf32>
    %cst_40 = arith.constant 3.200000e+01 : f32
    %115 = vector.broadcast %cst_40 : f32 to vector<6x1xf32>
    %116 = arith.divf %114, %115 : vector<6x1xf32>
    %cst_41 = arith.constant 9.99999974E-6 : f32
    %117 = vector.broadcast %cst_41 : f32 to vector<6x1xf32>
    %118 = arith.addf %116, %117 : vector<6x1xf32>
    %119 = math.rsqrt %118 : vector<6x1xf32>
    %120 = vector.broadcast %119 : vector<6x1xf32> to vector<6x32xf32>
    %121 = arith.mulf %111, %120 : vector<6x32xf32>
    %122 = vector.broadcast %104 : vector<1x32xf32> to vector<6x32xf32>
    %123 = arith.mulf %121, %122 : vector<6x32xf32>
    %124 = vector.broadcast %105 : vector<1x32xf32> to vector<6x32xf32>
    %125 = arith.addf %123, %124 : vector<6x32xf32>
    %126 = arith.truncf %125 : vector<6x32xf32> to vector<6x32xbf16>
    %c0_42 = arith.constant 0 : index
    %c0_43 = arith.constant 0 : index
    %c0_44 = arith.constant 0 : index
    %127 = vector.load %arg7[%c0_42, %c0_43, %c0_44] : memref<2x32x2048xbf16, #tpu.memory_space<vmem>>, vector<1x32x2048xbf16>
    %128 = vector.shape_cast %127 : vector<1x32x2048xbf16> to vector<32x2048xbf16>
    %cst_45 = arith.constant dense<0.000000e+00> : vector<6x2048xf32>
    %129 = tpu.matmul %126, %128, %cst_45 {dimension_numbers = #tpu.dot_dimension_numbers<[1], [0], [0], [1], [0, 0, 1, 1], [], []>} : vector<6x32xbf16>, vector<32x2048xbf16>, vector<6x2048xf32> -> vector<6x2048xf32>
    %c0_46 = arith.constant 0 : index
    %c0_47 = arith.constant 0 : index
    %c0_48 = arith.constant 0 : index
    %130 = vector.load %arg8[%c0_46, %c0_47, %c0_48] : memref<2x1x2048xf32, #tpu.memory_space<vmem>>, vector<1x1x2048xf32>
    %131 = vector.shape_cast %130 : vector<1x1x2048xf32> to vector<1x2048xf32>
    %132 = vector.broadcast %131 : vector<1x2048xf32> to vector<6x2048xf32>
    %133 = arith.addf %129, %132 : vector<6x2048xf32>
    %cst_49 = arith.constant 0.000000e+00 : f32
    %134 = vector.broadcast %cst_49 : f32 to vector<6x2048xf32>
    %135 = arith.maximumf %133, %134 : vector<6x2048xf32>
    %136 = arith.truncf %135 : vector<6x2048xf32> to vector<6x2048xbf16>
    %c0_50 = arith.constant 0 : index
    %c0_51 = arith.constant 0 : index
    %c0_52 = arith.constant 0 : index
    %137 = vector.load %arg9[%c0_50, %c0_51, %c0_52] : memref<2x32x2048xbf16, #tpu.memory_space<vmem>>, vector<1x32x2048xbf16>
    %138 = vector.shape_cast %137 : vector<1x32x2048xbf16> to vector<32x2048xbf16>
    %cst_53 = arith.constant dense<0.000000e+00> : vector<6x32xf32>
    %139 = tpu.matmul %136, %138, %cst_53 {dimension_numbers = #tpu.dot_dimension_numbers<[1], [1], [0], [0], [0, 0, 1, 0], [], []>} : vector<6x2048xbf16>, vector<32x2048xbf16>, vector<6x32xf32> -> vector<6x32xf32>
    %140 = vector.extract_strided_slice %95 {offsets = [3, 0], sizes = [1, 32], strides = [1, 1]} : vector<6x32xf32> to vector<1x32xf32>
    %141 = vector.broadcast %140 : vector<1x32xf32> to vector<6x32xf32>
    %142 = arith.addf %139, %141 : vector<6x32xf32>
    %143 = arith.addf %125, %142 : vector<6x32xf32>
    %144 = vector.extract_strided_slice %95 {offsets = [4, 0], sizes = [1, 32], strides = [1, 1]} : vector<6x32xf32> to vector<1x32xf32>
    %145 = vector.extract_strided_slice %95 {offsets = [5, 0], sizes = [1, 32], strides = [1, 1]} : vector<6x32xf32> to vector<1x32xf32>
    %cst_54 = arith.constant dense<0.000000e+00> : vector<6xf32>
    %146 = vector.multi_reduction <add>, %143, %cst_54 [1] : vector<6x32xf32> to vector<6xf32>
    %147 = vector.shape_cast %146 : vector<6xf32> to vector<6x1xf32>
    %cst_55 = arith.constant 3.200000e+01 : f32
    %148 = vector.broadcast %cst_55 : f32 to vector<6x1xf32>
    %149 = arith.divf %147, %148 : vector<6x1xf32>
    %150 = vector.broadcast %149 : vector<6x1xf32> to vector<6x32xf32>
    %151 = arith.subf %143, %150 : vector<6x32xf32>
    %152 = arith.mulf %151, %151 : vector<6x32xf32>
    %cst_56 = arith.constant dense<0.000000e+00> : vector<6xf32>
    %153 = vector.multi_reduction <add>, %152, %cst_56 [1] : vector<6x32xf32> to vector<6xf32>
    %154 = vector.shape_cast %153 : vector<6xf32> to vector<6x1xf32>
    %cst_57 = arith.constant 3.200000e+01 : f32
    %155 = vector.broadcast %cst_57 : f32 to vector<6x1xf32>
    %156 = arith.divf %154, %155 : vector<6x1xf32>
    %cst_58 = arith.constant 9.99999974E-6 : f32
    %157 = vector.broadcast %cst_58 : f32 to vector<6x1xf32>
    %158 = arith.addf %156, %157 : vector<6x1xf32>
    %159 = math.rsqrt %158 : vector<6x1xf32>
    %160 = vector.broadcast %159 : vector<6x1xf32> to vector<6x32xf32>
    %161 = arith.mulf %151, %160 : vector<6x32xf32>
    %162 = vector.broadcast %144 : vector<1x32xf32> to vector<6x32xf32>
    %163 = arith.mulf %161, %162 : vector<6x32xf32>
    %164 = vector.broadcast %145 : vector<1x32xf32> to vector<6x32xf32>
    %165 = arith.addf %163, %164 : vector<6x32xf32>
    %166 = arith.truncf %165 : vector<6x32xf32> to vector<6x32xbf16>
    %c1 = arith.constant 1 : index
    %c0_59 = arith.constant 0 : index
    %c0_60 = arith.constant 0 : index
    %167 = vector.load %arg3[%c1, %c0_59, %c0_60] : memref<2x32x96xbf16, #tpu.memory_space<vmem>>, vector<1x32x96xbf16>
    %168 = vector.shape_cast %167 : vector<1x32x96xbf16> to vector<32x96xbf16>
    %cst_61 = arith.constant dense<0.000000e+00> : vector<6x96xf32>
    %169 = tpu.matmul %166, %168, %cst_61 {dimension_numbers = #tpu.dot_dimension_numbers<[1], [0], [0], [1], [0, 0, 1, 1], [], []>} : vector<6x32xbf16>, vector<32x96xbf16>, vector<6x96xf32> -> vector<6x96xf32>
    %c1_62 = arith.constant 1 : index
    %c0_63 = arith.constant 0 : index
    %c0_64 = arith.constant 0 : index
    %170 = vector.load %arg4[%c1_62, %c0_63, %c0_64] : memref<2x1x96xf32, #tpu.memory_space<vmem>>, vector<1x1x96xf32>
    %171 = vector.shape_cast %170 : vector<1x1x96xf32> to vector<1x96xf32>
    %172 = vector.broadcast %171 : vector<1x96xf32> to vector<6x96xf32>
    %173 = arith.addf %169, %172 : vector<6x96xf32>
    %174 = vector.extract_strided_slice %173 {offsets = [0, 0], sizes = [6, 32], strides = [1, 1]} : vector<6x96xf32> to vector<6x32xf32>
    %175 = arith.truncf %174 : vector<6x32xf32> to vector<6x32xbf16>
    %176 = vector.extract_strided_slice %173 {offsets = [0, 32], sizes = [6, 32], strides = [1, 1]} : vector<6x96xf32> to vector<6x32xf32>
    %177 = arith.truncf %176 : vector<6x32xf32> to vector<6x32xbf16>
    %178 = vector.extract_strided_slice %173 {offsets = [0, 64], sizes = [6, 32], strides = [1, 1]} : vector<6x96xf32> to vector<6x32xf32>
    %179 = arith.truncf %178 : vector<6x32xf32> to vector<6x32xbf16>
    %180 = vector.extract_strided_slice %175 {offsets = [0, 0], sizes = [6, 8], strides = [1, 1]} : vector<6x32xbf16> to vector<6x8xbf16>
    %181 = vector.extract_strided_slice %177 {offsets = [0, 0], sizes = [6, 8], strides = [1, 1]} : vector<6x32xbf16> to vector<6x8xbf16>
    %182 = vector.extract_strided_slice %179 {offsets = [0, 0], sizes = [6, 8], strides = [1, 1]} : vector<6x32xbf16> to vector<6x8xbf16>
    %cst_65 = arith.constant dense<0.000000e+00> : vector<6x6xf32>
    %183 = tpu.matmul %180, %181, %cst_65 {dimension_numbers = #tpu.dot_dimension_numbers<[1], [1], [0], [0], [0, 0, 1, 0], [], []>} : vector<6x8xbf16>, vector<6x8xbf16>, vector<6x6xf32> -> vector<6x6xf32>
    %cst_66 = arith.constant 0.353553385 : f32
    %184 = vector.broadcast %cst_66 : f32 to vector<6x6xf32>
    %185 = arith.mulf %183, %184 : vector<6x6xf32>
    %186 = arith.addf %185, %0 : vector<6x6xf32>
    %cst_67 = arith.constant dense<0xFF800000> : vector<6xf32>
    %187 = vector.multi_reduction <maximumf>, %186, %cst_67 [1] : vector<6x6xf32> to vector<6xf32>
    %188 = vector.shape_cast %187 : vector<6xf32> to vector<6x1xf32>
    %189 = vector.broadcast %188 : vector<6x1xf32> to vector<6x6xf32>
    %190 = arith.subf %186, %189 : vector<6x6xf32>
    %191 = math.exp %190 : vector<6x6xf32>
    %cst_68 = arith.constant dense<0.000000e+00> : vector<6xf32>
    %192 = vector.multi_reduction <add>, %191, %cst_68 [1] : vector<6x6xf32> to vector<6xf32>
    %193 = vector.shape_cast %192 : vector<6xf32> to vector<6x1xf32>
    %194 = tpu.reciprocal %193 {approx = true} : vector<6x1xf32> -> vector<6x1xf32>
    %195 = vector.broadcast %194 : vector<6x1xf32> to vector<6x6xf32>
    %196 = arith.mulf %191, %195 : vector<6x6xf32>
    %197 = arith.truncf %196 : vector<6x6xf32> to vector<6x6xbf16>
    %cst_69 = arith.constant dense<0.000000e+00> : vector<6x8xf32>
    %198 = tpu.matmul %197, %182, %cst_69 {dimension_numbers = #tpu.dot_dimension_numbers<[1], [0], [0], [1], [0, 0, 1, 1], [], []>} : vector<6x6xbf16>, vector<6x8xbf16>, vector<6x8xf32> -> vector<6x8xf32>
    %199 = vector.extract_strided_slice %175 {offsets = [0, 8], sizes = [6, 8], strides = [1, 1]} : vector<6x32xbf16> to vector<6x8xbf16>
    %200 = vector.extract_strided_slice %177 {offsets = [0, 8], sizes = [6, 8], strides = [1, 1]} : vector<6x32xbf16> to vector<6x8xbf16>
    %201 = vector.extract_strided_slice %179 {offsets = [0, 8], sizes = [6, 8], strides = [1, 1]} : vector<6x32xbf16> to vector<6x8xbf16>
    %cst_70 = arith.constant dense<0.000000e+00> : vector<6x6xf32>
    %202 = tpu.matmul %199, %200, %cst_70 {dimension_numbers = #tpu.dot_dimension_numbers<[1], [1], [0], [0], [0, 0, 1, 0], [], []>} : vector<6x8xbf16>, vector<6x8xbf16>, vector<6x6xf32> -> vector<6x6xf32>
    %cst_71 = arith.constant 0.353553385 : f32
    %203 = vector.broadcast %cst_71 : f32 to vector<6x6xf32>
    %204 = arith.mulf %202, %203 : vector<6x6xf32>
    %205 = arith.addf %204, %0 : vector<6x6xf32>
    %cst_72 = arith.constant dense<0xFF800000> : vector<6xf32>
    %206 = vector.multi_reduction <maximumf>, %205, %cst_72 [1] : vector<6x6xf32> to vector<6xf32>
    %207 = vector.shape_cast %206 : vector<6xf32> to vector<6x1xf32>
    %208 = vector.broadcast %207 : vector<6x1xf32> to vector<6x6xf32>
    %209 = arith.subf %205, %208 : vector<6x6xf32>
    %210 = math.exp %209 : vector<6x6xf32>
    %cst_73 = arith.constant dense<0.000000e+00> : vector<6xf32>
    %211 = vector.multi_reduction <add>, %210, %cst_73 [1] : vector<6x6xf32> to vector<6xf32>
    %212 = vector.shape_cast %211 : vector<6xf32> to vector<6x1xf32>
    %213 = tpu.reciprocal %212 {approx = true} : vector<6x1xf32> -> vector<6x1xf32>
    %214 = vector.broadcast %213 : vector<6x1xf32> to vector<6x6xf32>
    %215 = arith.mulf %210, %214 : vector<6x6xf32>
    %216 = arith.truncf %215 : vector<6x6xf32> to vector<6x6xbf16>
    %cst_74 = arith.constant dense<0.000000e+00> : vector<6x8xf32>
    %217 = tpu.matmul %216, %201, %cst_74 {dimension_numbers = #tpu.dot_dimension_numbers<[1], [0], [0], [1], [0, 0, 1, 1], [], []>} : vector<6x6xbf16>, vector<6x8xbf16>, vector<6x8xf32> -> vector<6x8xf32>
    %218 = vector.extract_strided_slice %175 {offsets = [0, 16], sizes = [6, 8], strides = [1, 1]} : vector<6x32xbf16> to vector<6x8xbf16>
    %219 = vector.extract_strided_slice %177 {offsets = [0, 16], sizes = [6, 8], strides = [1, 1]} : vector<6x32xbf16> to vector<6x8xbf16>
    %220 = vector.extract_strided_slice %179 {offsets = [0, 16], sizes = [6, 8], strides = [1, 1]} : vector<6x32xbf16> to vector<6x8xbf16>
    %cst_75 = arith.constant dense<0.000000e+00> : vector<6x6xf32>
    %221 = tpu.matmul %218, %219, %cst_75 {dimension_numbers = #tpu.dot_dimension_numbers<[1], [1], [0], [0], [0, 0, 1, 0], [], []>} : vector<6x8xbf16>, vector<6x8xbf16>, vector<6x6xf32> -> vector<6x6xf32>
    %cst_76 = arith.constant 0.353553385 : f32
    %222 = vector.broadcast %cst_76 : f32 to vector<6x6xf32>
    %223 = arith.mulf %221, %222 : vector<6x6xf32>
    %224 = arith.addf %223, %0 : vector<6x6xf32>
    %cst_77 = arith.constant dense<0xFF800000> : vector<6xf32>
    %225 = vector.multi_reduction <maximumf>, %224, %cst_77 [1] : vector<6x6xf32> to vector<6xf32>
    %226 = vector.shape_cast %225 : vector<6xf32> to vector<6x1xf32>
    %227 = vector.broadcast %226 : vector<6x1xf32> to vector<6x6xf32>
    %228 = arith.subf %224, %227 : vector<6x6xf32>
    %229 = math.exp %228 : vector<6x6xf32>
    %cst_78 = arith.constant dense<0.000000e+00> : vector<6xf32>
    %230 = vector.multi_reduction <add>, %229, %cst_78 [1] : vector<6x6xf32> to vector<6xf32>
    %231 = vector.shape_cast %230 : vector<6xf32> to vector<6x1xf32>
    %232 = tpu.reciprocal %231 {approx = true} : vector<6x1xf32> -> vector<6x1xf32>
    %233 = vector.broadcast %232 : vector<6x1xf32> to vector<6x6xf32>
    %234 = arith.mulf %229, %233 : vector<6x6xf32>
    %235 = arith.truncf %234 : vector<6x6xf32> to vector<6x6xbf16>
    %cst_79 = arith.constant dense<0.000000e+00> : vector<6x8xf32>
    %236 = tpu.matmul %235, %220, %cst_79 {dimension_numbers = #tpu.dot_dimension_numbers<[1], [0], [0], [1], [0, 0, 1, 1], [], []>} : vector<6x6xbf16>, vector<6x8xbf16>, vector<6x8xf32> -> vector<6x8xf32>
    %237 = vector.extract_strided_slice %175 {offsets = [0, 24], sizes = [6, 8], strides = [1, 1]} : vector<6x32xbf16> to vector<6x8xbf16>
    %238 = vector.extract_strided_slice %177 {offsets = [0, 24], sizes = [6, 8], strides = [1, 1]} : vector<6x32xbf16> to vector<6x8xbf16>
    %239 = vector.extract_strided_slice %179 {offsets = [0, 24], sizes = [6, 8], strides = [1, 1]} : vector<6x32xbf16> to vector<6x8xbf16>
    %cst_80 = arith.constant dense<0.000000e+00> : vector<6x6xf32>
    %240 = tpu.matmul %237, %238, %cst_80 {dimension_numbers = #tpu.dot_dimension_numbers<[1], [1], [0], [0], [0, 0, 1, 0], [], []>} : vector<6x8xbf16>, vector<6x8xbf16>, vector<6x6xf32> -> vector<6x6xf32>
    %cst_81 = arith.constant 0.353553385 : f32
    %241 = vector.broadcast %cst_81 : f32 to vector<6x6xf32>
    %242 = arith.mulf %240, %241 : vector<6x6xf32>
    %243 = arith.addf %242, %0 : vector<6x6xf32>
    %cst_82 = arith.constant dense<0xFF800000> : vector<6xf32>
    %244 = vector.multi_reduction <maximumf>, %243, %cst_82 [1] : vector<6x6xf32> to vector<6xf32>
    %245 = vector.shape_cast %244 : vector<6xf32> to vector<6x1xf32>
    %246 = vector.broadcast %245 : vector<6x1xf32> to vector<6x6xf32>
    %247 = arith.subf %243, %246 : vector<6x6xf32>
    %248 = math.exp %247 : vector<6x6xf32>
    %cst_83 = arith.constant dense<0.000000e+00> : vector<6xf32>
    %249 = vector.multi_reduction <add>, %248, %cst_83 [1] : vector<6x6xf32> to vector<6xf32>
    %250 = vector.shape_cast %249 : vector<6xf32> to vector<6x1xf32>
    %251 = tpu.reciprocal %250 {approx = true} : vector<6x1xf32> -> vector<6x1xf32>
    %252 = vector.broadcast %251 : vector<6x1xf32> to vector<6x6xf32>
    %253 = arith.mulf %248, %252 : vector<6x6xf32>
    %254 = arith.truncf %253 : vector<6x6xf32> to vector<6x6xbf16>
    %cst_84 = arith.constant dense<0.000000e+00> : vector<6x8xf32>
    %255 = tpu.matmul %254, %239, %cst_84 {dimension_numbers = #tpu.dot_dimension_numbers<[1], [0], [0], [1], [0, 0, 1, 1], [], []>} : vector<6x6xbf16>, vector<6x8xbf16>, vector<6x8xf32> -> vector<6x8xf32>
    %256 = tpu.concatenate %198, %217, %236, %255 in 1 : vector<6x8xf32>, vector<6x8xf32>, vector<6x8xf32>, vector<6x8xf32> -> vector<6x32xf32>
    %c1_85 = arith.constant 1 : index
    %c0_86 = arith.constant 0 : index
    %c0_87 = arith.constant 0 : index
    %257 = vector.load %arg6[%c1_85, %c0_86, %c0_87] : memref<2x6x32xf32, #tpu.memory_space<vmem>>, vector<1x6x32xf32>
    %258 = vector.shape_cast %257 : vector<1x6x32xf32> to vector<6x32xf32>
    %259 = arith.truncf %256 : vector<6x32xf32> to vector<6x32xbf16>
    %c1_88 = arith.constant 1 : index
    %c0_89 = arith.constant 0 : index
    %c0_90 = arith.constant 0 : index
    %260 = vector.load %arg5[%c1_88, %c0_89, %c0_90] : memref<2x32x32xbf16, #tpu.memory_space<vmem>>, vector<1x32x32xbf16>
    %261 = vector.shape_cast %260 : vector<1x32x32xbf16> to vector<32x32xbf16>
    %cst_91 = arith.constant dense<0.000000e+00> : vector<6x32xf32>
    %262 = tpu.matmul %259, %261, %cst_91 {dimension_numbers = #tpu.dot_dimension_numbers<[1], [0], [0], [1], [0, 0, 1, 1], [], []>} : vector<6x32xbf16>, vector<32x32xbf16>, vector<6x32xf32> -> vector<6x32xf32>
    %263 = vector.extract_strided_slice %258 {offsets = [0, 0], sizes = [1, 32], strides = [1, 1]} : vector<6x32xf32> to vector<1x32xf32>
    %264 = vector.broadcast %263 : vector<1x32xf32> to vector<6x32xf32>
    %265 = arith.addf %262, %264 : vector<6x32xf32>
    %266 = arith.addf %165, %265 : vector<6x32xf32>
    %267 = vector.extract_strided_slice %258 {offsets = [1, 0], sizes = [1, 32], strides = [1, 1]} : vector<6x32xf32> to vector<1x32xf32>
    %268 = vector.extract_strided_slice %258 {offsets = [2, 0], sizes = [1, 32], strides = [1, 1]} : vector<6x32xf32> to vector<1x32xf32>
    %cst_92 = arith.constant dense<0.000000e+00> : vector<6xf32>
    %269 = vector.multi_reduction <add>, %266, %cst_92 [1] : vector<6x32xf32> to vector<6xf32>
    %270 = vector.shape_cast %269 : vector<6xf32> to vector<6x1xf32>
    %cst_93 = arith.constant 3.200000e+01 : f32
    %271 = vector.broadcast %cst_93 : f32 to vector<6x1xf32>
    %272 = arith.divf %270, %271 : vector<6x1xf32>
    %273 = vector.broadcast %272 : vector<6x1xf32> to vector<6x32xf32>
    %274 = arith.subf %266, %273 : vector<6x32xf32>
    %275 = arith.mulf %274, %274 : vector<6x32xf32>
    %cst_94 = arith.constant dense<0.000000e+00> : vector<6xf32>
    %276 = vector.multi_reduction <add>, %275, %cst_94 [1] : vector<6x32xf32> to vector<6xf32>
    %277 = vector.shape_cast %276 : vector<6xf32> to vector<6x1xf32>
    %cst_95 = arith.constant 3.200000e+01 : f32
    %278 = vector.broadcast %cst_95 : f32 to vector<6x1xf32>
    %279 = arith.divf %277, %278 : vector<6x1xf32>
    %cst_96 = arith.constant 9.99999974E-6 : f32
    %280 = vector.broadcast %cst_96 : f32 to vector<6x1xf32>
    %281 = arith.addf %279, %280 : vector<6x1xf32>
    %282 = math.rsqrt %281 : vector<6x1xf32>
    %283 = vector.broadcast %282 : vector<6x1xf32> to vector<6x32xf32>
    %284 = arith.mulf %274, %283 : vector<6x32xf32>
    %285 = vector.broadcast %267 : vector<1x32xf32> to vector<6x32xf32>
    %286 = arith.mulf %284, %285 : vector<6x32xf32>
    %287 = vector.broadcast %268 : vector<1x32xf32> to vector<6x32xf32>
    %288 = arith.addf %286, %287 : vector<6x32xf32>
    %289 = arith.truncf %288 : vector<6x32xf32> to vector<6x32xbf16>
    %c1_97 = arith.constant 1 : index
    %c0_98 = arith.constant 0 : index
    %c0_99 = arith.constant 0 : index
    %290 = vector.load %arg7[%c1_97, %c0_98, %c0_99] : memref<2x32x2048xbf16, #tpu.memory_space<vmem>>, vector<1x32x2048xbf16>
    %291 = vector.shape_cast %290 : vector<1x32x2048xbf16> to vector<32x2048xbf16>
    %cst_100 = arith.constant dense<0.000000e+00> : vector<6x2048xf32>
    %292 = tpu.matmul %289, %291, %cst_100 {dimension_numbers = #tpu.dot_dimension_numbers<[1], [0], [0], [1], [0, 0, 1, 1], [], []>} : vector<6x32xbf16>, vector<32x2048xbf16>, vector<6x2048xf32> -> vector<6x2048xf32>
    %c1_101 = arith.constant 1 : index
    %c0_102 = arith.constant 0 : index
    %c0_103 = arith.constant 0 : index
    %293 = vector.load %arg8[%c1_101, %c0_102, %c0_103] : memref<2x1x2048xf32, #tpu.memory_space<vmem>>, vector<1x1x2048xf32>
    %294 = vector.shape_cast %293 : vector<1x1x2048xf32> to vector<1x2048xf32>
    %295 = vector.broadcast %294 : vector<1x2048xf32> to vector<6x2048xf32>
    %296 = arith.addf %292, %295 : vector<6x2048xf32>
    %cst_104 = arith.constant 0.000000e+00 : f32
    %297 = vector.broadcast %cst_104 : f32 to vector<6x2048xf32>
    %298 = arith.maximumf %296, %297 : vector<6x2048xf32>
    %299 = arith.truncf %298 : vector<6x2048xf32> to vector<6x2048xbf16>
    %c1_105 = arith.constant 1 : index
    %c0_106 = arith.constant 0 : index
    %c0_107 = arith.constant 0 : index
    %300 = vector.load %arg9[%c1_105, %c0_106, %c0_107] : memref<2x32x2048xbf16, #tpu.memory_space<vmem>>, vector<1x32x2048xbf16>
    %301 = vector.shape_cast %300 : vector<1x32x2048xbf16> to vector<32x2048xbf16>
    %cst_108 = arith.constant dense<0.000000e+00> : vector<6x32xf32>
    %302 = tpu.matmul %299, %301, %cst_108 {dimension_numbers = #tpu.dot_dimension_numbers<[1], [1], [0], [0], [0, 0, 1, 0], [], []>} : vector<6x2048xbf16>, vector<32x2048xbf16>, vector<6x32xf32> -> vector<6x32xf32>
    %303 = vector.extract_strided_slice %258 {offsets = [3, 0], sizes = [1, 32], strides = [1, 1]} : vector<6x32xf32> to vector<1x32xf32>
    %304 = vector.broadcast %303 : vector<1x32xf32> to vector<6x32xf32>
    %305 = arith.addf %302, %304 : vector<6x32xf32>
    %306 = arith.addf %288, %305 : vector<6x32xf32>
    %307 = vector.extract_strided_slice %258 {offsets = [4, 0], sizes = [1, 32], strides = [1, 1]} : vector<6x32xf32> to vector<1x32xf32>
    %308 = vector.extract_strided_slice %258 {offsets = [5, 0], sizes = [1, 32], strides = [1, 1]} : vector<6x32xf32> to vector<1x32xf32>
    %cst_109 = arith.constant dense<0.000000e+00> : vector<6xf32>
    %309 = vector.multi_reduction <add>, %306, %cst_109 [1] : vector<6x32xf32> to vector<6xf32>
    %310 = vector.shape_cast %309 : vector<6xf32> to vector<6x1xf32>
    %cst_110 = arith.constant 3.200000e+01 : f32
    %311 = vector.broadcast %cst_110 : f32 to vector<6x1xf32>
    %312 = arith.divf %310, %311 : vector<6x1xf32>
    %313 = vector.broadcast %312 : vector<6x1xf32> to vector<6x32xf32>
    %314 = arith.subf %306, %313 : vector<6x32xf32>
    %315 = arith.mulf %314, %314 : vector<6x32xf32>
    %cst_111 = arith.constant dense<0.000000e+00> : vector<6xf32>
    %316 = vector.multi_reduction <add>, %315, %cst_111 [1] : vector<6x32xf32> to vector<6xf32>
    %317 = vector.shape_cast %316 : vector<6xf32> to vector<6x1xf32>
    %cst_112 = arith.constant 3.200000e+01 : f32
    %318 = vector.broadcast %cst_112 : f32 to vector<6x1xf32>
    %319 = arith.divf %317, %318 : vector<6x1xf32>
    %cst_113 = arith.constant 9.99999974E-6 : f32
    %320 = vector.broadcast %cst_113 : f32 to vector<6x1xf32>
    %321 = arith.addf %319, %320 : vector<6x1xf32>
    %322 = math.rsqrt %321 : vector<6x1xf32>
    %323 = vector.broadcast %322 : vector<6x1xf32> to vector<6x32xf32>
    %324 = arith.mulf %314, %323 : vector<6x32xf32>
    %325 = vector.broadcast %307 : vector<1x32xf32> to vector<6x32xf32>
    %326 = arith.mulf %324, %325 : vector<6x32xf32>
    %327 = vector.broadcast %308 : vector<1x32xf32> to vector<6x32xf32>
    %328 = arith.addf %326, %327 : vector<6x32xf32>
    %329 = vector.shape_cast %328 : vector<6x32xf32> to vector<2x3x32xf32>
    %cst_114 = arith.constant dense<0.000000e+00> : vector<2x32xf32>
    %330 = vector.multi_reduction <add>, %329, %cst_114 [1] : vector<2x3x32xf32> to vector<2x32xf32>
    %cst_115 = arith.constant 3.000000e+00 : f32
    %331 = vector.broadcast %cst_115 : f32 to vector<2x32xf32>
    %332 = arith.divf %330, %331 : vector<2x32xf32>
    %c0_116 = arith.constant 0 : index
    %c0_117 = arith.constant 0 : index
    %333 = vector.load %arg10[%c0_116, %c0_117] : memref<2x32xf32, #tpu.memory_space<vmem>>, vector<2x32xf32>
    tpu.vector_store %arg10[%c0_116, %c0_117], %332 {strides = array<i32>} : memref<2x32xf32, #tpu.memory_space<vmem>>, vector<2x32xf32>,
    return
  }
  func.func @transform_0(%arg0: i32) -> (i32, i32, i32) {
    %c0_i32 = arith.constant 0 : i32
    %c0_i32_0 = arith.constant 0 : i32
    %c0_i32_1 = arith.constant 0 : i32
    %c0_i32_2 = arith.constant 0 : i32
    return %c0_i32, %c0_i32_0, %c0_i32_1 : i32, i32, i32
  }
  func.func @transform_1(%arg0: i32) -> (i32, i32) {
    %c0_i32 = arith.constant 0 : i32
    %c0_i32_0 = arith.constant 0 : i32
    %c0_i32_1 = arith.constant 0 : i32
    return %c0_i32, %c0_i32_0 : i32, i32
  }
  func.func @transform_2(%arg0: i32) -> (i32, i32, i32) {
    %c0_i32 = arith.constant 0 : i32
    %c0_i32_0 = arith.constant 0 : i32
    %c0_i32_1 = arith.constant 0 : i32
    %c0_i32_2 = arith.constant 0 : i32
    return %c0_i32, %c0_i32_0, %c0_i32_1 : i32, i32, i32
  }
  func.func @transform_3(%arg0: i32) -> (i32, i32, i32) {
    %c0_i32 = arith.constant 0 : i32
    %c0_i32_0 = arith.constant 0 : i32
    %c0_i32_1 = arith.constant 0 : i32
    %c0_i32_2 = arith.constant 0 : i32
    return %c0_i32, %c0_i32_0, %c0_i32_1 : i32, i32, i32
  }
  func.func @transform_4(%arg0: i32) -> (i32, i32, i32) {
    %c0_i32 = arith.constant 0 : i32
    %c0_i32_0 = arith.constant 0 : i32
    %c0_i32_1 = arith.constant 0 : i32
    %c0_i32_2 = arith.constant 0 : i32
    return %c0_i32, %c0_i32_0, %c0_i32_1 : i32, i32, i32
  }
  func.func @transform_5(%arg0: i32) -> (i32, i32, i32) {
    %c0_i32 = arith.constant 0 : i32
    %c0_i32_0 = arith.constant 0 : i32
    %c0_i32_1 = arith.constant 0 : i32
    %c0_i32_2 = arith.constant 0 : i32
    return %c0_i32, %c0_i32_0, %c0_i32_1 : i32, i32, i32
  }
  func.func @transform_6(%arg0: i32) -> (i32, i32, i32) {
    %c0_i32 = arith.constant 0 : i32
    %c0_i32_0 = arith.constant 0 : i32
    %c0_i32_1 = arith.constant 0 : i32
    %c0_i32_2 = arith.constant 0 : i32
    return %c0_i32, %c0_i32_0, %c0_i32_1 : i32, i32, i32
  }
  func.func @transform_7(%arg0: i32) -> (i32, i32, i32) {
    %c0_i32 = arith.constant 0 : i32
    %c0_i32_0 = arith.constant 0 : i32
    %c0_i32_1 = arith.constant 0 : i32
    %c0_i32_2 = arith.constant 0 : i32
    return %c0_i32, %c0_i32_0, %c0_i32_1 : i32, i32, i32
  }
  func.func @transform_8(%arg0: i32) -> (i32, i32, i32) {
    %c0_i32 = arith.constant 0 : i32
    %c0_i32_0 = arith.constant 0 : i32
    %c0_i32_1 = arith.constant 0 : i32
    %c0_i32_2 = arith.constant 0 : i32
    return %c0_i32, %c0_i32_0, %c0_i32_1 : i32, i32, i32
  }
  func.func @transform_9(%arg0: i32) -> (i32, i32) {
    %c0_i32 = arith.constant 0 : i32
    %c0_i32_0 = arith.constant 0 : i32
    %c0_i32_1 = arith.constant 0 : i32
    return %c0_i32, %c0_i32_0 : i32, i32
  }
}

</mosaic_0001>

<llo_original>
// kernel: _forward_jit.1
$region0: #{_forward_jit.1}
  #allocation0 [shape = 'u32[]', space=smem, size = 0x4, offset = 0x4, fixed_abs, tag = 'smem constant byte address 0x4 - core index']
  #allocation1 [shape = 'u32[144,128]{1,0:T(1,128)}', space=vmem, size = 0x12000, scoped, tag = 'internal scratch']
  %s0 = inlined_call_operand.vmem [shape: f32[2,3,32], index: 0, kind: input, shape index: {}]
  %s1 = inlined_call_operand.vmem [shape: f32[6,6], index: 1, kind: input, shape index: {}]
  %s2 = inlined_call_operand.vmem [shape: bf16[2,32,96], index: 2, kind: input, shape index: {}]
  %s3 = inlined_call_operand.hbm [shape: f32[2,1,96], index: 3, kind: input, shape index: {}]
  %s4 = inlined_call_operand.vmem [shape: bf16[2,32,32], index: 4, kind: input, shape index: {}]
  %s5 = inlined_call_operand.vmem [shape: f32[2,6,32], index: 5, kind: input, shape index: {}]
  %s6 = inlined_call_operand.hbm [shape: bf16[2,32,2048], index: 6, kind: input, shape index: {}]
  %s7 = inlined_call_operand.hbm [shape: f32[2,1,2048], index: 7, kind: input, shape index: {}]
  %s8 = inlined_call_operand.hbm [shape: bf16[2,32,2048], index: 8, kind: input, shape index: {}]
  %s9 = inlined_call_operand.hbm [shape: f32[2,32], index: 9, kind: output, shape index: {}]
  %s10 = sld [smem:[#allocation0]]
  $region62: #{_forward_jit.1} parent=0
    _
  %s12 = ssub.s32 1, %s10
  %s13 = scalar_select 0, %s12, %s10
  $region1: #{_forward_jit.1} parent=0
    #allocation2 [shape = 'u8[1024]{0}', space=vmem, size = 0x400, scoped, tag = 'input window, operand 3, single buffered']
    #allocation3 [shape = 's32[1]{0}', space=sflag, size = 0x4, scoped, tag = 'scoped memory for _forward_jit.1']
    #allocation4 [shape = 's32[1]{0}', space=sflag, size = 0x4, scoped, tag = 'scoped memory for _forward_jit.1']
    #allocation5 [shape = 'u8[262144]{0}', space=vmem, size = 0x40000, scoped, tag = 'input window, operand 6, single buffered']
    #allocation6 [shape = 's32[1]{0}', space=sflag, size = 0x4, scoped, tag = 'scoped memory for _forward_jit.1']
    #allocation7 [shape = 'u8[16384]{0}', space=vmem, size = 0x4000, scoped, tag = 'input window, operand 7, single buffered']
    #allocation8 [shape = 'u8[262144]{0}', space=vmem, size = 0x40000, scoped, tag = 'input window, operand 8, single buffered']
    #allocation9 [shape = 's32[1]{0}', space=sflag, size = 0x4, scoped, tag = 'scoped memory for _forward_jit.1']
    #allocation10 [shape = 'u8[1024]{0}', space=vmem, size = 0x400, scoped, tag = 'output window, operand 0, single buffered']
    %14 = vsyncpa [#allocation3], 0
    %15 = vsyncpa [#allocation6], 0
    %16 = vsyncpa [#allocation9], 0
    %17 = vsyncpa [#allocation4], 0
    // Predicated region
    $region2: #{_forward_jit.1} parent=1 // pred_check
      _
    $region3: #{_forward_jit.1} parent=1 // pred_check_branch
      %19 = sbr.rel (0) target = $region5
    $region4: #{_forward_jit.1} parent=1 // pred_region
      _
    $region5: #{_forward_jit.1} parent=1 // pred_fallthru
      _
    // Predicated region
    $region6: #{_forward_jit.1} parent=1 // pred_check
      _
    $region7: #{_forward_jit.1} parent=1 // pred_check_branch
      %21 = sbr.rel (0) target = $region9
    $region8: #{_forward_jit.1} parent=1 // pred_region
      _
    $region9: #{_forward_jit.1} parent=1 // pred_fallthru
      _
    // Predicated region
    $region10: #{_forward_jit.1} parent=1 // pred_check
      _
    $region11: #{_forward_jit.1} parent=1 // pred_check_branch
      %23 = sbr.rel (0) target = $region13
    $region12: #{_forward_jit.1} parent=1 // pred_region
      _
    $region13: #{_forward_jit.1} parent=1 // pred_fallthru
      _
    // Predicated region
    $region14: #{_forward_jit.1} parent=1 // pred_check
      _
    $region15: #{_forward_jit.1} parent=1 // pred_check_branch
      %25 = sbr.rel (0) target = $region17
    $region16: #{_forward_jit.1} parent=1 // pred_region
      %s27 = ssub.s32 32, 32
      %28 = vsyncadd [#allocation3], %s27
      %s29 = sshll.u32 [#allocation2], 4
      %s30 = int_to_ptr.vmem [resolvable:$true] %s29
      %35 = dma.hbm_to_vmem [thread:$0]  %s3, 32, %s30, [#allocation3], 16, 16, 1
    $region17: #{_forward_jit.1} parent=1 // pred_fallthru
      _
    // Predicated region
    $region18: #{_forward_jit.1} parent=1 // pred_check
      _
    $region19: #{_forward_jit.1} parent=1 // pred_check_branch
      %37 = sbr.rel (0) target = $region21
    $region20: #{_forward_jit.1} parent=1 // pred_region
      _
    $region21: #{_forward_jit.1} parent=1 // pred_fallthru
      _
    // Predicated region
    $region22: #{_forward_jit.1} parent=1 // pred_check
      _
    $region23: #{_forward_jit.1} parent=1 // pred_check_branch
      %39 = sbr.rel (0) target = $region25
    $region24: #{_forward_jit.1} parent=1 // pred_region
      _
    $region25: #{_forward_jit.1} parent=1 // pred_fallthru
      _
    // Predicated region
    $region26: #{_forward_jit.1} parent=1 // pred_check
      _
    $region27: #{_forward_jit.1} parent=1 // pred_check_branch
      %41 = sbr.rel (0) target = $region29
    $region28: #{_forward_jit.1} parent=1 // pred_region
      %s43 = ssub.s32 8192, 8192
      %44 = vsyncadd [#allocation6], %s43
      %s45 = sshll.u32 [#allocation5], 4
      %s46 = int_to_ptr.vmem [resolvable:$true] %s45
      %51 = dma.hbm_to_vmem [thread:$0]  %s6, 8192, %s46, [#allocation6], 1024, 1024, 64
    $region29: #{_forward_jit.1} parent=1 // pred_fallthru
      _
    // Predicated region
    $region30: #{_forward_jit.1} parent=1 // pred_check
      _
    $region31: #{_forward_jit.1} parent=1 // pred_check_branch
      %53 = sbr.rel (0) target = $region33
    $region32: #{_forward_jit.1} parent=1 // pred_region
      %s55 = ssub.s32 512, 512
      %56 = vsyncadd [#allocation6], %s55
      %s57 = sshll.u32 [#allocation7], 4
      %s58 = int_to_ptr.vmem [resolvable:$true] %s57
      %63 = dma.hbm_to_vmem [thread:$0]  %s7, 512, %s58, [#allocation6], 256, 256, 16
    $region33: #{_forward_jit.1} parent=1 // pred_fallthru
      _
    // Predicated region
    $region34: #{_forward_jit.1} parent=1 // pred_check
      _
    $region35: #{_forward_jit.1} parent=1 // pred_check_branch
      %65 = sbr.rel (0) target = $region37
    $region36: #{_forward_jit.1} parent=1 // pred_region
      %s67 = ssub.s32 8192, 8192
      %68 = vsyncadd [#allocation9], %s67
      %s69 = sshll.u32 [#allocation8], 4
      %s70 = int_to_ptr.vmem [resolvable:$true] %s69
      %75 = dma.hbm_to_vmem [thread:$0]  %s8, 8192, %s70, [#allocation9], 1024, 1024, 64
    $region37: #{_forward_jit.1} parent=1 // pred_fallthru
      _
    // Predicated region
    $region38: #{_forward_jit.1} parent=1 // pred_check
      _
    $region39: #{_forward_jit.1} parent=1 // pred_check_branch
      %77 = sbr.rel (0) target = $region41
    $region40: #{_forward_jit.1} parent=1 // pred_region
      %78 = dma.done [#allocation3], 32
    $region41: #{_forward_jit.1} parent=1 // pred_fallthru
      _
    // Predicated region
    $region42: #{_forward_jit.1} parent=1 // pred_check
      _
    $region43: #{_forward_jit.1} parent=1 // pred_check_branch
      %80 = sbr.rel (0) target = $region45
    $region44: #{_forward_jit.1} parent=1 // pred_region
      %81 = dma.done [#allocation6], 8192
    $region45: #{_forward_jit.1} parent=1 // pred_fallthru
      _
    // Predicated region
    $region46: #{_forward_jit.1} parent=1 // pred_check
      _
    $region47: #{_forward_jit.1} parent=1 // pred_check_branch
      %83 = sbr.rel (0) target = $region49
    $region48: #{_forward_jit.1} parent=1 // pred_region
      %84 = dma.done [#allocation6], 512
    $region49: #{_forward_jit.1} parent=1 // pred_fallthru
      _
    // Predicated region
    $region50: #{_forward_jit.1} parent=1 // pred_check
      _
    $region51: #{_forward_jit.1} parent=1 // pred_check_branch
      %86 = sbr.rel (0) target = $region53
    $region52: #{_forward_jit.1} parent=1 // pred_region
      %87 = dma.done [#allocation9], 8192
    $region53: #{_forward_jit.1} parent=1 // pred_fallthru
      _
    %v89 = vld [vmem:[%s1] sm:$0x3f]
    %v90 = vld [vmem:[%s0] sm:$0x7]
    %v91 = vld [vmem:[%s0 + $0x4] sm:$0x7]
    %v95 = vunpack.c.l.s4 1966171168
    %v96 = vunpack.c.0.s8 %v95
    %v97 = vlaneseq
    %v98 = vshrl.u32 %v97, 7
    %v99 = vsub.s32 %v96, %v98
    %v100 = vrot.slane %v90, %v99
    %v101 = vcombine.high %v100, %v100
    %v103 = vunpack.c.l.s4 1966171168
    %v104 = vunpack.c.0.s8 %v103
    %v105 = vlaneseq
    %v106 = vshrl.u32 %v105, 7
    %v107 = vsub.s32 %v104, %v106
    %v108 = vrot.slane %v100, %v107
    %v110 = vunpack.c.l.s4 1966171168
    %v111 = vunpack.c.0.s8 %v110
    %v112 = vlaneseq
    %v113 = vshrl.u32 %v112, 7
    %v114 = vsub.s32 %v111, %v113
    %v115 = vrot.slane %v101, %v114
    %v116 = vcombine.high %v108, %v108
    %v118 = vunpack.c.l.s4 1966171168
    %v119 = vunpack.c.0.s8 %v118
    %v120 = vlaneseq
    %v121 = vshrl.u32 %v120, 7
    %v122 = vsub.s32 %v119, %v121
    %v123 = vrot.slane %v91, %v122
    %v124 = vcombine.high %v123, %v123
    %v126 = vunpack.c.l.s4 1966171168
    %v127 = vunpack.c.0.s8 %v126
    %v128 = vlaneseq
    %v129 = vshrl.u32 %v128, 7
    %v130 = vsub.s32 %v127, %v129
    %v131 = vrot.slane %v123, %v130
    %v133 = vunpack.c.l.s4 1966171168
    %v134 = vunpack.c.0.s8 %v133
    %v135 = vlaneseq
    %v136 = vshrl.u32 %v135, 7
    %v137 = vsub.s32 %v134, %v136
    %v138 = vrot.slane %v124, %v137
    %v139 = vcombine.high %v131, %v131
    %v146 = vcombine.low %v108, %v115
    %v147 = vcombine.low %v116, %v131
    %v148 = vcombine.low %v138, %v139
    %v150 = vunpack.c.l.s4 1966171168
    %v151 = vunpack.c.0.s8 %v150
    %v152 = vlaneseq
    %v153 = vshrl.u32 %v152, 7
    %v154 = vsub.s32 %v151, %v153
    %v155 = vrot.slane %v146, %v154
    %v157 = vunpack.c.l.s4 1966171168
    %v158 = vunpack.c.0.s8 %v157
    %v159 = vlaneseq
    %v160 = vshrl.u32 %v159, 7
    %v161 = vsub.s32 %v158, %v160
    %v162 = vrot.slane %v147, %v161
    %v164 = vunpack.c.l.s4 1966171168
    %v165 = vunpack.c.0.s8 %v164
    %v166 = vlaneseq
    %v167 = vshrl.u32 %v166, 7
    %v168 = vsub.s32 %v165, %v167
    %v169 = vrot.slane %v148, %v168
    %v170 = vcombine.low %v155, %v162
    %v172 = vunpack.c.l.s4 1966171168
    %v173 = vunpack.c.0.s8 %v172
    %v174 = vlaneseq
    %v175 = vshrl.u32 %v174, 7
    %v176 = vsub.s32 %v173, %v175
    %v177 = vrot.slane %v170, %v176
    %v179 = vunpack.c.l.s4 1966171168
    %v180 = vunpack.c.0.s8 %v179
    %v181 = vlaneseq
    %v182 = vshrl.u32 %v181, 7
    %v183 = vsub.s32 %v180, %v182
    %v184 = vrot.slane %v169, %v183
    %v185 = vcombine.low %v177, %v184
    %v187 = vpack.c.bf16 %v185, %v185
    %v188 = vld [vmem:[%s2] sm:$0xf]
    %v189 = vld [vmem:[%s2 + $0x4] sm:$0xf]
    %v190 = vld [vmem:[%s2 + $0x8] sm:$0xf]
    %v191 = vld [vmem:[%s2 + $0xc] sm:$0xf]
    %v192 = vld [vmem:[#allocation2] sm:$0x1]
    %v194 = vlaneseq
    %v195 = vshrl.u32 %v194, 7
    %v196 = vsub.s32 0, %v195
    %v197 = vrot.slane %v192, %v196
    %v203 = vunpack.c.l.b16 %v188
    %v204 = vunpack.c.l.b16 %v189
    %v205 = vunpack.c.l.b16 %v190
    %v206 = vunpack.c.l.b16 %v191
    %v207 = vpack.c.b16 %v204, %v203
    %v208 = vpack.c.b16 %v206, %v205
    %vm211 = vcmask 261120
    %v213 = vsel %vm211, %v187, 0
    %215 = vmatprep.subr.bf16.mxu0 0
    %216 = vmatpush1.bf16.msra.mxu0 0
    %217 = vmatprep.subr.bf16.mxu0 0
    %218 = vmatpush1.bf16.msra.mxu0 0
    %219 = vmatprep.subr.bf16.mxu0 0
    %220 = vmatpush1.bf16.msra.mxu0 0
    %221 = vmatprep.subr.bf16.mxu0 0
    %222 = vmatpush1.bf16.msra.mxu0 0
    %223 = vmatprep.subr.bf16.mxu0 0
    %224 = vmatpush1.bf16.msra.mxu0 0
    %225 = vmatprep.subr.bf16.mxu0 0
    %226 = vmatpush1.bf16.msra.mxu0 0
    %227 = vmatprep.subr.bf16.mxu0 0
    %228 = vmatpush1.bf16.msra.mxu0 %v208
    %229 = vmatprep.subr.bf16.mxu0 0
    %230 = vmatpush1.bf16.msra.mxu0 %v207
    %231 = vmatprep.subr.bf16.mxu0 0
    %232 = vmatpush2.bf16.msra.mxu0 0
    %233 = vmatprep.subr.bf16.mxu0 0
    %234 = vmatpush2.bf16.msra.mxu0 0
    %235 = vmatprep.subr.bf16.mxu0 0
    %236 = vmatpush2.bf16.msra.mxu0 0
    %237 = vmatprep.subr.bf16.mxu0 0
    %238 = vmatpush2.bf16.msra.mxu0 0
    %239 = vmatprep.subr.bf16.mxu0 0
    %240 = vmatpush2.bf16.msra.mxu0 0
    %241 = vmatprep.subr.bf16.mxu0 0
    %242 = vmatpush2.bf16.msra.mxu0 0
    %243 = vmatprep.subr.bf16.mxu0 0
    %244 = vmatpush2.bf16.msra.mxu0 0
    %245 = vmatprep.subr.bf16.mxu0 0
    %246 = vmatpush2.bf16.msra.mxu0 0
    %247 = vmatprep.mubr.bf16.mxu0 0
    %248 = vmatmul.mubr.bf16.gmra.mxu0 %v213
    %v249 = vpop.f32.mrf.mxu0
    %v250 = vadd.f32 %v197, %v249
    %v251 = vpop.f32.mrf.mxu0
    %v252 = vpop.f32.mrf.mxu0
    %v253 = vpop.f32.mrf.mxu0
    %254 = vdwg.mxu0
    %v255 = vpack.c.bf16 %v250, %v250
    %257 = vrot.lane.b32.xlu0 %v255, 96
    %v258 = vpop.permute.xlu0 %257
    %vm259 = vcmask 64512
    %v261 = vsel %vm259, %v255, 0
    %v264 = vsel %vm259, %v258, 0
    %266 = vmatprep.subr.bf16.mxu0 0
    %267 = vmatpush1.bf16.xpose.msra.mxu0 0
    %268 = vmatprep.subr.bf16.mxu0 0
    %269 = vmatpush1.bf16.xpose.msra.mxu0 0
    %270 = vmatprep.subr.bf16.mxu0 0
    %271 = vmatpush1.bf16.xpose.msra.mxu0 0
    %272 = vmatprep.subr.bf16.mxu0 0
    %273 = vmatpush1.bf16.xpose.msra.mxu0 0
    %274 = vmatprep.subr.bf16.mxu0 0
    %275 = vmatpush1.bf16.xpose.msra.mxu0 0
    %276 = vmatprep.subr.bf16.mxu0 0
    %277 = vmatpush1.bf16.xpose.msra.mxu0 0
    %278 = vmatprep.subr.bf16.mxu0 0
    %279 = vmatpush1.bf16.xpose.msra.mxu0 0
    %280 = vmatprep.subr.bf16.mxu0 0
    %281 = vmatpush1.bf16.xpose.msra.mxu0 %v264
    %282 = vmatprep.subr.bf16.mxu0 0
    %283 = vmatpush2.bf16.xpose.msra.mxu0 0
    %284 = vmatprep.subr.bf16.mxu0 0
    %285 = vmatpush2.bf16.xpose.msra.mxu0 0
    %286 = vmatprep.subr.bf16.mxu0 0
    %287 = vmatpush2.bf16.xpose.msra.mxu0 0
    %288 = vmatprep.subr.bf16.mxu0 0
    %289 = vmatpush2.bf16.xpose.msra.mxu0 0
    %290 = vmatprep.subr.bf16.mxu0 0
    %291 = vmatpush2.bf16.xpose.msra.mxu0 0
    %292 = vmatprep.subr.bf16.mxu0 0
    %293 = vmatpush2.bf16.xpose.msra.mxu0 0
    %294 = vmatprep.subr.bf16.mxu0 0
    %295 = vmatpush2.bf16.xpose.msra.mxu0 0
    %296 = vmatprep.subr.bf16.mxu0 0
    %297 = vmatpush2.bf16.xpose.msra.mxu0 0
    %298 = vmatprep.mubr.bf16.mxu0 0
    %299 = vmatmul.mubr.bf16.gmra.mxu0 %v261
    %v300 = vpop.f32.mrf.mxu0
    %v301 = vadd.f32 0.0, %v300
    %v302 = vpop.f32.mrf.mxu0
    %v303 = vpop.f32.mrf.mxu0
    %v304 = vpop.f32.mrf.mxu0
    %305 = vdwg.mxu0
    %v306 = vmul.f32 %v301, 0.35355338
    %v307 = vadd.f32 %v306, %v89
    %vm308 = vcmask 46080
    %v309 = vsel %vm308, %v307, -inf
    %310 = vmax.xlane.f32.xlu0 %v309
    %v311 = vpop.xlane.xlu0 %310
    %v312 = vsub.f32 %v307, %v311
    %v313 = vmul.f32 %v312, 1.442695
    %v314 = vpow.pop %v313
    %v315 = vsel %vm308, %v314, 0.0
    %316 = vadd.xlane.f32.xlu0 %v315
    %v317 = vpop.xlane.xlu0 %316
    %v318 = vrcp.pop %v317
    %v319 = vmul.f32 %v314, %v318
    %v320 = vpack.c.bf16 %v319, %v319
    %321 = vrot.lane.b32.xlu0 %v255, 64
    %v322 = vpop.permute.xlu0 %321
    %vm323 = vcmask 48128
    %v325 = vsel %vm323, %v320, 0
    %vm327 = vcmask 1042432
    %v329 = vsel %vm327, %v322, 0
    %331 = vmatprep.subr.bf16.mxu0 0
    %332 = vmatpush1.bf16.msra.mxu0 0
    %333 = vmatprep.subr.bf16.mxu0 0
    %334 = vmatpush1.bf16.msra.mxu0 0
    %335 = vmatprep.subr.bf16.mxu0 0
    %336 = vmatpush1.bf16.msra.mxu0 0
    %337 = vmatprep.subr.bf16.mxu0 0
    %338 = vmatpush1.bf16.msra.mxu0 0
    %339 = vmatprep.subr.bf16.mxu0 0
    %340 = vmatpush1.bf16.msra.mxu0 0
    %341 = vmatprep.subr.bf16.mxu0 0
    %342 = vmatpush1.bf16.msra.mxu0 0
    %343 = vmatprep.subr.bf16.mxu0 0
    %344 = vmatpush1.bf16.msra.mxu0 0
    %345 = vmatprep.subr.bf16.mxu0 0
    %346 = vmatpush1.bf16.msra.mxu0 %v329
    %347 = vmatprep.subr.bf16.mxu0 0
    %348 = vmatpush2.bf16.msra.mxu0 0
    %349 = vmatprep.subr.bf16.mxu0 0
    %350 = vmatpush2.bf16.msra.mxu0 0
    %351 = vmatprep.subr.bf16.mxu0 0
    %352 = vmatpush2.bf16.msra.mxu0 0
    %353 = vmatprep.subr.bf16.mxu0 0
    %354 = vmatpush2.bf16.msra.mxu0 0
    %355 = vmatprep.subr.bf16.mxu0 0
    %356 = vmatpush2.bf16.msra.mxu0 0
    %357 = vmatprep.subr.bf16.mxu0 0
    %358 = vmatpush2.bf16.msra.mxu0 0
    %359 = vmatprep.subr.bf16.mxu0 0
    %360 = vmatpush2.bf16.msra.mxu0 0
    %361 = vmatprep.subr.bf16.mxu0 0
    %362 = vmatpush2.bf16.msra.mxu0 0
    %363 = vmatprep.mubr.bf16.mxu0 0
    %364 = vmatmul.mubr.bf16.gmra.mxu0 %v325
    %v365 = vpop.f32.mrf.mxu0
    %v366 = vadd.f32 0.0, %v365
    %v367 = vpop.f32.mrf.mxu0
    %v368 = vpop.f32.mrf.mxu0
    %v369 = vpop.f32.mrf.mxu0
    %370 = vdwg.mxu0
    %371 = vrot.lane.b32.xlu0 %v255, 120
    %v372 = vpop.permute.xlu0 %371
    %373 = vrot.lane.b32.xlu0 %v255, 88
    %v374 = vpop.permute.xlu0 %373
    %v376 = vsel %vm259, %v372, 0
    %v379 = vsel %vm259, %v374, 0
    %381 = vmatprep.subr.bf16.mxu0 0
    %382 = vmatpush1.bf16.xpose.msra.mxu0 0
    %383 = vmatprep.subr.bf16.mxu0 0
    %384 = vmatpush1.bf16.xpose.msra.mxu0 0
    %385 = vmatprep.subr.bf16.mxu0 0
    %386 = vmatpush1.bf16.xpose.msra.mxu0 0
    %387 = vmatprep.subr.bf16.mxu0 0
    %388 = vmatpush1.bf16.xpose.msra.mxu0 0
    %389 = vmatprep.subr.bf16.mxu0 0
    %390 = vmatpush1.bf16.xpose.msra.mxu0 0
    %391 = vmatprep.subr.bf16.mxu0 0
    %392 = vmatpush1.bf16.xpose.msra.mxu0 0
    %393 = vmatprep.subr.bf16.mxu0 0
    %394 = vmatpush1.bf16.xpose.msra.mxu0 0
    %395 = vmatprep.subr.bf16.mxu0 0
    %396 = vmatpush1.bf16.xpose.msra.mxu0 %v379
    %397 = vmatprep.subr.bf16.mxu0 0
    %398 = vmatpush2.bf16.xpose.msra.mxu0 0
    %399 = vmatprep.subr.bf16.mxu0 0
    %400 = vmatpush2.bf16.xpose.msra.mxu0 0
    %401 = vmatprep.subr.bf16.mxu0 0
    %402 = vmatpush2.bf16.xpose.msra.mxu0 0
    %403 = vmatprep.subr.bf16.mxu0 0
    %404 = vmatpush2.bf16.xpose.msra.mxu0 0
    %405 = vmatprep.subr.bf16.mxu0 0
    %406 = vmatpush2.bf16.xpose.msra.mxu0 0
    %407 = vmatprep.subr.bf16.mxu0 0
    %408 = vmatpush2.bf16.xpose.msra.mxu0 0
    %409 = vmatprep.subr.bf16.mxu0 0
    %410 = vmatpush2.bf16.xpose.msra.mxu0 0
    %411 = vmatprep.subr.bf16.mxu0 0
    %412 = vmatpush2.bf16.xpose.msra.mxu0 0
    %413 = vmatprep.mubr.bf16.mxu0 0
    %414 = vmatmul.mubr.bf16.gmra.mxu0 %v376
    %v415 = vpop.f32.mrf.mxu0
    %v416 = vadd.f32 0.0, %v415
    %v417 = vpop.f32.mrf.mxu0
    %v418 = vpop.f32.mrf.mxu0
    %v419 = vpop.f32.mrf.mxu0
    %420 = vdwg.mxu0
    %v421 = vmul.f32 %v416, 0.35355338
    %v422 = vadd.f32 %v421, %v89
    %v423 = vsel %vm308, %v422, -inf
    %424 = vmax.xlane.f32.xlu0 %v423
    %v425 = vpop.xlane.xlu0 %424
    %v426 = vsub.f32 %v422, %v425
    %v427 = vmul.f32 %v426, 1.442695
    %v428 = vpow.pop %v427
    %v429 = vsel %vm308, %v428, 0.0
    %430 = vadd.xlane.f32.xlu0 %v429
    %v431 = vpop.xlane.xlu0 %430
    %v432 = vrcp.pop %v431
    %v433 = vmul.f32 %v428, %v432
    %v434 = vpack.c.bf16 %v433, %v433
    %435 = vrot.lane.b32.xlu0 %v255, 56
    %v436 = vpop.permute.xlu0 %435
    %v438 = vsel %vm323, %v434, 0
    %v441 = vsel %vm327, %v436, 0
    %443 = vmatprep.subr.bf16.mxu0 0
    %444 = vmatpush1.bf16.msra.mxu0 0
    %445 = vmatprep.subr.bf16.mxu0 0
    %446 = vmatpush1.bf16.msra.mxu0 0
    %447 = vmatprep.subr.bf16.mxu0 0
    %448 = vmatpush1.bf16.msra.mxu0 0
    %449 = vmatprep.subr.bf16.mxu0 0
    %450 = vmatpush1.bf16.msra.mxu0 0
    %451 = vmatprep.subr.bf16.mxu0 0
    %452 = vmatpush1.bf16.msra.mxu0 0
    %453 = vmatprep.subr.bf16.mxu0 0
    %454 = vmatpush1.bf16.msra.mxu0 0
    %455 = vmatprep.subr.bf16.mxu0 0
    %456 = vmatpush1.bf16.msra.mxu0 0
    %457 = vmatprep.subr.bf16.mxu0 0
    %458 = vmatpush1.bf16.msra.mxu0 %v441
    %459 = vmatprep.subr.bf16.mxu0 0
    %460 = vmatpush2.bf16.msra.mxu0 0
    %461 = vmatprep.subr.bf16.mxu0 0
    %462 = vmatpush2.bf16.msra.mxu0 0
    %463 = vmatprep.subr.bf16.mxu0 0
    %464 = vmatpush2.bf16.msra.mxu0 0
    %465 = vmatprep.subr.bf16.mxu0 0
    %466 = vmatpush2.bf16.msra.mxu0 0
    %467 = vmatprep.subr.bf16.mxu0 0
    %468 = vmatpush2.bf16.msra.mxu0 0
    %469 = vmatprep.subr.bf16.mxu0 0
    %470 = vmatpush2.bf16.msra.mxu0 0
    %471 = vmatprep.subr.bf16.mxu0 0
    %472 = vmatpush2.bf16.msra.mxu0 0
    %473 = vmatprep.subr.bf16.mxu0 0
    %474 = vmatpush2.bf16.msra.mxu0 0
    %475 = vmatprep.mubr.bf16.mxu0 0
    %476 = vmatmul.mubr.bf16.gmra.mxu0 %v438
    %v477 = vpop.f32.mrf.mxu0
    %v478 = vadd.f32 0.0, %v477
    %v479 = vpop.f32.mrf.mxu0
    %v480 = vpop.f32.mrf.mxu0
    %v481 = vpop.f32.mrf.mxu0
    %482 = vdwg.mxu0
    %483 = vrot.lane.b32.xlu0 %v255, 112
    %v484 = vpop.permute.xlu0 %483
    %485 = vrot.lane.b32.xlu0 %v255, 80
    %v486 = vpop.permute.xlu0 %485
    %v488 = vsel %vm259, %v484, 0
    %v491 = vsel %vm259, %v486, 0
    %493 = vmatprep.subr.bf16.mxu0 0
    %494 = vmatpush1.bf16.xpose.msra.mxu0 0
    %495 = vmatprep.subr.bf16.mxu0 0
    %496 = vmatpush1.bf16.xpose.msra.mxu0 0
    %497 = vmatprep.subr.bf16.mxu0 0
    %498 = vmatpush1.bf16.xpose.msra.mxu0 0
    %499 = vmatprep.subr.bf16.mxu0 0
    %500 = vmatpush1.bf16.xpose.msra.mxu0 0
    %501 = vmatprep.subr.bf16.mxu0 0
    %502 = vmatpush1.bf16.xpose.msra.mxu0 0
    %503 = vmatprep.subr.bf16.mxu0 0
    %504 = vmatpush1.bf16.xpose.msra.mxu0 0
    %505 = vmatprep.subr.bf16.mxu0 0
    %506 = vmatpush1.bf16.xpose.msra.mxu0 0
    %507 = vmatprep.subr.bf16.mxu0 0
    %508 = vmatpush1.bf16.xpose.msra.mxu0 %v491
    %509 = vmatprep.subr.bf16.mxu0 0
    %510 = vmatpush2.bf16.xpose.msra.mxu0 0
    %511 = vmatprep.subr.bf16.mxu0 0
    %512 = vmatpush2.bf16.xpose.msra.mxu0 0
    %513 = vmatprep.subr.bf16.mxu0 0
    %514 = vmatpush2.bf16.xpose.msra.mxu0 0
    %515 = vmatprep.subr.bf16.mxu0 0
    %516 = vmatpush2.bf16.xpose.msra.mxu0 0
    %517 = vmatprep.subr.bf16.mxu0 0
    %518 = vmatpush2.bf16.xpose.msra.mxu0 0
    %519 = vmatprep.subr.bf16.mxu0 0
    %520 = vmatpush2.bf16.xpose.msra.mxu0 0
    %521 = vmatprep.subr.bf16.mxu0 0
    %522 = vmatpush2.bf16.xpose.msra.mxu0 0
    %523 = vmatprep.subr.bf16.mxu0 0
    %524 = vmatpush2.bf16.xpose.msra.mxu0 0
    %525 = vmatprep.mubr.bf16.mxu0 0
    %526 = vmatmul.mubr.bf16.gmra.mxu0 %v488
    %v527 = vpop.f32.mrf.mxu0
    %v528 = vadd.f32 0.0, %v527
    %v529 = vpop.f32.mrf.mxu0
    %v530 = vpop.f32.mrf.mxu0
    %v531 = vpop.f32.mrf.mxu0
    %532 = vdwg.mxu0
    %v533 = vmul.f32 %v528, 0.35355338
    %v534 = vadd.f32 %v533, %v89
    %v535 = vsel %vm308, %v534, -inf
    %536 = vmax.xlane.f32.xlu0 %v535
    %v537 = vpop.xlane.xlu0 %536
    %v538 = vsub.f32 %v534, %v537
    %v539 = vmul.f32 %v538, 1.442695
    %v540 = vpow.pop %v539
    %v541 = vsel %vm308, %v540, 0.0
    %542 = vadd.xlane.f32.xlu0 %v541
    %v543 = vpop.xlane.xlu0 %542
    %v544 = vrcp.pop %v543
    %v545 = vmul.f32 %v540, %v544
    %v546 = vpack.c.bf16 %v545, %v545
    %547 = vrot.lane.b32.xlu0 %v255, 48
    %v548 = vpop.permute.xlu0 %547
    %v550 = vsel %vm323, %v546, 0
    %v553 = vsel %vm327, %v548, 0
    %555 = vmatprep.subr.bf16.mxu0 0
    %556 = vmatpush1.bf16.msra.mxu0 0
    %557 = vmatprep.subr.bf16.mxu0 0
    %558 = vmatpush1.bf16.msra.mxu0 0
    %559 = vmatprep.subr.bf16.mxu0 0
    %560 = vmatpush1.bf16.msra.mxu0 0
    %561 = vmatprep.subr.bf16.mxu0 0
    %562 = vmatpush1.bf16.msra.mxu0 0
    %563 = vmatprep.subr.bf16.mxu0 0
    %564 = vmatpush1.bf16.msra.mxu0 0
    %565 = vmatprep.subr.bf16.mxu0 0
    %566 = vmatpush1.bf16.msra.mxu0 0
    %567 = vmatprep.subr.bf16.mxu0 0
    %568 = vmatpush1.bf16.msra.mxu0 0
    %569 = vmatprep.subr.bf16.mxu0 0
    %570 = vmatpush1.bf16.msra.mxu0 %v553
    %571 = vmatprep.subr.bf16.mxu0 0
    %572 = vmatpush2.bf16.msra.mxu0 0
    %573 = vmatprep.subr.bf16.mxu0 0
    %574 = vmatpush2.bf16.msra.mxu0 0
    %575 = vmatprep.subr.bf16.mxu0 0
    %576 = vmatpush2.bf16.msra.mxu0 0
    %577 = vmatprep.subr.bf16.mxu0 0
    %578 = vmatpush2.bf16.msra.mxu0 0
    %579 = vmatprep.subr.bf16.mxu0 0
    %580 = vmatpush2.bf16.msra.mxu0 0
    %581 = vmatprep.subr.bf16.mxu0 0
    %582 = vmatpush2.bf16.msra.mxu0 0
    %583 = vmatprep.subr.bf16.mxu0 0
    %584 = vmatpush2.bf16.msra.mxu0 0
    %585 = vmatprep.subr.bf16.mxu0 0
    %586 = vmatpush2.bf16.msra.mxu0 0
    %587 = vmatprep.mubr.bf16.mxu0 0
    %588 = vmatmul.mubr.bf16.gmra.mxu0 %v550
    %v589 = vpop.f32.mrf.mxu0
    %v590 = vadd.f32 0.0, %v589
    %v591 = vpop.f32.mrf.mxu0
    %v592 = vpop.f32.mrf.mxu0
    %v593 = vpop.f32.mrf.mxu0
    %594 = vdwg.mxu0
    %595 = vrot.lane.b32.xlu0 %v255, 104
    %v596 = vpop.permute.xlu0 %595
    %597 = vrot.lane.b32.xlu0 %v255, 72
    %v598 = vpop.permute.xlu0 %597
    %v600 = vsel %vm259, %v596, 0
    %v603 = vsel %vm259, %v598, 0
    %605 = vmatprep.subr.bf16.mxu0 0
    %606 = vmatpush1.bf16.xpose.msra.mxu0 0
    %607 = vmatprep.subr.bf16.mxu0 0
    %608 = vmatpush1.bf16.xpose.msra.mxu0 0
    %609 = vmatprep.subr.bf16.mxu0 0
    %610 = vmatpush1.bf16.xpose.msra.mxu0 0
    %611 = vmatprep.subr.bf16.mxu0 0
    %612 = vmatpush1.bf16.xpose.msra.mxu0 0
    %613 = vmatprep.subr.bf16.mxu0 0
    %614 = vmatpush1.bf16.xpose.msra.mxu0 0
    %615 = vmatprep.subr.bf16.mxu0 0
    %616 = vmatpush1.bf16.xpose.msra.mxu0 0
    %617 = vmatprep.subr.bf16.mxu0 0
    %618 = vmatpush1.bf16.xpose.msra.mxu0 0
    %619 = vmatprep.subr.bf16.mxu0 0
    %620 = vmatpush1.bf16.xpose.msra.mxu0 %v603
    %621 = vmatprep.subr.bf16.mxu0 0
    %622 = vmatpush2.bf16.xpose.msra.mxu0 0
    %623 = vmatprep.subr.bf16.mxu0 0
    %624 = vmatpush2.bf16.xpose.msra.mxu0 0
    %625 = vmatprep.subr.bf16.mxu0 0
    %626 = vmatpush2.bf16.xpose.msra.mxu0 0
    %627 = vmatprep.subr.bf16.mxu0 0
    %628 = vmatpush2.bf16.xpose.msra.mxu0 0
    %629 = vmatprep.subr.bf16.mxu0 0
    %630 = vmatpush2.bf16.xpose.msra.mxu0 0
    %631 = vmatprep.subr.bf16.mxu0 0
    %632 = vmatpush2.bf16.xpose.msra.mxu0 0
    %633 = vmatprep.subr.bf16.mxu0 0
    %634 = vmatpush2.bf16.xpose.msra.mxu0 0
    %635 = vmatprep.subr.bf16.mxu0 0
    %636 = vmatpush2.bf16.xpose.msra.mxu0 0
    %637 = vmatprep.mubr.bf16.mxu0 0
    %638 = vmatmul.mubr.bf16.gmra.mxu0 %v600
    %v639 = vpop.f32.mrf.mxu0
    %v640 = vadd.f32 0.0, %v639
    %v641 = vpop.f32.mrf.mxu0
    %v642 = vpop.f32.mrf.mxu0
    %v643 = vpop.f32.mrf.mxu0
    %644 = vdwg.mxu0
    %v645 = vmul.f32 %v640, 0.35355338
    %v646 = vadd.f32 %v645, %v89
    %v647 = vsel %vm308, %v646, -inf
    %648 = vmax.xlane.f32.xlu0 %v647
    %v649 = vpop.xlane.xlu0 %648
    %v650 = vsub.f32 %v646, %v649
    %v651 = vmul.f32 %v650, 1.442695
    %v652 = vpow.pop %v651
    %v653 = vsel %vm308, %v652, 0.0
    %654 = vadd.xlane.f32.xlu0 %v653
    %v655 = vpop.xlane.xlu0 %654
    %v656 = vrcp.pop %v655
    %v657 = vmul.f32 %v652, %v656
    %v658 = vpack.c.bf16 %v657, %v657
    %659 = vrot.lane.b32.xlu0 %v255, 40
    %v660 = vpop.permute.xlu0 %659
    %v662 = vsel %vm323, %v658, 0
    %v665 = vsel %vm327, %v660, 0
    %667 = vmatprep.subr.bf16.mxu0 0
    %668 = vmatpush1.bf16.msra.mxu0 0
    %669 = vmatprep.subr.bf16.mxu0 0
    %670 = vmatpush1.bf16.msra.mxu0 0
    %671 = vmatprep.subr.bf16.mxu0 0
    %672 = vmatpush1.bf16.msra.mxu0 0
    %673 = vmatprep.subr.bf16.mxu0 0
    %674 = vmatpush1.bf16.msra.mxu0 0
    %675 = vmatprep.subr.bf16.mxu0 0
    %676 = vmatpush1.bf16.msra.mxu0 0
    %677 = vmatprep.subr.bf16.mxu0 0
    %678 = vmatpush1.bf16.msra.mxu0 0
    %679 = vmatprep.subr.bf16.mxu0 0
    %680 = vmatpush1.bf16.msra.mxu0 0
    %681 = vmatprep.subr.bf16.mxu0 0
    %682 = vmatpush1.bf16.msra.mxu0 %v665
    %683 = vmatprep.subr.bf16.mxu0 0
    %684 = vmatpush2.bf16.msra.mxu0 0
    %685 = vmatprep.subr.bf16.mxu0 0
    %686 = vmatpush2.bf16.msra.mxu0 0
    %687 = vmatprep.subr.bf16.mxu0 0
    %688 = vmatpush2.bf16.msra.mxu0 0
    %689 = vmatprep.subr.bf16.mxu0 0
    %690 = vmatpush2.bf16.msra.mxu0 0
    %691 = vmatprep.subr.bf16.mxu0 0
    %692 = vmatpush2.bf16.msra.mxu0 0
    %693 = vmatprep.subr.bf16.mxu0 0
    %694 = vmatpush2.bf16.msra.mxu0 0
    %695 = vmatprep.subr.bf16.mxu0 0
    %696 = vmatpush2.bf16.msra.mxu0 0
    %697 = vmatprep.subr.bf16.mxu0 0
    %698 = vmatpush2.bf16.msra.mxu0 0
    %699 = vmatprep.mubr.bf16.mxu0 0
    %700 = vmatmul.mubr.bf16.gmra.mxu0 %v662
    %v701 = vpop.f32.mrf.mxu0
    %v702 = vadd.f32 0.0, %v701
    %v703 = vpop.f32.mrf.mxu0
    %v704 = vpop.f32.mrf.mxu0
    %v705 = vpop.f32.mrf.mxu0
    %706 = vdwg.mxu0
    %708 = vrot.lane.b32.xlu0 %v478, 8
    %v709 = vpop.permute.xlu0 %708
    %712 = vrot.lane.b32.xlu0 %v590, 16
    %v713 = vpop.permute.xlu0 %712
    %716 = vrot.lane.b32.xlu0 %v702, 24
    %v717 = vpop.permute.xlu0 %716
    %v719 = vsel %vm259, %v366, %v709
    %vm720 = vcmask 130048
    %v721 = vsel %vm720, %v719, %v713
    %vm722 = vcmask 195584
    %v723 = vsel %vm722, %v721, %v717
    %v724 = vld [vmem:[%s5] sm:$0x3f]
    %v725 = vpack.c.bf16 %v723, %v723
    %v726 = vld [vmem:[%s4] sm:$0xf]
    %v727 = vld [vmem:[%s4 + $0x4] sm:$0xf]
    %v728 = vld [vmem:[%s4 + $0x8] sm:$0xf]
    %v729 = vld [vmem:[%s4 + $0xc] sm:$0xf]
    %v730 = vlaneseq
    %v731 = vshrl.u32 %v730, 7
    %v732 = vsub.s32 0, %v731
    %v733 = vrot.slane %v724, %v732
    %v738 = vunpack.c.l.b16 %v726
    %v739 = vunpack.c.l.b16 %v727
    %v740 = vunpack.c.l.b16 %v728
    %v741 = vunpack.c.l.b16 %v729
    %v742 = vpack.c.b16 %v739, %v738
    %v743 = vpack.c.b16 %v741, %v740
    %v747 = vsel %vm211, %v725, 0
    %749 = vmatprep.subr.bf16.mxu0 0
    %750 = vmatpush1.bf16.msra.mxu0 0
    %751 = vmatprep.subr.bf16.mxu0 0
    %752 = vmatpush1.bf16.msra.mxu0 0
    %753 = vmatprep.subr.bf16.mxu0 0
    %754 = vmatpush1.bf16.msra.mxu0 0
    %755 = vmatprep.subr.bf16.mxu0 0
    %756 = vmatpush1.bf16.msra.mxu0 0
    %757 = vmatprep.subr.bf16.mxu0 0
    %758 = vmatpush1.bf16.msra.mxu0 0
    %759 = vmatprep.subr.bf16.mxu0 0
    %760 = vmatpush1.bf16.msra.mxu0 0
    %761 = vmatprep.subr.bf16.mxu0 0
    %762 = vmatpush1.bf16.msra.mxu0 %v743
    %763 = vmatprep.subr.bf16.mxu0 0
    %764 = vmatpush1.bf16.msra.mxu0 %v742
    %765 = vmatprep.subr.bf16.mxu0 0
    %766 = vmatpush2.bf16.msra.mxu0 0
    %767 = vmatprep.subr.bf16.mxu0 0
    %768 = vmatpush2.bf16.msra.mxu0 0
    %769 = vmatprep.subr.bf16.mxu0 0
    %770 = vmatpush2.bf16.msra.mxu0 0
    %771 = vmatprep.subr.bf16.mxu0 0
    %772 = vmatpush2.bf16.msra.mxu0 0
    %773 = vmatprep.subr.bf16.mxu0 0
    %774 = vmatpush2.bf16.msra.mxu0 0
    %775 = vmatprep.subr.bf16.mxu0 0
    %776 = vmatpush2.bf16.msra.mxu0 0
    %777 = vmatprep.subr.bf16.mxu0 0
    %778 = vmatpush2.bf16.msra.mxu0 0
    %779 = vmatprep.subr.bf16.mxu0 0
    %780 = vmatpush2.bf16.msra.mxu0 0
    %781 = vmatprep.mubr.bf16.mxu0 0
    %782 = vmatmul.mubr.bf16.gmra.mxu0 %v747
    %v783 = vpop.f32.mrf.mxu0
    %v784 = vadd.f32 %v733, %v783
    %v785 = vpop.f32.mrf.mxu0
    %v786 = vpop.f32.mrf.mxu0
    %v787 = vpop.f32.mrf.mxu0
    %788 = vdwg.mxu0
    %v790 = vcombine.high %v784, %v784
    %v792 = vunpack.c.l.s4 1966171168
    %v793 = vunpack.c.0.s8 %v792
    %v794 = vlaneseq
    %v795 = vshrl.u32 %v794, 7
    %v796 = vsub.s32 %v793, %v795
    %v797 = vrot.slane %v784, %v796
    %v799 = vunpack.c.l.s4 1966171168
    %v800 = vunpack.c.0.s8 %v799
    %v801 = vlaneseq
    %v802 = vshrl.u32 %v801, 7
    %v803 = vsub.s32 %v800, %v802
    %v804 = vrot.slane %v790, %v803
    %v805 = vcombine.high %v797, %v797
    %v806 = vcombine.high %v804, %v804
    %v808 = vunpack.c.l.s4 1966171168
    %v809 = vunpack.c.0.s8 %v808
    %v810 = vlaneseq
    %v811 = vshrl.u32 %v810, 7
    %v812 = vsub.s32 %v809, %v811
    %v813 = vrot.slane %v797, %v812
    %v815 = vunpack.c.l.s4 1966171168
    %v816 = vunpack.c.0.s8 %v815
    %v817 = vlaneseq
    %v818 = vshrl.u32 %v817, 7
    %v819 = vsub.s32 %v816, %v818
    %v820 = vrot.slane %v804, %v819
    %v822 = vunpack.c.l.s4 1966171168
    %v823 = vunpack.c.0.s8 %v822
    %v824 = vlaneseq
    %v825 = vshrl.u32 %v824, 7
    %v826 = vsub.s32 %v823, %v825
    %v827 = vrot.slane %v805, %v826
    %v829 = vunpack.c.l.s4 1966171168
    %v830 = vunpack.c.0.s8 %v829
    %v831 = vlaneseq
    %v832 = vshrl.u32 %v831, 7
    %v833 = vsub.s32 %v830, %v832
    %v834 = vrot.slane %v806, %v833
    %v835 = vcombine.high %v813, %v813
    %v836 = vcombine.high %v827, %v827
    %v843 = vadd.f32 %v108, %v813
    %v844 = vadd.f32 %v115, %v827
    %v845 = vadd.f32 %v116, %v835
    %v846 = vadd.f32 %v131, %v836
    %v847 = vadd.f32 %v138, %v820
    %v848 = vadd.f32 %v139, %v834
    %v855 = vcombine.low %v843, %v844
    %v856 = vcombine.low %v845, %v846
    %v857 = vcombine.low %v847, %v848
    %v859 = vunpack.c.l.s4 1966171168
    %v860 = vunpack.c.0.s8 %v859
    %v861 = vlaneseq
    %v862 = vshrl.u32 %v861, 7
    %v863 = vsub.s32 %v860, %v862
    %v864 = vrot.slane %v855, %v863
    %v866 = vunpack.c.l.s4 1966171168
    %v867 = vunpack.c.0.s8 %v866
    %v868 = vlaneseq
    %v869 = vshrl.u32 %v868, 7
    %v870 = vsub.s32 %v867, %v869
    %v871 = vrot.slane %v856, %v870
    %v873 = vunpack.c.l.s4 1966171168
    %v874 = vunpack.c.0.s8 %v873
    %v875 = vlaneseq
    %v876 = vshrl.u32 %v875, 7
    %v877 = vsub.s32 %v874, %v876
    %v878 = vrot.slane %v857, %v877
    %v879 = vcombine.low %v864, %v871
    %v881 = vunpack.c.l.s4 1966171168
    %v882 = vunpack.c.0.s8 %v881
    %v883 = vlaneseq
    %v884 = vshrl.u32 %v883, 7
    %v885 = vsub.s32 %v882, %v884
    %v886 = vrot.slane %v879, %v885
    %v888 = vunpack.c.l.s4 1966171168
    %v889 = vunpack.c.0.s8 %v888
    %v890 = vlaneseq
    %v891 = vshrl.u32 %v890, 7
    %v892 = vsub.s32 %v889, %v891
    %v893 = vrot.slane %v878, %v892
    %v894 = vcombine.low %v886, %v893
    %vm896 = vcmask 259072
    %v897 = vsel %vm896, %v894, 0.0
    %898 = vadd.xlane.f32.xlu0 %v897
    %v899 = vpop.xlane.xlu0 %898
    %v900 = vrcp.pop 32.0
    %v901 = vmul.f32 %v899, %v900
    %v903 = vlaneseq
    %v904 = vshrl.u32 %v903, 7
    %v905 = vsub.s32 0, %v904
    %v906 = vrot.slane %v901, %v905
    %v907 = vlaneseq
    %v908 = vshrl.u32 %v907, 7
    %v909 = vsub.s32 1, %v908
    %v910 = vrot.slane %v901, %v909
    %v911 = vlaneseq
    %v912 = vshrl.u32 %v911, 7
    %v913 = vsub.s32 2, %v912
    %v914 = vrot.slane %v901, %v913
    %v915 = vlaneseq
    %v916 = vshrl.u32 %v915, 7
    %v917 = vsub.s32 3, %v916
    %v918 = vrot.slane %v901, %v917
    %v919 = vlaneseq
    %v920 = vshrl.u32 %v919, 7
    %v921 = vsub.s32 4, %v920
    %v922 = vrot.slane %v901, %v921
    %v923 = vlaneseq
    %v924 = vshrl.u32 %v923, 7
    %v925 = vsub.s32 5, %v924
    %v926 = vrot.slane %v901, %v925
    %v933 = vsub.f32 %v843, %v906
    %v934 = vsub.f32 %v844, %v910
    %v935 = vsub.f32 %v845, %v914
    %v936 = vsub.f32 %v846, %v918
    %v937 = vsub.f32 %v847, %v922
    %v938 = vsub.f32 %v848, %v926
    %v939 = vmul.f32 %v933, %v933
    %v940 = vmul.f32 %v934, %v934
    %v941 = vmul.f32 %v935, %v935
    %v942 = vmul.f32 %v936, %v936
    %v943 = vmul.f32 %v937, %v937
    %v944 = vmul.f32 %v938, %v938
    %v951 = vcombine.low %v939, %v940
    %v952 = vcombine.low %v941, %v942
    %v953 = vcombine.low %v943, %v944
    %v955 = vunpack.c.l.s4 1966171168
    %v956 = vunpack.c.0.s8 %v955
    %v957 = vlaneseq
    %v958 = vshrl.u32 %v957, 7
    %v959 = vsub.s32 %v956, %v958
    %v960 = vrot.slane %v951, %v959
    %v962 = vunpack.c.l.s4 1966171168
    %v963 = vunpack.c.0.s8 %v962
    %v964 = vlaneseq
    %v965 = vshrl.u32 %v964, 7
    %v966 = vsub.s32 %v963, %v965
    %v967 = vrot.slane %v952, %v966
    %v969 = vunpack.c.l.s4 1966171168
    %v970 = vunpack.c.0.s8 %v969
    %v971 = vlaneseq
    %v972 = vshrl.u32 %v971, 7
    %v973 = vsub.s32 %v970, %v972
    %v974 = vrot.slane %v953, %v973
    %v975 = vcombine.low %v960, %v967
    %v977 = vunpack.c.l.s4 1966171168
    %v978 = vunpack.c.0.s8 %v977
    %v979 = vlaneseq
    %v980 = vshrl.u32 %v979, 7
    %v981 = vsub.s32 %v978, %v980
    %v982 = vrot.slane %v975, %v981
    %v984 = vunpack.c.l.s4 1966171168
    %v985 = vunpack.c.0.s8 %v984
    %v986 = vlaneseq
    %v987 = vshrl.u32 %v986, 7
    %v988 = vsub.s32 %v985, %v987
    %v989 = vrot.slane %v974, %v988
    %v990 = vcombine.low %v982, %v989
    %v992 = vsel %vm896, %v990, 0.0
    %993 = vadd.xlane.f32.xlu0 %v992
    %v994 = vpop.xlane.xlu0 %993
    %v995 = vmul.f32 %v994, %v900
    %v996 = vadd.f32 %v995, 1e-05
    %v997 = vrsqrt.pop %v996
    %v999 = vlaneseq
    %v1000 = vshrl.u32 %v999, 7
    %v1001 = vsub.s32 0, %v1000
    %v1002 = vrot.slane %v997, %v1001
    %v1003 = vlaneseq
    %v1004 = vshrl.u32 %v1003, 7
    %v1005 = vsub.s32 1, %v1004
    %v1006 = vrot.slane %v997, %v1005
    %v1007 = vlaneseq
    %v1008 = vshrl.u32 %v1007, 7
    %v1009 = vsub.s32 2, %v1008
    %v1010 = vrot.slane %v997, %v1009
    %v1011 = vlaneseq
    %v1012 = vshrl.u32 %v1011, 7
    %v1013 = vsub.s32 3, %v1012
    %v1014 = vrot.slane %v997, %v1013
    %v1015 = vlaneseq
    %v1016 = vshrl.u32 %v1015, 7
    %v1017 = vsub.s32 4, %v1016
    %v1018 = vrot.slane %v997, %v1017
    %v1019 = vlaneseq
    %v1020 = vshrl.u32 %v1019, 7
    %v1021 = vsub.s32 5, %v1020
    %v1022 = vrot.slane %v997, %v1021
    %v1029 = vmul.f32 %v933, %v1002
    %v1030 = vmul.f32 %v934, %v1006
    %v1031 = vmul.f32 %v935, %v1010
    %v1032 = vmul.f32 %v936, %v1014
    %v1033 = vmul.f32 %v937, %v1018
    %v1034 = vmul.f32 %v938, %v1022
    %v1035 = vlaneseq
    %v1036 = vshrl.u32 %v1035, 7
    %v1037 = vsub.s32 1, %v1036
    %v1038 = vrot.slane %v724, %v1037
    %v1040 = vcombine.high %v1038, %v1038
    %v1042 = vunpack.c.l.s4 1966171168
    %v1043 = vunpack.c.0.s8 %v1042
    %v1044 = vlaneseq
    %v1045 = vshrl.u32 %v1044, 7
    %v1046 = vsub.s32 %v1043, %v1045
    %v1047 = vrot.slane %v1038, %v1046
    %v1049 = vunpack.c.l.s4 1966171168
    %v1050 = vunpack.c.0.s8 %v1049
    %v1051 = vlaneseq
    %v1052 = vshrl.u32 %v1051, 7
    %v1053 = vsub.s32 %v1050, %v1052
    %v1054 = vrot.slane %v1040, %v1053
    %v1055 = vcombine.high %v1047, %v1047
    %v1056 = vcombine.high %v1054, %v1054
    %v1058 = vunpack.c.l.s4 1966171168
    %v1059 = vunpack.c.0.s8 %v1058
    %v1060 = vlaneseq
    %v1061 = vshrl.u32 %v1060, 7
    %v1062 = vsub.s32 %v1059, %v1061
    %v1063 = vrot.slane %v1047, %v1062
    %v1065 = vunpack.c.l.s4 1966171168
    %v1066 = vunpack.c.0.s8 %v1065
    %v1067 = vlaneseq
    %v1068 = vshrl.u32 %v1067, 7
    %v1069 = vsub.s32 %v1066, %v1068
    %v1070 = vrot.slane %v1054, %v1069
    %v1072 = vunpack.c.l.s4 1966171168
    %v1073 = vunpack.c.0.s8 %v1072
    %v1074 = vlaneseq
    %v1075 = vshrl.u32 %v1074, 7
    %v1076 = vsub.s32 %v1073, %v1075
    %v1077 = vrot.slane %v1055, %v1076
    %v1079 = vunpack.c.l.s4 1966171168
    %v1080 = vunpack.c.0.s8 %v1079
    %v1081 = vlaneseq
    %v1082 = vshrl.u32 %v1081, 7
    %v1083 = vsub.s32 %v1080, %v1082
    %v1084 = vrot.slane %v1056, %v1083
    %v1085 = vcombine.high %v1063, %v1063
    %v1086 = vcombine.high %v1077, %v1077
    %v1093 = vmul.f32 %v1029, %v1063
    %v1094 = vmul.f32 %v1030, %v1077
    %v1095 = vmul.f32 %v1031, %v1085
    %v1096 = vmul.f32 %v1032, %v1086
    %v1097 = vmul.f32 %v1033, %v1070
    %v1098 = vmul.f32 %v1034, %v1084
    %v1099 = vlaneseq
    %v1100 = vshrl.u32 %v1099, 7
    %v1101 = vsub.s32 2, %v1100
    %v1102 = vrot.slane %v724, %v1101
    %v1104 = vcombine.high %v1102, %v1102
    %v1106 = vunpack.c.l.s4 1966171168
    %v1107 = vunpack.c.0.s8 %v1106
    %v1108 = vlaneseq
    %v1109 = vshrl.u32 %v1108, 7
    %v1110 = vsub.s32 %v1107, %v1109
    %v1111 = vrot.slane %v1102, %v1110
    %v1113 = vunpack.c.l.s4 1966171168
    %v1114 = vunpack.c.0.s8 %v1113
    %v1115 = vlaneseq
    %v1116 = vshrl.u32 %v1115, 7
    %v1117 = vsub.s32 %v1114, %v1116
    %v1118 = vrot.slane %v1104, %v1117
    %v1119 = vcombine.high %v1111, %v1111
    %v1120 = vcombine.high %v1118, %v1118
    %v1122 = vunpack.c.l.s4 1966171168
    %v1123 = vunpack.c.0.s8 %v1122
    %v1124 = vlaneseq
    %v1125 = vshrl.u32 %v1124, 7
    %v1126 = vsub.s32 %v1123, %v1125
    %v1127 = vrot.slane %v1111, %v1126
    %v1129 = vunpack.c.l.s4 1966171168
    %v1130 = vunpack.c.0.s8 %v1129
    %v1131 = vlaneseq
    %v1132 = vshrl.u32 %v1131, 7
    %v1133 = vsub.s32 %v1130, %v1132
    %v1134 = vrot.slane %v1118, %v1133
    %v1136 = vunpack.c.l.s4 1966171168
    %v1137 = vunpack.c.0.s8 %v1136
    %v1138 = vlaneseq
    %v1139 = vshrl.u32 %v1138, 7
    %v1140 = vsub.s32 %v1137, %v1139
    %v1141 = vrot.slane %v1119, %v1140
    %v1143 = vunpack.c.l.s4 1966171168
    %v1144 = vunpack.c.0.s8 %v1143
    %v1145 = vlaneseq
    %v1146 = vshrl.u32 %v1145, 7
    %v1147 = vsub.s32 %v1144, %v1146
    %v1148 = vrot.slane %v1120, %v1147
    %v1149 = vcombine.high %v1127, %v1127
    %v1150 = vcombine.high %v1141, %v1141
    %v1157 = vadd.f32 %v1093, %v1127
    %v1158 = vadd.f32 %v1094, %v1141
    %v1159 = vadd.f32 %v1095, %v1149
    %v1160 = vadd.f32 %v1096, %v1150
    %v1161 = vadd.f32 %v1097, %v1134
    %v1162 = vadd.f32 %v1098, %v1148
    %v1169 = vcombine.low %v1157, %v1158
    %v1170 = vcombine.low %v1159, %v1160
    %v1171 = vcombine.low %v1161, %v1162
    %v1173 = vunpack.c.l.s4 1966171168
    %v1174 = vunpack.c.0.s8 %v1173
    %v1175 = vlaneseq
    %v1176 = vshrl.u32 %v1175, 7
    %v1177 = vsub.s32 %v1174, %v1176
    %v1178 = vrot.slane %v1169, %v1177
    %v1180 = vunpack.c.l.s4 1966171168
    %v1181 = vunpack.c.0.s8 %v1180
    %v1182 = vlaneseq
    %v1183 = vshrl.u32 %v1182, 7
    %v1184 = vsub.s32 %v1181, %v1183
    %v1185 = vrot.slane %v1170, %v1184
    %v1187 = vunpack.c.l.s4 1966171168
    %v1188 = vunpack.c.0.s8 %v1187
    %v1189 = vlaneseq
    %v1190 = vshrl.u32 %v1189, 7
    %v1191 = vsub.s32 %v1188, %v1190
    %v1192 = vrot.slane %v1171, %v1191
    %v1193 = vcombine.low %v1178, %v1185
    %v1195 = vunpack.c.l.s4 1966171168
    %v1196 = vunpack.c.0.s8 %v1195
    %v1197 = vlaneseq
    %v1198 = vshrl.u32 %v1197, 7
    %v1199 = vsub.s32 %v1196, %v1198
    %v1200 = vrot.slane %v1193, %v1199
    %v1202 = vunpack.c.l.s4 1966171168
    %v1203 = vunpack.c.0.s8 %v1202
    %v1204 = vlaneseq
    %v1205 = vshrl.u32 %v1204, 7
    %v1206 = vsub.s32 %v1203, %v1205
    %v1207 = vrot.slane %v1192, %v1206
    %v1208 = vcombine.low %v1200, %v1207
    %v1210 = vpack.c.bf16 %v1208, %v1208
    %v1211 = vld [vmem:[#allocation5] sm:$0xff]
    %v1212 = vld [vmem:[#allocation5 + $0x8] sm:$0xff]
    %v1213 = vld [vmem:[#allocation5 + $0x10] sm:$0xff]
    %v1214 = vld [vmem:[#allocation5 + $0x18] sm:$0xff]
    %v1215 = vld [vmem:[#allocation5 + $0x20] sm:$0xff]
    %v1216 = vld [vmem:[#allocation5 + $0x28] sm:$0xff]
    %v1217 = vld [vmem:[#allocation5 + $0x30] sm:$0xff]
    %v1218 = vld [vmem:[#allocation5 + $0x38] sm:$0xff]
    %v1219 = vld [vmem:[#allocation5 + $0x40] sm:$0xff]
    %v1220 = vld [vmem:[#allocation5 + $0x48] sm:$0xff]
    %v1221 = vld [vmem:[#allocation5 + $0x50] sm:$0xff]
    %v1222 = vld [vmem:[#allocation5 + $0x58] sm:$0xff]
    %v1223 = vld [vmem:[#allocation5 + $0x60] sm:$0xff]
    %v1224 = vld [vmem:[#allocation5 + $0x68] sm:$0xff]
    %v1225 = vld [vmem:[#allocation5 + $0x70] sm:$0xff]
    %v1226 = vld [vmem:[#allocation5 + $0x78] sm:$0xff]
    %v1227 = vld [vmem:[#allocation5 + $0x80] sm:$0xff]
    %v1228 = vld [vmem:[#allocation5 + $0x88] sm:$0xff]
    %v1229 = vld [vmem:[#allocation5 + $0x90] sm:$0xff]
    %v1230 = vld [vmem:[#allocation5 + $0x98] sm:$0xff]
    %v1231 = vld [vmem:[#allocation5 + $0xa0] sm:$0xff]
    %v1232 = vld [vmem:[#allocation5 + $0xa8] sm:$0xff]
    %v1233 = vld [vmem:[#allocation5 + $0xb0] sm:$0xff]
    %v1234 = vld [vmem:[#allocation5 + $0xb8] sm:$0xff]
    %v1235 = vld [vmem:[#allocation5 + $0xc0] sm:$0xff]
    %v1236 = vld [vmem:[#allocation5 + $0xc8] sm:$0xff]
    %v1237 = vld [vmem:[#allocation5 + $0xd0] sm:$0xff]
    %v1238 = vld [vmem:[#allocation5 + $0xd8] sm:$0xff]
    %v1239 = vld [vmem:[#allocation5 + $0xe0] sm:$0xff]
    %v1240 = vld [vmem:[#allocation5 + $0xe8] sm:$0xff]
    %v1241 = vld [vmem:[#allocation5 + $0xf0] sm:$0xff]
    %v1242 = vld [vmem:[#allocation5 + $0xf8] sm:$0xff]
    %v1243 = vld [vmem:[#allocation7] sm:$0xff]
    %v1244 = vld [vmem:[#allocation7 + $0x8] sm:$0xff]
    %v1247 = vlaneseq
    %v1248 = vshrl.u32 %v1247, 7
    %v1249 = vsub.s32 0, %v1248
    %v1250 = vrot.slane %v1243, %v1249
    %v1251 = vlaneseq
    %v1252 = vshrl.u32 %v1251, 7
    %v1253 = vsub.s32 1, %v1252
    %v1254 = vrot.slane %v1243, %v1253
    %v1255 = vlaneseq
    %v1256 = vshrl.u32 %v1255, 7
    %v1257 = vsub.s32 2, %v1256
    %v1258 = vrot.slane %v1243, %v1257
    %v1259 = vlaneseq
    %v1260 = vshrl.u32 %v1259, 7
    %v1261 = vsub.s32 3, %v1260
    %v1262 = vrot.slane %v1243, %v1261
    %v1263 = vlaneseq
    %v1264 = vshrl.u32 %v1263, 7
    %v1265 = vsub.s32 4, %v1264
    %v1266 = vrot.slane %v1243, %v1265
    %v1267 = vlaneseq
    %v1268 = vshrl.u32 %v1267, 7
    %v1269 = vsub.s32 5, %v1268
    %v1270 = vrot.slane %v1243, %v1269
    %v1271 = vlaneseq
    %v1272 = vshrl.u32 %v1271, 7
    %v1273 = vsub.s32 6, %v1272
    %v1274 = vrot.slane %v1243, %v1273
    %v1275 = vlaneseq
    %v1276 = vshrl.u32 %v1275, 7
    %v1277 = vsub.s32 7, %v1276
    %v1278 = vrot.slane %v1243, %v1277
    %v1279 = vlaneseq
    %v1280 = vshrl.u32 %v1279, 7
    %v1281 = vsub.s32 0, %v1280
    %v1282 = vrot.slane %v1244, %v1281
    %v1283 = vlaneseq
    %v1284 = vshrl.u32 %v1283, 7
    %v1285 = vsub.s32 1, %v1284
    %v1286 = vrot.slane %v1244, %v1285
    %v1287 = vlaneseq
    %v1288 = vshrl.u32 %v1287, 7
    %v1289 = vsub.s32 2, %v1288
    %v1290 = vrot.slane %v1244, %v1289
    %v1291 = vlaneseq
    %v1292 = vshrl.u32 %v1291, 7
    %v1293 = vsub.s32 3, %v1292
    %v1294 = vrot.slane %v1244, %v1293
    %v1295 = vlaneseq
    %v1296 = vshrl.u32 %v1295, 7
    %v1297 = vsub.s32 4, %v1296
    %v1298 = vrot.slane %v1244, %v1297
    %v1299 = vlaneseq
    %v1300 = vshrl.u32 %v1299, 7
    %v1301 = vsub.s32 5, %v1300
    %v1302 = vrot.slane %v1244, %v1301
    %v1303 = vlaneseq
    %v1304 = vshrl.u32 %v1303, 7
    %v1305 = vsub.s32 6, %v1304
    %v1306 = vrot.slane %v1244, %v1305
    %v1307 = vlaneseq
    %v1308 = vshrl.u32 %v1307, 7
    %v1309 = vsub.s32 7, %v1308
    %v1310 = vrot.slane %v1244, %v1309
    %v1359 = vunpack.c.l.b16 %v1211
    %v1360 = vunpack.c.h.b16 %v1211
    %v1361 = vunpack.c.l.b16 %v1212
    %v1362 = vunpack.c.h.b16 %v1212
    %v1363 = vunpack.c.l.b16 %v1213
    %v1364 = vunpack.c.h.b16 %v1213
    %v1365 = vunpack.c.l.b16 %v1214
    %v1366 = vunpack.c.h.b16 %v1214
    %v1367 = vunpack.c.l.b16 %v1215
    %v1368 = vunpack.c.h.b16 %v1215
    %v1369 = vunpack.c.l.b16 %v1216
    %v1370 = vunpack.c.h.b16 %v1216
    %v1371 = vunpack.c.l.b16 %v1217
    %v1372 = vunpack.c.h.b16 %v1217
    %v1373 = vunpack.c.l.b16 %v1218
    %v1374 = vunpack.c.h.b16 %v1218
    %v1375 = vunpack.c.l.b16 %v1219
    %v1376 = vunpack.c.h.b16 %v1219
    %v1377 = vunpack.c.l.b16 %v1220
    %v1378 = vunpack.c.h.b16 %v1220
    %v1379 = vunpack.c.l.b16 %v1221
    %v1380 = vunpack.c.h.b16 %v1221
    %v1381 = vunpack.c.l.b16 %v1222
    %v1382 = vunpack.c.h.b16 %v1222
    %v1383 = vunpack.c.l.b16 %v1223
    %v1384 = vunpack.c.h.b16 %v1223
    %v1385 = vunpack.c.l.b16 %v1224
    %v1386 = vunpack.c.h.b16 %v1224
    %v1387 = vunpack.c.l.b16 %v1225
    %v1388 = vunpack.c.h.b16 %v1225
    %v1389 = vunpack.c.l.b16 %v1226
    %v1390 = vunpack.c.h.b16 %v1226
    %v1391 = vunpack.c.l.b16 %v1227
    %v1392 = vunpack.c.h.b16 %v1227
    %v1393 = vunpack.c.l.b16 %v1228
    %v1394 = vunpack.c.h.b16 %v1228
    %v1395 = vunpack.c.l.b16 %v1229
    %v1396 = vunpack.c.h.b16 %v1229
    %v1397 = vunpack.c.l.b16 %v1230
    %v1398 = vunpack.c.h.b16 %v1230
    %v1399 = vunpack.c.l.b16 %v1231
    %v1400 = vunpack.c.h.b16 %v1231
    %v1401 = vunpack.c.l.b16 %v1232
    %v1402 = vunpack.c.h.b16 %v1232
    %v1403 = vunpack.c.l.b16 %v1233
    %v1404 = vunpack.c.h.b16 %v1233
    %v1405 = vunpack.c.l.b16 %v1234
    %v1406 = vunpack.c.h.b16 %v1234
    %v1407 = vunpack.c.l.b16 %v1235
    %v1408 = vunpack.c.h.b16 %v1235
    %v1409 = vunpack.c.l.b16 %v1236
    %v1410 = vunpack.c.h.b16 %v1236
    %v1411 = vunpack.c.l.b16 %v1237
    %v1412 = vunpack.c.h.b16 %v1237
    %v1413 = vunpack.c.l.b16 %v1238
    %v1414 = vunpack.c.h.b16 %v1238
    %v1415 = vunpack.c.l.b16 %v1239
    %v1416 = vunpack.c.h.b16 %v1239
    %v1417 = vunpack.c.l.b16 %v1240
    %v1418 = vunpack.c.h.b16 %v1240
    %v1419 = vunpack.c.l.b16 %v1241
    %v1420 = vunpack.c.h.b16 %v1241
    %v1421 = vunpack.c.l.b16 %v1242
    %v1422 = vunpack.c.h.b16 %v1242
    %v1423 = vpack.c.b16 %v1375, %v1359
    %v1424 = vpack.c.b16 %v1376, %v1360
    %v1425 = vpack.c.b16 %v1377, %v1361
    %v1426 = vpack.c.b16 %v1378, %v1362
    %v1427 = vpack.c.b16 %v1379, %v1363
    %v1428 = vpack.c.b16 %v1380, %v1364
    %v1429 = vpack.c.b16 %v1381, %v1365
    %v1430 = vpack.c.b16 %v1382, %v1366
    %v1431 = vpack.c.b16 %v1383, %v1367
    %v1432 = vpack.c.b16 %v1384, %v1368
    %v1433 = vpack.c.b16 %v1385, %v1369
    %v1434 = vpack.c.b16 %v1386, %v1370
    %v1435 = vpack.c.b16 %v1387, %v1371
    %v1436 = vpack.c.b16 %v1388, %v1372
    %v1437 = vpack.c.b16 %v1389, %v1373
    %v1438 = vpack.c.b16 %v1390, %v1374
    %v1439 = vpack.c.b16 %v1407, %v1391
    %v1440 = vpack.c.b16 %v1408, %v1392
    %v1441 = vpack.c.b16 %v1409, %v1393
    %v1442 = vpack.c.b16 %v1410, %v1394
    %v1443 = vpack.c.b16 %v1411, %v1395
    %v1444 = vpack.c.b16 %v1412, %v1396
    %v1445 = vpack.c.b16 %v1413, %v1397
    %v1446 = vpack.c.b16 %v1414, %v1398
    %v1447 = vpack.c.b16 %v1415, %v1399
    %v1448 = vpack.c.b16 %v1416, %v1400
    %v1449 = vpack.c.b16 %v1417, %v1401
    %v1450 = vpack.c.b16 %v1418, %v1402
    %v1451 = vpack.c.b16 %v1419, %v1403
    %v1452 = vpack.c.b16 %v1420, %v1404
    %v1453 = vpack.c.b16 %v1421, %v1405
    %v1454 = vpack.c.b16 %v1422, %v1406
    %v1488 = vsel %vm211, %v1210, 0
    %1490 = vmatprep.subr.bf16.mxu0 0
    %1491 = vmatpush1.bf16.msra.mxu0 0
    %1492 = vmatprep.subr.bf16.mxu0 0
    %1493 = vmatpush1.bf16.msra.mxu0 0
    %1494 = vmatprep.subr.bf16.mxu0 0
    %1495 = vmatpush1.bf16.msra.mxu0 0
    %1496 = vmatprep.subr.bf16.mxu0 0
    %1497 = vmatpush1.bf16.msra.mxu0 0
    %1498 = vmatprep.subr.bf16.mxu0 0
    %1499 = vmatpush1.bf16.msra.mxu0 0
    %1500 = vmatprep.subr.bf16.mxu0 0
    %1501 = vmatpush1.bf16.msra.mxu0 0
    %1502 = vmatprep.subr.bf16.mxu0 %v1440
    %1503 = vmatpush1.bf16.msra.mxu0 %v1439
    %1504 = vmatprep.subr.bf16.mxu0 %v1424
    %1505 = vmatpush1.bf16.msra.mxu0 %v1423
    %1506 = vmatprep.subr.bf16.mxu0 0
    %1507 = vmatpush2.bf16.msra.mxu0 0
    %1508 = vmatprep.subr.bf16.mxu0 0
    %1509 = vmatpush2.bf16.msra.mxu0 0
    %1510 = vmatprep.subr.bf16.mxu0 0
    %1511 = vmatpush2.bf16.msra.mxu0 0
    %1512 = vmatprep.subr.bf16.mxu0 0
    %1513 = vmatpush2.bf16.msra.mxu0 0
    %1514 = vmatprep.subr.bf16.mxu0 0
    %1515 = vmatpush2.bf16.msra.mxu0 0
    %1516 = vmatprep.subr.bf16.mxu0 0
    %1517 = vmatpush2.bf16.msra.mxu0 0
    %1518 = vmatprep.subr.bf16.mxu0 0
    %1519 = vmatpush2.bf16.msra.mxu0 0
    %1520 = vmatprep.subr.bf16.mxu0 0
    %1521 = vmatpush2.bf16.msra.mxu0 0
    %1522 = vmatprep.mubr.bf16.mxu0 0
    %1523 = vmatmul.mubr.bf16.gmra.mxu0 %v1488
    %v1524 = vpop.f32.mrf.mxu0
    %v1525 = vadd.f32 %v1250, %v1524
    %v1526 = vpop.f32.mrf.mxu0
    %v1527 = vadd.f32 %v1254, %v1526
    %v1528 = vpop.f32.mrf.mxu0
    %v1529 = vpop.f32.mrf.mxu0
    %1530 = vdwg.mxu0
    %1531 = vmatprep.subr.bf16.mxu0 0
    %1532 = vmatpush1.bf16.msra.mxu0 0
    %1533 = vmatprep.subr.bf16.mxu0 0
    %1534 = vmatpush1.bf16.msra.mxu0 0
    %1535 = vmatprep.subr.bf16.mxu0 0
    %1536 = vmatpush1.bf16.msra.mxu0 0
    %1537 = vmatprep.subr.bf16.mxu0 0
    %1538 = vmatpush1.bf16.msra.mxu0 0
    %1539 = vmatprep.subr.bf16.mxu0 0
    %1540 = vmatpush1.bf16.msra.mxu0 0
    %1541 = vmatprep.subr.bf16.mxu0 0
    %1542 = vmatpush1.bf16.msra.mxu0 0
    %1543 = vmatprep.subr.bf16.mxu0 %v1442
    %1544 = vmatpush1.bf16.msra.mxu0 %v1441
    %1545 = vmatprep.subr.bf16.mxu0 %v1426
    %1546 = vmatpush1.bf16.msra.mxu0 %v1425
    %1547 = vmatprep.subr.bf16.mxu0 0
    %1548 = vmatpush2.bf16.msra.mxu0 0
    %1549 = vmatprep.subr.bf16.mxu0 0
    %1550 = vmatpush2.bf16.msra.mxu0 0
    %1551 = vmatprep.subr.bf16.mxu0 0
    %1552 = vmatpush2.bf16.msra.mxu0 0
    %1553 = vmatprep.subr.bf16.mxu0 0
    %1554 = vmatpush2.bf16.msra.mxu0 0
    %1555 = vmatprep.subr.bf16.mxu0 0
    %1556 = vmatpush2.bf16.msra.mxu0 0
    %1557 = vmatprep.subr.bf16.mxu0 0
    %1558 = vmatpush2.bf16.msra.mxu0 0
    %1559 = vmatprep.subr.bf16.mxu0 0
    %1560 = vmatpush2.bf16.msra.mxu0 0
    %1561 = vmatprep.subr.bf16.mxu0 0
    %1562 = vmatpush2.bf16.msra.mxu0 0
    %1563 = vmatprep.mubr.bf16.mxu0 0
    %1564 = vmatmul.mubr.bf16.gmra.mxu0 %v1488
    %v1565 = vpop.f32.mrf.mxu0
    %v1566 = vadd.f32 %v1258, %v1565
    %v1567 = vpop.f32.mrf.mxu0
    %v1568 = vadd.f32 %v1262, %v1567
    %v1569 = vpop.f32.mrf.mxu0
    %v1570 = vpop.f32.mrf.mxu0
    %1571 = vdwg.mxu0
    %1572 = vmatprep.subr.bf16.mxu0 0
    %1573 = vmatpush1.bf16.msra.mxu0 0
    %1574 = vmatprep.subr.bf16.mxu0 0
    %1575 = vmatpush1.bf16.msra.mxu0 0
    %1576 = vmatprep.subr.bf16.mxu0 0
    %1577 = vmatpush1.bf16.msra.mxu0 0
    %1578 = vmatprep.subr.bf16.mxu0 0
    %1579 = vmatpush1.bf16.msra.mxu0 0
    %1580 = vmatprep.subr.bf16.mxu0 0
    %1581 = vmatpush1.bf16.msra.mxu0 0
    %1582 = vmatprep.subr.bf16.mxu0 0
    %1583 = vmatpush1.bf16.msra.mxu0 0
    %1584 = vmatprep.subr.bf16.mxu0 %v1444
    %1585 = vmatpush1.bf16.msra.mxu0 %v1443
    %1586 = vmatprep.subr.bf16.mxu0 %v1428
    %1587 = vmatpush1.bf16.msra.mxu0 %v1427
    %1588 = vmatprep.subr.bf16.mxu0 0
    %1589 = vmatpush2.bf16.msra.mxu0 0
    %1590 = vmatprep.subr.bf16.mxu0 0
    %1591 = vmatpush2.bf16.msra.mxu0 0
    %1592 = vmatprep.subr.bf16.mxu0 0
    %1593 = vmatpush2.bf16.msra.mxu0 0
    %1594 = vmatprep.subr.bf16.mxu0 0
    %1595 = vmatpush2.bf16.msra.mxu0 0
    %1596 = vmatprep.subr.bf16.mxu0 0
    %1597 = vmatpush2.bf16.msra.mxu0 0
    %1598 = vmatprep.subr.bf16.mxu0 0
    %1599 = vmatpush2.bf16.msra.mxu0 0
    %1600 = vmatprep.subr.bf16.mxu0 0
    %1601 = vmatpush2.bf16.msra.mxu0 0
    %1602 = vmatprep.subr.bf16.mxu0 0
    %1603 = vmatpush2.bf16.msra.mxu0 0
    %1604 = vmatprep.mubr.bf16.mxu0 0
    %1605 = vmatmul.mubr.bf16.gmra.mxu0 %v1488
    %v1606 = vpop.f32.mrf.mxu0
    %v1607 = vadd.f32 %v1266, %v1606
    %v1608 = vpop.f32.mrf.mxu0
    %v1609 = vadd.f32 %v1270, %v1608
    %v1610 = vpop.f32.mrf.mxu0
    %v1611 = vpop.f32.mrf.mxu0
    %1612 = vdwg.mxu0
    %1613 = vmatprep.subr.bf16.mxu0 0
    %1614 = vmatpush1.bf16.msra.mxu0 0
    %1615 = vmatprep.subr.bf16.mxu0 0
    %1616 = vmatpush1.bf16.msra.mxu0 0
    %1617 = vmatprep.subr.bf16.mxu0 0
    %1618 = vmatpush1.bf16.msra.mxu0 0
    %1619 = vmatprep.subr.bf16.mxu0 0
    %1620 = vmatpush1.bf16.msra.mxu0 0
    %1621 = vmatprep.subr.bf16.mxu0 0
    %1622 = vmatpush1.bf16.msra.mxu0 0
    %1623 = vmatprep.subr.bf16.mxu0 0
    %1624 = vmatpush1.bf16.msra.mxu0 0
    %1625 = vmatprep.subr.bf16.mxu0 %v1446
    %1626 = vmatpush1.bf16.msra.mxu0 %v1445
    %1627 = vmatprep.subr.bf16.mxu0 %v1430
    %1628 = vmatpush1.bf16.msra.mxu0 %v1429
    %1629 = vmatprep.subr.bf16.mxu0 0
    %1630 = vmatpush2.bf16.msra.mxu0 0
    %1631 = vmatprep.subr.bf16.mxu0 0
    %1632 = vmatpush2.bf16.msra.mxu0 0
    %1633 = vmatprep.subr.bf16.mxu0 0
    %1634 = vmatpush2.bf16.msra.mxu0 0
    %1635 = vmatprep.subr.bf16.mxu0 0
    %1636 = vmatpush2.bf16.msra.mxu0 0
    %1637 = vmatprep.subr.bf16.mxu0 0
    %1638 = vmatpush2.bf16.msra.mxu0 0
    %1639 = vmatprep.subr.bf16.mxu0 0
    %1640 = vmatpush2.bf16.msra.mxu0 0
    %1641 = vmatprep.subr.bf16.mxu0 0
    %1642 = vmatpush2.bf16.msra.mxu0 0
    %1643 = vmatprep.subr.bf16.mxu0 0
    %1644 = vmatpush2.bf16.msra.mxu0 0
    %1645 = vmatprep.mubr.bf16.mxu0 0
    %1646 = vmatmul.mubr.bf16.gmra.mxu0 %v1488
    %v1647 = vpop.f32.mrf.mxu0
    %v1648 = vadd.f32 %v1274, %v1647
    %v1649 = vpop.f32.mrf.mxu0
    %v1650 = vadd.f32 %v1278, %v1649
    %v1651 = vpop.f32.mrf.mxu0
    %v1652 = vpop.f32.mrf.mxu0
    %1653 = vdwg.mxu0
    %1654 = vmatprep.subr.bf16.mxu0 0
    %1655 = vmatpush1.bf16.msra.mxu0 0
    %1656 = vmatprep.subr.bf16.mxu0 0
    %1657 = vmatpush1.bf16.msra.mxu0 0
    %1658 = vmatprep.subr.bf16.mxu0 0
    %1659 = vmatpush1.bf16.msra.mxu0 0
    %1660 = vmatprep.subr.bf16.mxu0 0
    %1661 = vmatpush1.bf16.msra.mxu0 0
    %1662 = vmatprep.subr.bf16.mxu0 0
    %1663 = vmatpush1.bf16.msra.mxu0 0
    %1664 = vmatprep.subr.bf16.mxu0 0
    %1665 = vmatpush1.bf16.msra.mxu0 0
    %1666 = vmatprep.subr.bf16.mxu0 %v1448
    %1667 = vmatpush1.bf16.msra.mxu0 %v1447
    %1668 = vmatprep.subr.bf16.mxu0 %v1432
    %1669 = vmatpush1.bf16.msra.mxu0 %v1431
    %1670 = vmatprep.subr.bf16.mxu0 0
    %1671 = vmatpush2.bf16.msra.mxu0 0
    %1672 = vmatprep.subr.bf16.mxu0 0
    %1673 = vmatpush2.bf16.msra.mxu0 0
    %1674 = vmatprep.subr.bf16.mxu0 0
    %1675 = vmatpush2.bf16.msra.mxu0 0
    %1676 = vmatprep.subr.bf16.mxu0 0
    %1677 = vmatpush2.bf16.msra.mxu0 0
    %1678 = vmatprep.subr.bf16.mxu0 0
    %1679 = vmatpush2.bf16.msra.mxu0 0
    %1680 = vmatprep.subr.bf16.mxu0 0
    %1681 = vmatpush2.bf16.msra.mxu0 0
    %1682 = vmatprep.subr.bf16.mxu0 0
    %1683 = vmatpush2.bf16.msra.mxu0 0
    %1684 = vmatprep.subr.bf16.mxu0 0
    %1685 = vmatpush2.bf16.msra.mxu0 0
    %1686 = vmatprep.mubr.bf16.mxu0 0
    %1687 = vmatmul.mubr.bf16.gmra.mxu0 %v1488
    %v1688 = vpop.f32.mrf.mxu0
    %v1689 = vadd.f32 %v1282, %v1688
    %v1690 = vpop.f32.mrf.mxu0
    %v1691 = vadd.f32 %v1286, %v1690
    %v1692 = vpop.f32.mrf.mxu0
    %v1693 = vpop.f32.mrf.mxu0
    %1694 = vdwg.mxu0
    %1695 = vmatprep.subr.bf16.mxu0 0
    %1696 = vmatpush1.bf16.msra.mxu0 0
    %1697 = vmatprep.subr.bf16.mxu0 0
    %1698 = vmatpush1.bf16.msra.mxu0 0
    %1699 = vmatprep.subr.bf16.mxu0 0
    %1700 = vmatpush1.bf16.msra.mxu0 0
    %1701 = vmatprep.subr.bf16.mxu0 0
    %1702 = vmatpush1.bf16.msra.mxu0 0
    %1703 = vmatprep.subr.bf16.mxu0 0
    %1704 = vmatpush1.bf16.msra.mxu0 0
    %1705 = vmatprep.subr.bf16.mxu0 0
    %1706 = vmatpush1.bf16.msra.mxu0 0
    %1707 = vmatprep.subr.bf16.mxu0 %v1450
    %1708 = vmatpush1.bf16.msra.mxu0 %v1449
    %1709 = vmatprep.subr.bf16.mxu0 %v1434
    %1710 = vmatpush1.bf16.msra.mxu0 %v1433
    %1711 = vmatprep.subr.bf16.mxu0 0
    %1712 = vmatpush2.bf16.msra.mxu0 0
    %1713 = vmatprep.subr.bf16.mxu0 0
    %1714 = vmatpush2.bf16.msra.mxu0 0
    %1715 = vmatprep.subr.bf16.mxu0 0
    %1716 = vmatpush2.bf16.msra.mxu0 0
    %1717 = vmatprep.subr.bf16.mxu0 0
    %1718 = vmatpush2.bf16.msra.mxu0 0
    %1719 = vmatprep.subr.bf16.mxu0 0
    %1720 = vmatpush2.bf16.msra.mxu0 0
    %1721 = vmatprep.subr.bf16.mxu0 0
    %1722 = vmatpush2.bf16.msra.mxu0 0
    %1723 = vmatprep.subr.bf16.mxu0 0
    %1724 = vmatpush2.bf16.msra.mxu0 0
    %1725 = vmatprep.subr.bf16.mxu0 0
    %1726 = vmatpush2.bf16.msra.mxu0 0
    %1727 = vmatprep.mubr.bf16.mxu0 0
    %1728 = vmatmul.mubr.bf16.gmra.mxu0 %v1488
    %v1729 = vpop.f32.mrf.mxu0
    %v1730 = vadd.f32 %v1290, %v1729
    %v1731 = vpop.f32.mrf.mxu0
    %v1732 = vadd.f32 %v1294, %v1731
    %v1733 = vpop.f32.mrf.mxu0
    %v1734 = vpop.f32.mrf.mxu0
    %1735 = vdwg.mxu0
    %1736 = vmatprep.subr.bf16.mxu0 0
    %1737 = vmatpush1.bf16.msra.mxu0 0
    %1738 = vmatprep.subr.bf16.mxu0 0
    %1739 = vmatpush1.bf16.msra.mxu0 0
    %1740 = vmatprep.subr.bf16.mxu0 0
    %1741 = vmatpush1.bf16.msra.mxu0 0
    %1742 = vmatprep.subr.bf16.mxu0 0
    %1743 = vmatpush1.bf16.msra.mxu0 0
    %1744 = vmatprep.subr.bf16.mxu0 0
    %1745 = vmatpush1.bf16.msra.mxu0 0
    %1746 = vmatprep.subr.bf16.mxu0 0
    %1747 = vmatpush1.bf16.msra.mxu0 0
    %1748 = vmatprep.subr.bf16.mxu0 %v1452
    %1749 = vmatpush1.bf16.msra.mxu0 %v1451
    %1750 = vmatprep.subr.bf16.mxu0 %v1436
    %1751 = vmatpush1.bf16.msra.mxu0 %v1435
    %1752 = vmatprep.subr.bf16.mxu0 0
    %1753 = vmatpush2.bf16.msra.mxu0 0
    %1754 = vmatprep.subr.bf16.mxu0 0
    %1755 = vmatpush2.bf16.msra.mxu0 0
    %1756 = vmatprep.subr.bf16.mxu0 0
    %1757 = vmatpush2.bf16.msra.mxu0 0
    %1758 = vmatprep.subr.bf16.mxu0 0
    %1759 = vmatpush2.bf16.msra.mxu0 0
    %1760 = vmatprep.subr.bf16.mxu0 0
    %1761 = vmatpush2.bf16.msra.mxu0 0
    %1762 = vmatprep.subr.bf16.mxu0 0
    %1763 = vmatpush2.bf16.msra.mxu0 0
    %1764 = vmatprep.subr.bf16.mxu0 0
    %1765 = vmatpush2.bf16.msra.mxu0 0
    %1766 = vmatprep.subr.bf16.mxu0 0
    %1767 = vmatpush2.bf16.msra.mxu0 0
    %1768 = vmatprep.mubr.bf16.mxu0 0
    %1769 = vmatmul.mubr.bf16.gmra.mxu0 %v1488
    %v1770 = vpop.f32.mrf.mxu0
    %v1771 = vadd.f32 %v1298, %v1770
    %v1772 = vpop.f32.mrf.mxu0
    %v1773 = vadd.f32 %v1302, %v1772
    %v1774 = vpop.f32.mrf.mxu0
    %v1775 = vpop.f32.mrf.mxu0
    %1776 = vdwg.mxu0
    %1777 = vmatprep.subr.bf16.mxu0 0
    %1778 = vmatpush1.bf16.msra.mxu0 0
    %1779 = vmatprep.subr.bf16.mxu0 0
    %1780 = vmatpush1.bf16.msra.mxu0 0
    %1781 = vmatprep.subr.bf16.mxu0 0
    %1782 = vmatpush1.bf16.msra.mxu0 0
    %1783 = vmatprep.subr.bf16.mxu0 0
    %1784 = vmatpush1.bf16.msra.mxu0 0
    %1785 = vmatprep.subr.bf16.mxu0 0
    %1786 = vmatpush1.bf16.msra.mxu0 0
    %1787 = vmatprep.subr.bf16.mxu0 0
    %1788 = vmatpush1.bf16.msra.mxu0 0
    %1789 = vmatprep.subr.bf16.mxu0 %v1454
    %1790 = vmatpush1.bf16.msra.mxu0 %v1453
    %1791 = vmatprep.subr.bf16.mxu0 %v1438
    %1792 = vmatpush1.bf16.msra.mxu0 %v1437
    %1793 = vmatprep.subr.bf16.mxu0 0
    %1794 = vmatpush2.bf16.msra.mxu0 0
    %1795 = vmatprep.subr.bf16.mxu0 0
    %1796 = vmatpush2.bf16.msra.mxu0 0
    %1797 = vmatprep.subr.bf16.mxu0 0
    %1798 = vmatpush2.bf16.msra.mxu0 0
    %1799 = vmatprep.subr.bf16.mxu0 0
    %1800 = vmatpush2.bf16.msra.mxu0 0
    %1801 = vmatprep.subr.bf16.mxu0 0
    %1802 = vmatpush2.bf16.msra.mxu0 0
    %1803 = vmatprep.subr.bf16.mxu0 0
    %1804 = vmatpush2.bf16.msra.mxu0 0
    %1805 = vmatprep.subr.bf16.mxu0 0
    %1806 = vmatpush2.bf16.msra.mxu0 0
    %1807 = vmatprep.subr.bf16.mxu0 0
    %1808 = vmatpush2.bf16.msra.mxu0 0
    %1809 = vmatprep.mubr.bf16.mxu0 0
    %1810 = vmatmul.mubr.bf16.gmra.mxu0 %v1488
    %v1811 = vpop.f32.mrf.mxu0
    %v1812 = vadd.f32 %v1306, %v1811
    %v1813 = vpop.f32.mrf.mxu0
    %v1814 = vadd.f32 %v1310, %v1813
    %v1815 = vpop.f32.mrf.mxu0
    %v1816 = vpop.f32.mrf.mxu0
    %1817 = vdwg.mxu0
    %v1818 = vmax.f32 %v1525, 0.0
    %v1819 = vmax.f32 %v1527, 0.0
    %v1820 = vmax.f32 %v1566, 0.0
    %v1821 = vmax.f32 %v1568, 0.0
    %v1822 = vmax.f32 %v1607, 0.0
    %v1823 = vmax.f32 %v1609, 0.0
    %v1824 = vmax.f32 %v1648, 0.0
    %v1825 = vmax.f32 %v1650, 0.0
    %v1826 = vmax.f32 %v1689, 0.0
    %v1827 = vmax.f32 %v1691, 0.0
    %v1828 = vmax.f32 %v1730, 0.0
    %v1829 = vmax.f32 %v1732, 0.0
    %v1830 = vmax.f32 %v1771, 0.0
    %v1831 = vmax.f32 %v1773, 0.0
    %v1832 = vmax.f32 %v1812, 0.0
    %v1833 = vmax.f32 %v1814, 0.0
    %v1834 = vpack.c.bf16 %v1818, %v1818
    %v1835 = vpack.c.bf16 %v1819, %v1819
    %v1836 = vpack.c.bf16 %v1820, %v1820
    %v1837 = vpack.c.bf16 %v1821, %v1821
    %v1838 = vpack.c.bf16 %v1822, %v1822
    %v1839 = vpack.c.bf16 %v1823, %v1823
    %v1840 = vpack.c.bf16 %v1824, %v1824
    %v1841 = vpack.c.bf16 %v1825, %v1825
    %v1842 = vpack.c.bf16 %v1826, %v1826
    %v1843 = vpack.c.bf16 %v1827, %v1827
    %v1844 = vpack.c.bf16 %v1828, %v1828
    %v1845 = vpack.c.bf16 %v1829, %v1829
    %v1846 = vpack.c.bf16 %v1830, %v1830
    %v1847 = vpack.c.bf16 %v1831, %v1831
    %v1848 = vpack.c.bf16 %v1832, %v1832
    %v1849 = vpack.c.bf16 %v1833, %v1833
    %v1850 = vld [vmem:[#allocation8] sm:$0xff]
    %v1851 = vld [vmem:[#allocation8 + $0x8] sm:$0xff]
    %v1852 = vld [vmem:[#allocation8 + $0x10] sm:$0xff]
    %v1853 = vld [vmem:[#allocation8 + $0x18] sm:$0xff]
    %v1854 = vld [vmem:[#allocation8 + $0x20] sm:$0xff]
    %v1855 = vld [vmem:[#allocation8 + $0x28] sm:$0xff]
    %v1856 = vld [vmem:[#allocation8 + $0x30] sm:$0xff]
    %v1857 = vld [vmem:[#allocation8 + $0x38] sm:$0xff]
    %v1858 = vld [vmem:[#allocation8 + $0x40] sm:$0xff]
    %v1859 = vld [vmem:[#allocation8 + $0x48] sm:$0xff]
    %v1860 = vld [vmem:[#allocation8 + $0x50] sm:$0xff]
    %v1861 = vld [vmem:[#allocation8 + $0x58] sm:$0xff]
    %v1862 = vld [vmem:[#allocation8 + $0x60] sm:$0xff]
    %v1863 = vld [vmem:[#allocation8 + $0x68] sm:$0xff]
    %v1864 = vld [vmem:[#allocation8 + $0x70] sm:$0xff]
    %v1865 = vld [vmem:[#allocation8 + $0x78] sm:$0xff]
    %v1866 = vld [vmem:[#allocation8 + $0x80] sm:$0xff]
    %v1867 = vld [vmem:[#allocation8 + $0x88] sm:$0xff]
    %v1868 = vld [vmem:[#allocation8 + $0x90] sm:$0xff]
    %v1869 = vld [vmem:[#allocation8 + $0x98] sm:$0xff]
    %v1870 = vld [vmem:[#allocation8 + $0xa0] sm:$0xff]
    %v1871 = vld [vmem:[#allocation8 + $0xa8] sm:$0xff]
    %v1872 = vld [vmem:[#allocation8 + $0xb0] sm:$0xff]
    %v1873 = vld [vmem:[#allocation8 + $0xb8] sm:$0xff]
    %v1874 = vld [vmem:[#allocation8 + $0xc0] sm:$0xff]
    %v1875 = vld [vmem:[#allocation8 + $0xc8] sm:$0xff]
    %v1876 = vld [vmem:[#allocation8 + $0xd0] sm:$0xff]
    %v1877 = vld [vmem:[#allocation8 + $0xd8] sm:$0xff]
    %v1878 = vld [vmem:[#allocation8 + $0xe0] sm:$0xff]
    %v1879 = vld [vmem:[#allocation8 + $0xe8] sm:$0xff]
    %v1880 = vld [vmem:[#allocation8 + $0xf0] sm:$0xff]
    %v1881 = vld [vmem:[#allocation8 + $0xf8] sm:$0xff]
    %v1882 = vlaneseq
    %v1883 = vshrl.u32 %v1882, 7
    %v1884 = vsub.s32 3, %v1883
    %v1885 = vrot.slane %v724, %v1884
    %v1918 = vunpack.c.l.b16 %v1850
    %v1919 = vunpack.c.h.b16 %v1850
    %v1920 = vunpack.c.l.b16 %v1851
    %v1921 = vunpack.c.h.b16 %v1851
    %v1922 = vunpack.c.l.b16 %v1852
    %v1923 = vunpack.c.h.b16 %v1852
    %v1924 = vunpack.c.l.b16 %v1853
    %v1925 = vunpack.c.h.b16 %v1853
    %v1926 = vunpack.c.l.b16 %v1854
    %v1927 = vunpack.c.h.b16 %v1854
    %v1928 = vunpack.c.l.b16 %v1855
    %v1929 = vunpack.c.h.b16 %v1855
    %v1930 = vunpack.c.l.b16 %v1856
    %v1931 = vunpack.c.h.b16 %v1856
    %v1932 = vunpack.c.l.b16 %v1857
    %v1933 = vunpack.c.h.b16 %v1857
    %v1934 = vunpack.c.l.b16 %v1858
    %v1935 = vunpack.c.h.b16 %v1858
    %v1936 = vunpack.c.l.b16 %v1859
    %v1937 = vunpack.c.h.b16 %v1859
    %v1938 = vunpack.c.l.b16 %v1860
    %v1939 = vunpack.c.h.b16 %v1860
    %v1940 = vunpack.c.l.b16 %v1861
    %v1941 = vunpack.c.h.b16 %v1861
    %v1942 = vunpack.c.l.b16 %v1862
    %v1943 = vunpack.c.h.b16 %v1862
    %v1944 = vunpack.c.l.b16 %v1863
    %v1945 = vunpack.c.h.b16 %v1863
    %v1946 = vunpack.c.l.b16 %v1864
    %v1947 = vunpack.c.h.b16 %v1864
    %v1948 = vunpack.c.l.b16 %v1865
    %v1949 = vunpack.c.h.b16 %v1865
    %v1950 = vunpack.c.l.b16 %v1866
    %v1951 = vunpack.c.h.b16 %v1866
    %v1952 = vunpack.c.l.b16 %v1867
    %v1953 = vunpack.c.h.b16 %v1867
    %v1954 = vunpack.c.l.b16 %v1868
    %v1955 = vunpack.c.h.b16 %v1868
    %v1956 = vunpack.c.l.b16 %v1869
    %v1957 = vunpack.c.h.b16 %v1869
    %v1958 = vunpack.c.l.b16 %v1870
    %v1959 = vunpack.c.h.b16 %v1870
    %v1960 = vunpack.c.l.b16 %v1871
    %v1961 = vunpack.c.h.b16 %v1871
    %v1962 = vunpack.c.l.b16 %v1872
    %v1963 = vunpack.c.h.b16 %v1872
    %v1964 = vunpack.c.l.b16 %v1873
    %v1965 = vunpack.c.h.b16 %v1873
    %v1966 = vunpack.c.l.b16 %v1874
    %v1967 = vunpack.c.h.b16 %v1874
    %v1968 = vunpack.c.l.b16 %v1875
    %v1969 = vunpack.c.h.b16 %v1875
    %v1970 = vunpack.c.l.b16 %v1876
    %v1971 = vunpack.c.h.b16 %v1876
    %v1972 = vunpack.c.l.b16 %v1877
    %v1973 = vunpack.c.h.b16 %v1877
    %v1974 = vunpack.c.l.b16 %v1878
    %v1975 = vunpack.c.h.b16 %v1878
    %v1976 = vunpack.c.l.b16 %v1879
    %v1977 = vunpack.c.h.b16 %v1879
    %v1978 = vunpack.c.l.b16 %v1880
    %v1979 = vunpack.c.h.b16 %v1880
    %v1980 = vunpack.c.l.b16 %v1881
    %v1981 = vunpack.c.h.b16 %v1881
    %v1982 = vpack.c.b16 %v1934, %v1918
    %v1983 = vpack.c.b16 %v1935, %v1919
    %v1984 = vpack.c.b16 %v1936, %v1920
    %v1985 = vpack.c.b16 %v1937, %v1921
    %v1986 = vpack.c.b16 %v1938, %v1922
    %v1987 = vpack.c.b16 %v1939, %v1923
    %v1988 = vpack.c.b16 %v1940, %v1924
    %v1989 = vpack.c.b16 %v1941, %v1925
    %v1990 = vpack.c.b16 %v1942, %v1926
    %v1991 = vpack.c.b16 %v1943, %v1927
    %v1992 = vpack.c.b16 %v1944, %v1928
    %v1993 = vpack.c.b16 %v1945, %v1929
    %v1994 = vpack.c.b16 %v1946, %v1930
    %v1995 = vpack.c.b16 %v1947, %v1931
    %v1996 = vpack.c.b16 %v1948, %v1932
    %v1997 = vpack.c.b16 %v1949, %v1933
    %v1998 = vpack.c.b16 %v1966, %v1950
    %v1999 = vpack.c.b16 %v1967, %v1951
    %v2000 = vpack.c.b16 %v1968, %v1952
    %v2001 = vpack.c.b16 %v1969, %v1953
    %v2002 = vpack.c.b16 %v1970, %v1954
    %v2003 = vpack.c.b16 %v1971, %v1955
    %v2004 = vpack.c.b16 %v1972, %v1956
    %v2005 = vpack.c.b16 %v1973, %v1957
    %v2006 = vpack.c.b16 %v1974, %v1958
    %v2007 = vpack.c.b16 %v1975, %v1959
    %v2008 = vpack.c.b16 %v1976, %v1960
    %v2009 = vpack.c.b16 %v1977, %v1961
    %v2010 = vpack.c.b16 %v1978, %v1962
    %v2011 = vpack.c.b16 %v1979, %v1963
    %v2012 = vpack.c.b16 %v1980, %v1964
    %v2013 = vpack.c.b16 %v1981, %v1965
    %2046 = vmatprep.subr.bf16.mxu0 0
    %2047 = vmatpush1.bf16.xpose.msra.mxu0 0
    %2048 = vmatprep.subr.bf16.mxu0 0
    %2049 = vmatpush1.bf16.xpose.msra.mxu0 0
    %2050 = vmatprep.subr.bf16.mxu0 0
    %2051 = vmatpush1.bf16.xpose.msra.mxu0 0
    %2052 = vmatprep.subr.bf16.mxu0 0
    %2053 = vmatpush1.bf16.xpose.msra.mxu0 0
    %2054 = vmatprep.subr.bf16.mxu0 0
    %2055 = vmatpush1.bf16.xpose.msra.mxu0 0
    %2056 = vmatprep.subr.bf16.mxu0 0
    %2057 = vmatpush1.bf16.xpose.msra.mxu0 0
    %2058 = vmatprep.subr.bf16.mxu0 %v1999
    %2059 = vmatpush1.bf16.xpose.msra.mxu0 %v1998
    %2060 = vmatprep.subr.bf16.mxu0 %v1983
    %2061 = vmatpush1.bf16.xpose.msra.mxu0 %v1982
    %2062 = vmatprep.subr.bf16.mxu0 0
    %2063 = vmatpush2.bf16.xpose.msra.mxu0 0
    %2064 = vmatprep.subr.bf16.mxu0 0
    %2065 = vmatpush2.bf16.xpose.msra.mxu0 0
    %2066 = vmatprep.subr.bf16.mxu0 0
    %2067 = vmatpush2.bf16.xpose.msra.mxu0 0
    %2068 = vmatprep.subr.bf16.mxu0 0
    %2069 = vmatpush2.bf16.xpose.msra.mxu0 0
    %2070 = vmatprep.subr.bf16.mxu0 0
    %2071 = vmatpush2.bf16.xpose.msra.mxu0 0
    %2072 = vmatprep.subr.bf16.mxu0 0
    %2073 = vmatpush2.bf16.xpose.msra.mxu0 0
    %2074 = vmatprep.subr.bf16.mxu0 0
    %2075 = vmatpush2.bf16.xpose.msra.mxu0 0
    %2076 = vmatprep.subr.bf16.mxu0 0
    %2077 = vmatpush2.bf16.xpose.msra.mxu0 0
    %2078 = vmatprep.mubr.bf16.mxu0 %v1835
    %2079 = vmatmul.mubr.bf16.gmra.mxu0 %v1834
    %v2080 = vpop.f32.mrf.mxu0
    %v2081 = vadd.f32 %v1885, %v2080
    %v2082 = vpop.f32.mrf.mxu0
    %v2083 = vpop.f32.mrf.mxu0
    %v2084 = vpop.f32.mrf.mxu0
    %2085 = vdwg.mxu0
    %2086 = vmatprep.subr.bf16.mxu0 0
    %2087 = vmatpush1.bf16.xpose.msra.mxu0 0
    %2088 = vmatprep.subr.bf16.mxu0 0
    %2089 = vmatpush1.bf16.xpose.msra.mxu0 0
    %2090 = vmatprep.subr.bf16.mxu0 0
    %2091 = vmatpush1.bf16.xpose.msra.mxu0 0
    %2092 = vmatprep.subr.bf16.mxu0 0
    %2093 = vmatpush1.bf16.xpose.msra.mxu0 0
    %2094 = vmatprep.subr.bf16.mxu0 0
    %2095 = vmatpush1.bf16.xpose.msra.mxu0 0
    %2096 = vmatprep.subr.bf16.mxu0 0
    %2097 = vmatpush1.bf16.xpose.msra.mxu0 0
    %2098 = vmatprep.subr.bf16.mxu0 %v2001
    %2099 = vmatpush1.bf16.xpose.msra.mxu0 %v2000
    %2100 = vmatprep.subr.bf16.mxu0 %v1985
    %2101 = vmatpush1.bf16.xpose.msra.mxu0 %v1984
    %2102 = vmatprep.subr.bf16.mxu0 0
    %2103 = vmatpush2.bf16.xpose.msra.mxu0 0
    %2104 = vmatprep.subr.bf16.mxu0 0
    %2105 = vmatpush2.bf16.xpose.msra.mxu0 0
    %2106 = vmatprep.subr.bf16.mxu0 0
    %2107 = vmatpush2.bf16.xpose.msra.mxu0 0
    %2108 = vmatprep.subr.bf16.mxu0 0
    %2109 = vmatpush2.bf16.xpose.msra.mxu0 0
    %2110 = vmatprep.subr.bf16.mxu0 0
    %2111 = vmatpush2.bf16.xpose.msra.mxu0 0
    %2112 = vmatprep.subr.bf16.mxu0 0
    %2113 = vmatpush2.bf16.xpose.msra.mxu0 0
    %2114 = vmatprep.subr.bf16.mxu0 0
    %2115 = vmatpush2.bf16.xpose.msra.mxu0 0
    %2116 = vmatprep.subr.bf16.mxu0 0
    %2117 = vmatpush2.bf16.xpose.msra.mxu0 0
    %2118 = vmatprep.mubr.bf16.mxu0 %v1837
    %2119 = vmatmul.mubr.bf16.gmra.mxu0 %v1836
    %v2120 = vpop.f32.mrf.mxu0
    %v2121 = vadd.f32 %v2081, %v2120
    %v2122 = vpop.f32.mrf.mxu0
    %v2123 = vpop.f32.mrf.mxu0
    %v2124 = vpop.f32.mrf.mxu0
    %2125 = vdwg.mxu0
    %2126 = vmatprep.subr.bf16.mxu0 0
    %2127 = vmatpush1.bf16.xpose.msra.mxu0 0
    %2128 = vmatprep.subr.bf16.mxu0 0
    %2129 = vmatpush1.bf16.xpose.msra.mxu0 0
    %2130 = vmatprep.subr.bf16.mxu0 0
    %2131 = vmatpush1.bf16.xpose.msra.mxu0 0
    %2132 = vmatprep.subr.bf16.mxu0 0
    %2133 = vmatpush1.bf16.xpose.msra.mxu0 0
    %2134 = vmatprep.subr.bf16.mxu0 0
    %2135 = vmatpush1.bf16.xpose.msra.mxu0 0
    %2136 = vmatprep.subr.bf16.mxu0 0
    %2137 = vmatpush1.bf16.xpose.msra.mxu0 0
    %2138 = vmatprep.subr.bf16.mxu0 %v2003
    %2139 = vmatpush1.bf16.xpose.msra.mxu0 %v2002
    %2140 = vmatprep.subr.bf16.mxu0 %v1987
    %2141 = vmatpush1.bf16.xpose.msra.mxu0 %v1986
    %2142 = vmatprep.subr.bf16.mxu0 0
    %2143 = vmatpush2.bf16.xpose.msra.mxu0 0
    %2144 = vmatprep.subr.bf16.mxu0 0
    %2145 = vmatpush2.bf16.xpose.msra.mxu0 0
    %2146 = vmatprep.subr.bf16.mxu0 0
    %2147 = vmatpush2.bf16.xpose.msra.mxu0 0
    %2148 = vmatprep.subr.bf16.mxu0 0
    %2149 = vmatpush2.bf16.xpose.msra.mxu0 0
    %2150 = vmatprep.subr.bf16.mxu0 0
    %2151 = vmatpush2.bf16.xpose.msra.mxu0 0
    %2152 = vmatprep.subr.bf16.mxu0 0
    %2153 = vmatpush2.bf16.xpose.msra.mxu0 0
    %2154 = vmatprep.subr.bf16.mxu0 0
    %2155 = vmatpush2.bf16.xpose.msra.mxu0 0
    %2156 = vmatprep.subr.bf16.mxu0 0
    %2157 = vmatpush2.bf16.xpose.msra.mxu0 0
    %2158 = vmatprep.mubr.bf16.mxu0 %v1839
    %2159 = vmatmul.mubr.bf16.gmra.mxu0 %v1838
    %v2160 = vpop.f32.mrf.mxu0
    %v2161 = vadd.f32 %v2121, %v2160
    %v2162 = vpop.f32.mrf.mxu0
    %v2163 = vpop.f32.mrf.mxu0
    %v2164 = vpop.f32.mrf.mxu0
    %2165 = vdwg.mxu0
    %2166 = vmatprep.subr.bf16.mxu0 0
    %2167 = vmatpush1.bf16.xpose.msra.mxu0 0
    %2168 = vmatprep.subr.bf16.mxu0 0
    %2169 = vmatpush1.bf16.xpose.msra.mxu0 0
    %2170 = vmatprep.subr.bf16.mxu0 0
    %2171 = vmatpush1.bf16.xpose.msra.mxu0 0
    %2172 = vmatprep.subr.bf16.mxu0 0
    %2173 = vmatpush1.bf16.xpose.msra.mxu0 0
    %2174 = vmatprep.subr.bf16.mxu0 0
    %2175 = vmatpush1.bf16.xpose.msra.mxu0 0
    %2176 = vmatprep.subr.bf16.mxu0 0
    %2177 = vmatpush1.bf16.xpose.msra.mxu0 0
    %2178 = vmatprep.subr.bf16.mxu0 %v2005
    %2179 = vmatpush1.bf16.xpose.msra.mxu0 %v2004
    %2180 = vmatprep.subr.bf16.mxu0 %v1989
    %2181 = vmatpush1.bf16.xpose.msra.mxu0 %v1988
    %2182 = vmatprep.subr.bf16.mxu0 0
    %2183 = vmatpush2.bf16.xpose.msra.mxu0 0
    %2184 = vmatprep.subr.bf16.mxu0 0
    %2185 = vmatpush2.bf16.xpose.msra.mxu0 0
    %2186 = vmatprep.subr.bf16.mxu0 0
    %2187 = vmatpush2.bf16.xpose.msra.mxu0 0
    %2188 = vmatprep.subr.bf16.mxu0 0
    %2189 = vmatpush2.bf16.xpose.msra.mxu0 0
    %2190 = vmatprep.subr.bf16.mxu0 0
    %2191 = vmatpush2.bf16.xpose.msra.mxu0 0
    %2192 = vmatprep.subr.bf16.mxu0 0
    %2193 = vmatpush2.bf16.xpose.msra.mxu0 0
    %2194 = vmatprep.subr.bf16.mxu0 0
    %2195 = vmatpush2.bf16.xpose.msra.mxu0 0
    %2196 = vmatprep.subr.bf16.mxu0 0
    %2197 = vmatpush2.bf16.xpose.msra.mxu0 0
    %2198 = vmatprep.mubr.bf16.mxu0 %v1841
    %2199 = vmatmul.mubr.bf16.gmra.mxu0 %v1840
    %v2200 = vpop.f32.mrf.mxu0
    %v2201 = vadd.f32 %v2161, %v2200
    %v2202 = vpop.f32.mrf.mxu0
    %v2203 = vpop.f32.mrf.mxu0
    %v2204 = vpop.f32.mrf.mxu0
    %2205 = vdwg.mxu0
    %2206 = vmatprep.subr.bf16.mxu0 0
    %2207 = vmatpush1.bf16.xpose.msra.mxu0 0
    %2208 = vmatprep.subr.bf16.mxu0 0
    %2209 = vmatpush1.bf16.xpose.msra.mxu0 0
    %2210 = vmatprep.subr.bf16.mxu0 0
    %2211 = vmatpush1.bf16.xpose.msra.mxu0 0
    %2212 = vmatprep.subr.bf16.mxu0 0
    %2213 = vmatpush1.bf16.xpose.msra.mxu0 0
    %2214 = vmatprep.subr.bf16.mxu0 0
    %2215 = vmatpush1.bf16.xpose.msra.mxu0 0
    %2216 = vmatprep.subr.bf16.mxu0 0
    %2217 = vmatpush1.bf16.xpose.msra.mxu0 0
    %2218 = vmatprep.subr.bf16.mxu0 %v2007
    %2219 = vmatpush1.bf16.xpose.msra.mxu0 %v2006
    %2220 = vmatprep.subr.bf16.mxu0 %v1991
    %2221 = vmatpush1.bf16.xpose.msra.mxu0 %v1990
    %2222 = vmatprep.subr.bf16.mxu0 0
    %2223 = vmatpush2.bf16.xpose.msra.mxu0 0
    %2224 = vmatprep.subr.bf16.mxu0 0
    %2225 = vmatpush2.bf16.xpose.msra.mxu0 0
    %2226 = vmatprep.subr.bf16.mxu0 0
    %2227 = vmatpush2.bf16.xpose.msra.mxu0 0
    %2228 = vmatprep.subr.bf16.mxu0 0
    %2229 = vmatpush2.bf16.xpose.msra.mxu0 0
    %2230 = vmatprep.subr.bf16.mxu0 0
    %2231 = vmatpush2.bf16.xpose.msra.mxu0 0
    %2232 = vmatprep.subr.bf16.mxu0 0
    %2233 = vmatpush2.bf16.xpose.msra.mxu0 0
    %2234 = vmatprep.subr.bf16.mxu0 0
    %2235 = vmatpush2.bf16.xpose.msra.mxu0 0
    %2236 = vmatprep.subr.bf16.mxu0 0
    %2237 = vmatpush2.bf16.xpose.msra.mxu0 0
    %2238 = vmatprep.mubr.bf16.mxu0 %v1843
    %2239 = vmatmul.mubr.bf16.gmra.mxu0 %v1842
    %v2240 = vpop.f32.mrf.mxu0
    %v2241 = vadd.f32 %v2201, %v2240
    %v2242 = vpop.f32.mrf.mxu0
    %v2243 = vpop.f32.mrf.mxu0
    %v2244 = vpop.f32.mrf.mxu0
    %2245 = vdwg.mxu0
    %2246 = vmatprep.subr.bf16.mxu0 0
    %2247 = vmatpush1.bf16.xpose.msra.mxu0 0
    %2248 = vmatprep.subr.bf16.mxu0 0
    %2249 = vmatpush1.bf16.xpose.msra.mxu0 0
    %2250 = vmatprep.subr.bf16.mxu0 0
    %2251 = vmatpush1.bf16.xpose.msra.mxu0 0
    %2252 = vmatprep.subr.bf16.mxu0 0
    %2253 = vmatpush1.bf16.xpose.msra.mxu0 0
    %2254 = vmatprep.subr.bf16.mxu0 0
    %2255 = vmatpush1.bf16.xpose.msra.mxu0 0
    %2256 = vmatprep.subr.bf16.mxu0 0
    %2257 = vmatpush1.bf16.xpose.msra.mxu0 0
    %2258 = vmatprep.subr.bf16.mxu0 %v2009
    %2259 = vmatpush1.bf16.xpose.msra.mxu0 %v2008
    %2260 = vmatprep.subr.bf16.mxu0 %v1993
    %2261 = vmatpush1.bf16.xpose.msra.mxu0 %v1992
    %2262 = vmatprep.subr.bf16.mxu0 0
    %2263 = vmatpush2.bf16.xpose.msra.mxu0 0
    %2264 = vmatprep.subr.bf16.mxu0 0
    %2265 = vmatpush2.bf16.xpose.msra.mxu0 0
    %2266 = vmatprep.subr.bf16.mxu0 0
    %2267 = vmatpush2.bf16.xpose.msra.mxu0 0
    %2268 = vmatprep.subr.bf16.mxu0 0
    %2269 = vmatpush2.bf16.xpose.msra.mxu0 0
    %2270 = vmatprep.subr.bf16.mxu0 0
    %2271 = vmatpush2.bf16.xpose.msra.mxu0 0
    %2272 = vmatprep.subr.bf16.mxu0 0
    %2273 = vmatpush2.bf16.xpose.msra.mxu0 0
    %2274 = vmatprep.subr.bf16.mxu0 0
    %2275 = vmatpush2.bf16.xpose.msra.mxu0 0
    %2276 = vmatprep.subr.bf16.mxu0 0
    %2277 = vmatpush2.bf16.xpose.msra.mxu0 0
    %2278 = vmatprep.mubr.bf16.mxu0 %v1845
    %2279 = vmatmul.mubr.bf16.gmra.mxu0 %v1844
    %v2280 = vpop.f32.mrf.mxu0
    %v2281 = vadd.f32 %v2241, %v2280
    %v2282 = vpop.f32.mrf.mxu0
    %v2283 = vpop.f32.mrf.mxu0
    %v2284 = vpop.f32.mrf.mxu0
    %2285 = vdwg.mxu0
    %2286 = vmatprep.subr.bf16.mxu0 0
    %2287 = vmatpush1.bf16.xpose.msra.mxu0 0
    %2288 = vmatprep.subr.bf16.mxu0 0
    %2289 = vmatpush1.bf16.xpose.msra.mxu0 0
    %2290 = vmatprep.subr.bf16.mxu0 0
    %2291 = vmatpush1.bf16.xpose.msra.mxu0 0
    %2292 = vmatprep.subr.bf16.mxu0 0
    %2293 = vmatpush1.bf16.xpose.msra.mxu0 0
    %2294 = vmatprep.subr.bf16.mxu0 0
    %2295 = vmatpush1.bf16.xpose.msra.mxu0 0
    %2296 = vmatprep.subr.bf16.mxu0 0
    %2297 = vmatpush1.bf16.xpose.msra.mxu0 0
    %2298 = vmatprep.subr.bf16.mxu0 %v2011
    %2299 = vmatpush1.bf16.xpose.msra.mxu0 %v2010
    %2300 = vmatprep.subr.bf16.mxu0 %v1995
    %2301 = vmatpush1.bf16.xpose.msra.mxu0 %v1994
    %2302 = vmatprep.subr.bf16.mxu0 0
    %2303 = vmatpush2.bf16.xpose.msra.mxu0 0
    %2304 = vmatprep.subr.bf16.mxu0 0
    %2305 = vmatpush2.bf16.xpose.msra.mxu0 0
    %2306 = vmatprep.subr.bf16.mxu0 0
    %2307 = vmatpush2.bf16.xpose.msra.mxu0 0
    %2308 = vmatprep.subr.bf16.mxu0 0
    %2309 = vmatpush2.bf16.xpose.msra.mxu0 0
    %2310 = vmatprep.subr.bf16.mxu0 0
    %2311 = vmatpush2.bf16.xpose.msra.mxu0 0
    %2312 = vmatprep.subr.bf16.mxu0 0
    %2313 = vmatpush2.bf16.xpose.msra.mxu0 0
    %2314 = vmatprep.subr.bf16.mxu0 0
    %2315 = vmatpush2.bf16.xpose.msra.mxu0 0
    %2316 = vmatprep.subr.bf16.mxu0 0
    %2317 = vmatpush2.bf16.xpose.msra.mxu0 0
    %2318 = vmatprep.mubr.bf16.mxu0 %v1847
    %2319 = vmatmul.mubr.bf16.gmra.mxu0 %v1846
    %v2320 = vpop.f32.mrf.mxu0
    %v2321 = vadd.f32 %v2281, %v2320
    %v2322 = vpop.f32.mrf.mxu0
    %v2323 = vpop.f32.mrf.mxu0
    %v2324 = vpop.f32.mrf.mxu0
    %2325 = vdwg.mxu0
    %2326 = vmatprep.subr.bf16.mxu0 0
    %2327 = vmatpush1.bf16.xpose.msra.mxu0 0
    %2328 = vmatprep.subr.bf16.mxu0 0
    %2329 = vmatpush1.bf16.xpose.msra.mxu0 0
    %2330 = vmatprep.subr.bf16.mxu0 0
    %2331 = vmatpush1.bf16.xpose.msra.mxu0 0
    %2332 = vmatprep.subr.bf16.mxu0 0
    %2333 = vmatpush1.bf16.xpose.msra.mxu0 0
    %2334 = vmatprep.subr.bf16.mxu0 0
    %2335 = vmatpush1.bf16.xpose.msra.mxu0 0
    %2336 = vmatprep.subr.bf16.mxu0 0
    %2337 = vmatpush1.bf16.xpose.msra.mxu0 0
    %2338 = vmatprep.subr.bf16.mxu0 %v2013
    %2339 = vmatpush1.bf16.xpose.msra.mxu0 %v2012
    %2340 = vmatprep.subr.bf16.mxu0 %v1997
    %2341 = vmatpush1.bf16.xpose.msra.mxu0 %v1996
    %2342 = vmatprep.subr.bf16.mxu0 0
    %2343 = vmatpush2.bf16.xpose.msra.mxu0 0
    %2344 = vmatprep.subr.bf16.mxu0 0
    %2345 = vmatpush2.bf16.xpose.msra.mxu0 0
    %2346 = vmatprep.subr.bf16.mxu0 0
    %2347 = vmatpush2.bf16.xpose.msra.mxu0 0
    %2348 = vmatprep.subr.bf16.mxu0 0
    %2349 = vmatpush2.bf16.xpose.msra.mxu0 0
    %2350 = vmatprep.subr.bf16.mxu0 0
    %2351 = vmatpush2.bf16.xpose.msra.mxu0 0
    %2352 = vmatprep.subr.bf16.mxu0 0
    %2353 = vmatpush2.bf16.xpose.msra.mxu0 0
    %2354 = vmatprep.subr.bf16.mxu0 0
    %2355 = vmatpush2.bf16.xpose.msra.mxu0 0
    %2356 = vmatprep.subr.bf16.mxu0 0
    %2357 = vmatpush2.bf16.xpose.msra.mxu0 0
    %2358 = vmatprep.mubr.bf16.mxu0 %v1849
    %2359 = vmatmul.mubr.bf16.gmra.mxu0 %v1848
    %v2360 = vpop.f32.mrf.mxu0
    %v2361 = vadd.f32 %v2321, %v2360
    %v2362 = vpop.f32.mrf.mxu0
    %v2363 = vpop.f32.mrf.mxu0
    %v2364 = vpop.f32.mrf.mxu0
    %2365 = vdwg.mxu0
    %v2367 = vcombine.high %v2361, %v2361
    %v2369 = vunpack.c.l.s4 1966171168
    %v2370 = vunpack.c.0.s8 %v2369
    %v2371 = vlaneseq
    %v2372 = vshrl.u32 %v2371, 7
    %v2373 = vsub.s32 %v2370, %v2372
    %v2374 = vrot.slane %v2361, %v2373
    %v2376 = vunpack.c.l.s4 1966171168
    %v2377 = vunpack.c.0.s8 %v2376
    %v2378 = vlaneseq
    %v2379 = vshrl.u32 %v2378, 7
    %v2380 = vsub.s32 %v2377, %v2379
    %v2381 = vrot.slane %v2367, %v2380
    %v2382 = vcombine.high %v2374, %v2374
    %v2383 = vcombine.high %v2381, %v2381
    %v2385 = vunpack.c.l.s4 1966171168
    %v2386 = vunpack.c.0.s8 %v2385
    %v2387 = vlaneseq
    %v2388 = vshrl.u32 %v2387, 7
    %v2389 = vsub.s32 %v2386, %v2388
    %v2390 = vrot.slane %v2374, %v2389
    %v2392 = vunpack.c.l.s4 1966171168
    %v2393 = vunpack.c.0.s8 %v2392
    %v2394 = vlaneseq
    %v2395 = vshrl.u32 %v2394, 7
    %v2396 = vsub.s32 %v2393, %v2395
    %v2397 = vrot.slane %v2381, %v2396
    %v2399 = vunpack.c.l.s4 1966171168
    %v2400 = vunpack.c.0.s8 %v2399
    %v2401 = vlaneseq
    %v2402 = vshrl.u32 %v2401, 7
    %v2403 = vsub.s32 %v2400, %v2402
    %v2404 = vrot.slane %v2382, %v2403
    %v2406 = vunpack.c.l.s4 1966171168
    %v2407 = vunpack.c.0.s8 %v2406
    %v2408 = vlaneseq
    %v2409 = vshrl.u32 %v2408, 7
    %v2410 = vsub.s32 %v2407, %v2409
    %v2411 = vrot.slane %v2383, %v2410
    %v2412 = vcombine.high %v2390, %v2390
    %v2413 = vcombine.high %v2404, %v2404
    %v2420 = vadd.f32 %v1157, %v2390
    %v2421 = vadd.f32 %v1158, %v2404
    %v2422 = vadd.f32 %v1159, %v2412
    %v2423 = vadd.f32 %v1160, %v2413
    %v2424 = vadd.f32 %v1161, %v2397
    %v2425 = vadd.f32 %v1162, %v2411
    %v2432 = vcombine.low %v2420, %v2421
    %v2433 = vcombine.low %v2422, %v2423
    %v2434 = vcombine.low %v2424, %v2425
    %v2436 = vunpack.c.l.s4 1966171168
    %v2437 = vunpack.c.0.s8 %v2436
    %v2438 = vlaneseq
    %v2439 = vshrl.u32 %v2438, 7
    %v2440 = vsub.s32 %v2437, %v2439
    %v2441 = vrot.slane %v2432, %v2440
    %v2443 = vunpack.c.l.s4 1966171168
    %v2444 = vunpack.c.0.s8 %v2443
    %v2445 = vlaneseq
    %v2446 = vshrl.u32 %v2445, 7
    %v2447 = vsub.s32 %v2444, %v2446
    %v2448 = vrot.slane %v2433, %v2447
    %v2450 = vunpack.c.l.s4 1966171168
    %v2451 = vunpack.c.0.s8 %v2450
    %v2452 = vlaneseq
    %v2453 = vshrl.u32 %v2452, 7
    %v2454 = vsub.s32 %v2451, %v2453
    %v2455 = vrot.slane %v2434, %v2454
    %v2456 = vcombine.low %v2441, %v2448
    %v2458 = vunpack.c.l.s4 1966171168
    %v2459 = vunpack.c.0.s8 %v2458
    %v2460 = vlaneseq
    %v2461 = vshrl.u32 %v2460, 7
    %v2462 = vsub.s32 %v2459, %v2461
    %v2463 = vrot.slane %v2456, %v2462
    %v2465 = vunpack.c.l.s4 1966171168
    %v2466 = vunpack.c.0.s8 %v2465
    %v2467 = vlaneseq
    %v2468 = vshrl.u32 %v2467, 7
    %v2469 = vsub.s32 %v2466, %v2468
    %v2470 = vrot.slane %v2455, %v2469
    %v2471 = vcombine.low %v2463, %v2470
    %v2473 = vsel %vm896, %v2471, 0.0
    %2474 = vadd.xlane.f32.xlu0 %v2473
    %v2475 = vpop.xlane.xlu0 %2474
    %v2476 = vmul.f32 %v2475, %v900
    %v2478 = vlaneseq
    %v2479 = vshrl.u32 %v2478, 7
    %v2480 = vsub.s32 0, %v2479
    %v2481 = vrot.slane %v2476, %v2480
    %v2482 = vlaneseq
    %v2483 = vshrl.u32 %v2482, 7
    %v2484 = vsub.s32 1, %v2483
    %v2485 = vrot.slane %v2476, %v2484
    %v2486 = vlaneseq
    %v2487 = vshrl.u32 %v2486, 7
    %v2488 = vsub.s32 2, %v2487
    %v2489 = vrot.slane %v2476, %v2488
    %v2490 = vlaneseq
    %v2491 = vshrl.u32 %v2490, 7
    %v2492 = vsub.s32 3, %v2491
    %v2493 = vrot.slane %v2476, %v2492
    %v2494 = vlaneseq
    %v2495 = vshrl.u32 %v2494, 7
    %v2496 = vsub.s32 4, %v2495
    %v2497 = vrot.slane %v2476, %v2496
    %v2498 = vlaneseq
    %v2499 = vshrl.u32 %v2498, 7
    %v2500 = vsub.s32 5, %v2499
    %v2501 = vrot.slane %v2476, %v2500
    %v2508 = vsub.f32 %v2420, %v2481
    %v2509 = vsub.f32 %v2421, %v2485
    %v2510 = vsub.f32 %v2422, %v2489
    %v2511 = vsub.f32 %v2423, %v2493
    %v2512 = vsub.f32 %v2424, %v2497
    %v2513 = vsub.f32 %v2425, %v2501
    %v2514 = vmul.f32 %v2508, %v2508
    %v2515 = vmul.f32 %v2509, %v2509
    %v2516 = vmul.f32 %v2510, %v2510
    %v2517 = vmul.f32 %v2511, %v2511
    %v2518 = vmul.f32 %v2512, %v2512
    %v2519 = vmul.f32 %v2513, %v2513
    %v2526 = vcombine.low %v2514, %v2515
    %v2527 = vcombine.low %v2516, %v2517
    %v2528 = vcombine.low %v2518, %v2519
    %v2530 = vunpack.c.l.s4 1966171168
    %v2531 = vunpack.c.0.s8 %v2530
    %v2532 = vlaneseq
    %v2533 = vshrl.u32 %v2532, 7
    %v2534 = vsub.s32 %v2531, %v2533
    %v2535 = vrot.slane %v2526, %v2534
    %v2537 = vunpack.c.l.s4 1966171168
    %v2538 = vunpack.c.0.s8 %v2537
    %v2539 = vlaneseq
    %v2540 = vshrl.u32 %v2539, 7
    %v2541 = vsub.s32 %v2538, %v2540
    %v2542 = vrot.slane %v2527, %v2541
    %v2544 = vunpack.c.l.s4 1966171168
    %v2545 = vunpack.c.0.s8 %v2544
    %v2546 = vlaneseq
    %v2547 = vshrl.u32 %v2546, 7
    %v2548 = vsub.s32 %v2545, %v2547
    %v2549 = vrot.slane %v2528, %v2548
    %v2550 = vcombine.low %v2535, %v2542
    %v2552 = vunpack.c.l.s4 1966171168
    %v2553 = vunpack.c.0.s8 %v2552
    %v2554 = vlaneseq
    %v2555 = vshrl.u32 %v2554, 7
    %v2556 = vsub.s32 %v2553, %v2555
    %v2557 = vrot.slane %v2550, %v2556
    %v2559 = vunpack.c.l.s4 1966171168
    %v2560 = vunpack.c.0.s8 %v2559
    %v2561 = vlaneseq
    %v2562 = vshrl.u32 %v2561, 7
    %v2563 = vsub.s32 %v2560, %v2562
    %v2564 = vrot.slane %v2549, %v2563
    %v2565 = vcombine.low %v2557, %v2564
    %v2567 = vsel %vm896, %v2565, 0.0
    %2568 = vadd.xlane.f32.xlu0 %v2567
    %v2569 = vpop.xlane.xlu0 %2568
    %v2570 = vmul.f32 %v2569, %v900
    %v2571 = vadd.f32 %v2570, 1e-05
    %v2572 = vrsqrt.pop %v2571
    %v2574 = vlaneseq
    %v2575 = vshrl.u32 %v2574, 7
    %v2576 = vsub.s32 0, %v2575
    %v2577 = vrot.slane %v2572, %v2576
    %v2578 = vlaneseq
    %v2579 = vshrl.u32 %v2578, 7
    %v2580 = vsub.s32 1, %v2579
    %v2581 = vrot.slane %v2572, %v2580
    %v2582 = vlaneseq
    %v2583 = vshrl.u32 %v2582, 7
    %v2584 = vsub.s32 2, %v2583
    %v2585 = vrot.slane %v2572, %v2584
    %v2586 = vlaneseq
    %v2587 = vshrl.u32 %v2586, 7
    %v2588 = vsub.s32 3, %v2587
    %v2589 = vrot.slane %v2572, %v2588
    %v2590 = vlaneseq
    %v2591 = vshrl.u32 %v2590, 7
    %v2592 = vsub.s32 4, %v2591
    %v2593 = vrot.slane %v2572, %v2592
    %v2594 = vlaneseq
    %v2595 = vshrl.u32 %v2594, 7
    %v2596 = vsub.s32 5, %v2595
    %v2597 = vrot.slane %v2572, %v2596
    %v2604 = vmul.f32 %v2508, %v2577
    %v2605 = vmul.f32 %v2509, %v2581
    %v2606 = vmul.f32 %v2510, %v2585
    %v2607 = vmul.f32 %v2511, %v2589
    %v2608 = vmul.f32 %v2512, %v2593
    %v2609 = vmul.f32 %v2513, %v2597
    %v2610 = vlaneseq
    %v2611 = vshrl.u32 %v2610, 7
    %v2612 = vsub.s32 4, %v2611
    %v2613 = vrot.slane %v724, %v2612
    %v2615 = vcombine.high %v2613, %v2613
    %v2617 = vunpack.c.l.s4 1966171168
    %v2618 = vunpack.c.0.s8 %v2617
    %v2619 = vlaneseq
    %v2620 = vshrl.u32 %v2619, 7
    %v2621 = vsub.s32 %v2618, %v2620
    %v2622 = vrot.slane %v2613, %v2621
    %v2624 = vunpack.c.l.s4 1966171168
    %v2625 = vunpack.c.0.s8 %v2624
    %v2626 = vlaneseq
    %v2627 = vshrl.u32 %v2626, 7
    %v2628 = vsub.s32 %v2625, %v2627
    %v2629 = vrot.slane %v2615, %v2628
    %v2630 = vcombine.high %v2622, %v2622
    %v2631 = vcombine.high %v2629, %v2629
    %v2633 = vunpack.c.l.s4 1966171168
    %v2634 = vunpack.c.0.s8 %v2633
    %v2635 = vlaneseq
    %v2636 = vshrl.u32 %v2635, 7
    %v2637 = vsub.s32 %v2634, %v2636
    %v2638 = vrot.slane %v2622, %v2637
    %v2640 = vunpack.c.l.s4 1966171168
    %v2641 = vunpack.c.0.s8 %v2640
    %v2642 = vlaneseq
    %v2643 = vshrl.u32 %v2642, 7
    %v2644 = vsub.s32 %v2641, %v2643
    %v2645 = vrot.slane %v2629, %v2644
    %v2647 = vunpack.c.l.s4 1966171168
    %v2648 = vunpack.c.0.s8 %v2647
    %v2649 = vlaneseq
    %v2650 = vshrl.u32 %v2649, 7
    %v2651 = vsub.s32 %v2648, %v2650
    %v2652 = vrot.slane %v2630, %v2651
    %v2654 = vunpack.c.l.s4 1966171168
    %v2655 = vunpack.c.0.s8 %v2654
    %v2656 = vlaneseq
    %v2657 = vshrl.u32 %v2656, 7
    %v2658 = vsub.s32 %v2655, %v2657
    %v2659 = vrot.slane %v2631, %v2658
    %v2660 = vcombine.high %v2638, %v2638
    %v2661 = vcombine.high %v2652, %v2652
    %v2668 = vmul.f32 %v2604, %v2638
    %v2669 = vmul.f32 %v2605, %v2652
    %v2670 = vmul.f32 %v2606, %v2660
    %v2671 = vmul.f32 %v2607, %v2661
    %v2672 = vmul.f32 %v2608, %v2645
    %v2673 = vmul.f32 %v2609, %v2659
    %v2674 = vlaneseq
    %v2675 = vshrl.u32 %v2674, 7
    %v2676 = vsub.s32 5, %v2675
    %v2677 = vrot.slane %v724, %v2676
    %v2679 = vcombine.high %v2677, %v2677
    %v2681 = vunpack.c.l.s4 1966171168
    %v2682 = vunpack.c.0.s8 %v2681
    %v2683 = vlaneseq
    %v2684 = vshrl.u32 %v2683, 7
    %v2685 = vsub.s32 %v2682, %v2684
    %v2686 = vrot.slane %v2677, %v2685
    %v2688 = vunpack.c.l.s4 1966171168
    %v2689 = vunpack.c.0.s8 %v2688
    %v2690 = vlaneseq
    %v2691 = vshrl.u32 %v2690, 7
    %v2692 = vsub.s32 %v2689, %v2691
    %v2693 = vrot.slane %v2679, %v2692
    %v2694 = vcombine.high %v2686, %v2686
    %v2695 = vcombine.high %v2693, %v2693
    %v2697 = vunpack.c.l.s4 1966171168
    %v2698 = vunpack.c.0.s8 %v2697
    %v2699 = vlaneseq
    %v2700 = vshrl.u32 %v2699, 7
    %v2701 = vsub.s32 %v2698, %v2700
    %v2702 = vrot.slane %v2686, %v2701
    %v2704 = vunpack.c.l.s4 1966171168
    %v2705 = vunpack.c.0.s8 %v2704
    %v2706 = vlaneseq
    %v2707 = vshrl.u32 %v2706, 7
    %v2708 = vsub.s32 %v2705, %v2707
    %v2709 = vrot.slane %v2693, %v2708
    %v2711 = vunpack.c.l.s4 1966171168
    %v2712 = vunpack.c.0.s8 %v2711
    %v2713 = vlaneseq
    %v2714 = vshrl.u32 %v2713, 7
    %v2715 = vsub.s32 %v2712, %v2714
    %v2716 = vrot.slane %v2694, %v2715
    %v2718 = vunpack.c.l.s4 1966171168
    %v2719 = vunpack.c.0.s8 %v2718
    %v2720 = vlaneseq
    %v2721 = vshrl.u32 %v2720, 7
    %v2722 = vsub.s32 %v2719, %v2721
    %v2723 = vrot.slane %v2695, %v2722
    %v2724 = vcombine.high %v2702, %v2702
    %v2725 = vcombine.high %v2716, %v2716
    %v2732 = vadd.f32 %v2668, %v2702
    %v2733 = vadd.f32 %v2669, %v2716
    %v2734 = vadd.f32 %v2670, %v2724
    %v2735 = vadd.f32 %v2671, %v2725
    %v2736 = vadd.f32 %v2672, %v2709
    %v2737 = vadd.f32 %v2673, %v2723
    %v2744 = vcombine.low %v2732, %v2733
    %v2745 = vcombine.low %v2734, %v2735
    %v2746 = vcombine.low %v2736, %v2737
    %v2748 = vunpack.c.l.s4 1966171168
    %v2749 = vunpack.c.0.s8 %v2748
    %v2750 = vlaneseq
    %v2751 = vshrl.u32 %v2750, 7
    %v2752 = vsub.s32 %v2749, %v2751
    %v2753 = vrot.slane %v2744, %v2752
    %v2755 = vunpack.c.l.s4 1966171168
    %v2756 = vunpack.c.0.s8 %v2755
    %v2757 = vlaneseq
    %v2758 = vshrl.u32 %v2757, 7
    %v2759 = vsub.s32 %v2756, %v2758
    %v2760 = vrot.slane %v2745, %v2759
    %v2762 = vunpack.c.l.s4 1966171168
    %v2763 = vunpack.c.0.s8 %v2762
    %v2764 = vlaneseq
    %v2765 = vshrl.u32 %v2764, 7
    %v2766 = vsub.s32 %v2763, %v2765
    %v2767 = vrot.slane %v2746, %v2766
    %v2768 = vcombine.low %v2753, %v2760
    %v2770 = vunpack.c.l.s4 1966171168
    %v2771 = vunpack.c.0.s8 %v2770
    %v2772 = vlaneseq
    %v2773 = vshrl.u32 %v2772, 7
    %v2774 = vsub.s32 %v2771, %v2773
    %v2775 = vrot.slane %v2768, %v2774
    %v2777 = vunpack.c.l.s4 1966171168
    %v2778 = vunpack.c.0.s8 %v2777
    %v2779 = vlaneseq
    %v2780 = vshrl.u32 %v2779, 7
    %v2781 = vsub.s32 %v2778, %v2780
    %v2782 = vrot.slane %v2767, %v2781
    %v2783 = vcombine.low %v2775, %v2782
    %v2785 = vpack.c.bf16 %v2783, %v2783
    %s2786 = scalar_lea.vmem %s2, 16
    %v2787 = vld [vmem:[%s2786] sm:$0xf]
    %v2788 = vld [vmem:[%s2786 + $0x4] sm:$0xf]
    %v2789 = vld [vmem:[%s2786 + $0x8] sm:$0xf]
    %v2790 = vld [vmem:[%s2786 + $0xc] sm:$0xf]
    %s2791 = scalar_lea.vmem [#allocation2], 1
    %v2792 = vld [vmem:[%s2791] sm:$0x1]
    %v2794 = vlaneseq
    %v2795 = vshrl.u32 %v2794, 7
    %v2796 = vsub.s32 0, %v2795
    %v2797 = vrot.slane %v2792, %v2796
    %v2803 = vunpack.c.l.b16 %v2787
    %v2804 = vunpack.c.l.b16 %v2788
    %v2805 = vunpack.c.l.b16 %v2789
    %v2806 = vunpack.c.l.b16 %v2790
    %v2807 = vpack.c.b16 %v2804, %v2803
    %v2808 = vpack.c.b16 %v2806, %v2805
    %v2812 = vsel %vm211, %v2785, 0
    %2814 = vmatprep.subr.bf16.mxu0 0
    %2815 = vmatpush1.bf16.msra.mxu0 0
    %2816 = vmatprep.subr.bf16.mxu0 0
    %2817 = vmatpush1.bf16.msra.mxu0 0
    %2818 = vmatprep.subr.bf16.mxu0 0
    %2819 = vmatpush1.bf16.msra.mxu0 0
    %2820 = vmatprep.subr.bf16.mxu0 0
    %2821 = vmatpush1.bf16.msra.mxu0 0
    %2822 = vmatprep.subr.bf16.mxu0 0
    %2823 = vmatpush1.bf16.msra.mxu0 0
    %2824 = vmatprep.subr.bf16.mxu0 0
    %2825 = vmatpush1.bf16.msra.mxu0 0
    %2826 = vmatprep.subr.bf16.mxu0 0
    %2827 = vmatpush1.bf16.msra.mxu0 %v2808
    %2828 = vmatprep.subr.bf16.mxu0 0
    %2829 = vmatpush1.bf16.msra.mxu0 %v2807
    %2830 = vmatprep.subr.bf16.mxu0 0
    %2831 = vmatpush2.bf16.msra.mxu0 0
    %2832 = vmatprep.subr.bf16.mxu0 0
    %2833 = vmatpush2.bf16.msra.mxu0 0
    %2834 = vmatprep.subr.bf16.mxu0 0
    %2835 = vmatpush2.bf16.msra.mxu0 0
    %2836 = vmatprep.subr.bf16.mxu0 0
    %2837 = vmatpush2.bf16.msra.mxu0 0
    %2838 = vmatprep.subr.bf16.mxu0 0
    %2839 = vmatpush2.bf16.msra.mxu0 0
    %2840 = vmatprep.subr.bf16.mxu0 0
    %2841 = vmatpush2.bf16.msra.mxu0 0
    %2842 = vmatprep.subr.bf16.mxu0 0
    %2843 = vmatpush2.bf16.msra.mxu0 0
    %2844 = vmatprep.subr.bf16.mxu0 0
    %2845 = vmatpush2.bf16.msra.mxu0 0
    %2846 = vmatprep.mubr.bf16.mxu0 0
    %2847 = vmatmul.mubr.bf16.gmra.mxu0 %v2812
    %v2848 = vpop.f32.mrf.mxu0
    %v2849 = vadd.f32 %v2797, %v2848
    %v2850 = vpop.f32.mrf.mxu0
    %v2851 = vpop.f32.mrf.mxu0
    %v2852 = vpop.f32.mrf.mxu0
    %2853 = vdwg.mxu0
    %v2854 = vpack.c.bf16 %v2849, %v2849
    %2856 = vrot.lane.b32.xlu0 %v2854, 96
    %v2857 = vpop.permute.xlu0 %2856
    %v2859 = vsel %vm259, %v2854, 0
    %v2862 = vsel %vm259, %v2857, 0
    %2864 = vmatprep.subr.bf16.mxu0 0
    %2865 = vmatpush1.bf16.xpose.msra.mxu0 0
    %2866 = vmatprep.subr.bf16.mxu0 0
    %2867 = vmatpush1.bf16.xpose.msra.mxu0 0
    %2868 = vmatprep.subr.bf16.mxu0 0
    %2869 = vmatpush1.bf16.xpose.msra.mxu0 0
    %2870 = vmatprep.subr.bf16.mxu0 0
    %2871 = vmatpush1.bf16.xpose.msra.mxu0 0
    %2872 = vmatprep.subr.bf16.mxu0 0
    %2873 = vmatpush1.bf16.xpose.msra.mxu0 0
    %2874 = vmatprep.subr.bf16.mxu0 0
    %2875 = vmatpush1.bf16.xpose.msra.mxu0 0
    %2876 = vmatprep.subr.bf16.mxu0 0
    %2877 = vmatpush1.bf16.xpose.msra.mxu0 0
    %2878 = vmatprep.subr.bf16.mxu0 0
    %2879 = vmatpush1.bf16.xpose.msra.mxu0 %v2862
    %2880 = vmatprep.subr.bf16.mxu0 0
    %2881 = vmatpush2.bf16.xpose.msra.mxu0 0
    %2882 = vmatprep.subr.bf16.mxu0 0
    %2883 = vmatpush2.bf16.xpose.msra.mxu0 0
    %2884 = vmatprep.subr.bf16.mxu0 0
    %2885 = vmatpush2.bf16.xpose.msra.mxu0 0
    %2886 = vmatprep.subr.bf16.mxu0 0
    %2887 = vmatpush2.bf16.xpose.msra.mxu0 0
    %2888 = vmatprep.subr.bf16.mxu0 0
    %2889 = vmatpush2.bf16.xpose.msra.mxu0 0
    %2890 = vmatprep.subr.bf16.mxu0 0
    %2891 = vmatpush2.bf16.xpose.msra.mxu0 0
    %2892 = vmatprep.subr.bf16.mxu0 0
    %2893 = vmatpush2.bf16.xpose.msra.mxu0 0
    %2894 = vmatprep.subr.bf16.mxu0 0
    %2895 = vmatpush2.bf16.xpose.msra.mxu0 0
    %2896 = vmatprep.mubr.bf16.mxu0 0
    %2897 = vmatmul.mubr.bf16.gmra.mxu0 %v2859
    %v2898 = vpop.f32.mrf.mxu0
    %v2899 = vadd.f32 0.0, %v2898
    %v2900 = vpop.f32.mrf.mxu0
    %v2901 = vpop.f32.mrf.mxu0
    %v2902 = vpop.f32.mrf.mxu0
    %2903 = vdwg.mxu0
    %v2904 = vmul.f32 %v2899, 0.35355338
    %v2905 = vadd.f32 %v2904, %v89
    %v2906 = vsel %vm308, %v2905, -inf
    %2907 = vmax.xlane.f32.xlu0 %v2906
    %v2908 = vpop.xlane.xlu0 %2907
    %v2909 = vsub.f32 %v2905, %v2908
    %v2910 = vmul.f32 %v2909, 1.442695
    %v2911 = vpow.pop %v2910
    %v2912 = vsel %vm308, %v2911, 0.0
    %2913 = vadd.xlane.f32.xlu0 %v2912
    %v2914 = vpop.xlane.xlu0 %2913
    %v2915 = vrcp.pop %v2914
    %v2916 = vmul.f32 %v2911, %v2915
    %v2917 = vpack.c.bf16 %v2916, %v2916
    %2918 = vrot.lane.b32.xlu0 %v2854, 64
    %v2919 = vpop.permute.xlu0 %2918
    %v2921 = vsel %vm323, %v2917, 0
    %v2924 = vsel %vm327, %v2919, 0
    %2926 = vmatprep.subr.bf16.mxu0 0
    %2927 = vmatpush1.bf16.msra.mxu0 0
    %2928 = vmatprep.subr.bf16.mxu0 0
    %2929 = vmatpush1.bf16.msra.mxu0 0
    %2930 = vmatprep.subr.bf16.mxu0 0
    %2931 = vmatpush1.bf16.msra.mxu0 0
    %2932 = vmatprep.subr.bf16.mxu0 0
    %2933 = vmatpush1.bf16.msra.mxu0 0
    %2934 = vmatprep.subr.bf16.mxu0 0
    %2935 = vmatpush1.bf16.msra.mxu0 0
    %2936 = vmatprep.subr.bf16.mxu0 0
    %2937 = vmatpush1.bf16.msra.mxu0 0
    %2938 = vmatprep.subr.bf16.mxu0 0
    %2939 = vmatpush1.bf16.msra.mxu0 0
    %2940 = vmatprep.subr.bf16.mxu0 0
    %2941 = vmatpush1.bf16.msra.mxu0 %v2924
    %2942 = vmatprep.subr.bf16.mxu0 0
    %2943 = vmatpush2.bf16.msra.mxu0 0
    %2944 = vmatprep.subr.bf16.mxu0 0
    %2945 = vmatpush2.bf16.msra.mxu0 0
    %2946 = vmatprep.subr.bf16.mxu0 0
    %2947 = vmatpush2.bf16.msra.mxu0 0
    %2948 = vmatprep.subr.bf16.mxu0 0
    %2949 = vmatpush2.bf16.msra.mxu0 0
    %2950 = vmatprep.subr.bf16.mxu0 0
    %2951 = vmatpush2.bf16.msra.mxu0 0
    %2952 = vmatprep.subr.bf16.mxu0 0
    %2953 = vmatpush2.bf16.msra.mxu0 0
    %2954 = vmatprep.subr.bf16.mxu0 0
    %2955 = vmatpush2.bf16.msra.mxu0 0
    %2956 = vmatprep.subr.bf16.mxu0 0
    %2957 = vmatpush2.bf16.msra.mxu0 0
    %2958 = vmatprep.mubr.bf16.mxu0 0
    %2959 = vmatmul.mubr.bf16.gmra.mxu0 %v2921
    %v2960 = vpop.f32.mrf.mxu0
    %v2961 = vadd.f32 0.0, %v2960
    %v2962 = vpop.f32.mrf.mxu0
    %v2963 = vpop.f32.mrf.mxu0
    %v2964 = vpop.f32.mrf.mxu0
    %2965 = vdwg.mxu0
    %2966 = vrot.lane.b32.xlu0 %v2854, 120
    %v2967 = vpop.permute.xlu0 %2966
    %2968 = vrot.lane.b32.xlu0 %v2854, 88
    %v2969 = vpop.permute.xlu0 %2968
    %v2971 = vsel %vm259, %v2967, 0
    %v2974 = vsel %vm259, %v2969, 0
    %2976 = vmatprep.subr.bf16.mxu0 0
    %2977 = vmatpush1.bf16.xpose.msra.mxu0 0
    %2978 = vmatprep.subr.bf16.mxu0 0
    %2979 = vmatpush1.bf16.xpose.msra.mxu0 0
    %2980 = vmatprep.subr.bf16.mxu0 0
    %2981 = vmatpush1.bf16.xpose.msra.mxu0 0
    %2982 = vmatprep.subr.bf16.mxu0 0
    %2983 = vmatpush1.bf16.xpose.msra.mxu0 0
    %2984 = vmatprep.subr.bf16.mxu0 0
    %2985 = vmatpush1.bf16.xpose.msra.mxu0 0
    %2986 = vmatprep.subr.bf16.mxu0 0
    %2987 = vmatpush1.bf16.xpose.msra.mxu0 0
    %2988 = vmatprep.subr.bf16.mxu0 0
    %2989 = vmatpush1.bf16.xpose.msra.mxu0 0
    %2990 = vmatprep.subr.bf16.mxu0 0
    %2991 = vmatpush1.bf16.xpose.msra.mxu0 %v2974
    %2992 = vmatprep.subr.bf16.mxu0 0
    %2993 = vmatpush2.bf16.xpose.msra.mxu0 0
    %2994 = vmatprep.subr.bf16.mxu0 0
    %2995 = vmatpush2.bf16.xpose.msra.mxu0 0
    %2996 = vmatprep.subr.bf16.mxu0 0
    %2997 = vmatpush2.bf16.xpose.msra.mxu0 0
    %2998 = vmatprep.subr.bf16.mxu0 0
    %2999 = vmatpush2.bf16.xpose.msra.mxu0 0
    %3000 = vmatprep.subr.bf16.mxu0 0
    %3001 = vmatpush2.bf16.xpose.msra.mxu0 0
    %3002 = vmatprep.subr.bf16.mxu0 0
    %3003 = vmatpush2.bf16.xpose.msra.mxu0 0
    %3004 = vmatprep.subr.bf16.mxu0 0
    %3005 = vmatpush2.bf16.xpose.msra.mxu0 0
    %3006 = vmatprep.subr.bf16.mxu0 0
    %3007 = vmatpush2.bf16.xpose.msra.mxu0 0
    %3008 = vmatprep.mubr.bf16.mxu0 0
    %3009 = vmatmul.mubr.bf16.gmra.mxu0 %v2971
    %v3010 = vpop.f32.mrf.mxu0
    %v3011 = vadd.f32 0.0, %v3010
    %v3012 = vpop.f32.mrf.mxu0
    %v3013 = vpop.f32.mrf.mxu0
    %v3014 = vpop.f32.mrf.mxu0
    %3015 = vdwg.mxu0
    %v3016 = vmul.f32 %v3011, 0.35355338
    %v3017 = vadd.f32 %v3016, %v89
    %v3018 = vsel %vm308, %v3017, -inf
    %3019 = vmax.xlane.f32.xlu0 %v3018
    %v3020 = vpop.xlane.xlu0 %3019
    %v3021 = vsub.f32 %v3017, %v3020
    %v3022 = vmul.f32 %v3021, 1.442695
    %v3023 = vpow.pop %v3022
    %v3024 = vsel %vm308, %v3023, 0.0
    %3025 = vadd.xlane.f32.xlu0 %v3024
    %v3026 = vpop.xlane.xlu0 %3025
    %v3027 = vrcp.pop %v3026
    %v3028 = vmul.f32 %v3023, %v3027
    %v3029 = vpack.c.bf16 %v3028, %v3028
    %3030 = vrot.lane.b32.xlu0 %v2854, 56
    %v3031 = vpop.permute.xlu0 %3030
    %v3033 = vsel %vm323, %v3029, 0
    %v3036 = vsel %vm327, %v3031, 0
    %3038 = vmatprep.subr.bf16.mxu0 0
    %3039 = vmatpush1.bf16.msra.mxu0 0
    %3040 = vmatprep.subr.bf16.mxu0 0
    %3041 = vmatpush1.bf16.msra.mxu0 0
    %3042 = vmatprep.subr.bf16.mxu0 0
    %3043 = vmatpush1.bf16.msra.mxu0 0
    %3044 = vmatprep.subr.bf16.mxu0 0
    %3045 = vmatpush1.bf16.msra.mxu0 0
    %3046 = vmatprep.subr.bf16.mxu0 0
    %3047 = vmatpush1.bf16.msra.mxu0 0
    %3048 = vmatprep.subr.bf16.mxu0 0
    %3049 = vmatpush1.bf16.msra.mxu0 0
    %3050 = vmatprep.subr.bf16.mxu0 0
    %3051 = vmatpush1.bf16.msra.mxu0 0
    %3052 = vmatprep.subr.bf16.mxu0 0
    %3053 = vmatpush1.bf16.msra.mxu0 %v3036
    %3054 = vmatprep.subr.bf16.mxu0 0
    %3055 = vmatpush2.bf16.msra.mxu0 0
    %3056 = vmatprep.subr.bf16.mxu0 0
    %3057 = vmatpush2.bf16.msra.mxu0 0
    %3058 = vmatprep.subr.bf16.mxu0 0
    %3059 = vmatpush2.bf16.msra.mxu0 0
    %3060 = vmatprep.subr.bf16.mxu0 0
    %3061 = vmatpush2.bf16.msra.mxu0 0
    %3062 = vmatprep.subr.bf16.mxu0 0
    %3063 = vmatpush2.bf16.msra.mxu0 0
    %3064 = vmatprep.subr.bf16.mxu0 0
    %3065 = vmatpush2.bf16.msra.mxu0 0
    %3066 = vmatprep.subr.bf16.mxu0 0
    %3067 = vmatpush2.bf16.msra.mxu0 0
    %3068 = vmatprep.subr.bf16.mxu0 0
    %3069 = vmatpush2.bf16.msra.mxu0 0
    %3070 = vmatprep.mubr.bf16.mxu0 0
    %3071 = vmatmul.mubr.bf16.gmra.mxu0 %v3033
    %v3072 = vpop.f32.mrf.mxu0
    %v3073 = vadd.f32 0.0, %v3072
    %v3074 = vpop.f32.mrf.mxu0
    %v3075 = vpop.f32.mrf.mxu0
    %v3076 = vpop.f32.mrf.mxu0
    %3077 = vdwg.mxu0
    %3078 = vrot.lane.b32.xlu0 %v2854, 112
    %v3079 = vpop.permute.xlu0 %3078
    %3080 = vrot.lane.b32.xlu0 %v2854, 80
    %v3081 = vpop.permute.xlu0 %3080
    %v3083 = vsel %vm259, %v3079, 0
    %v3086 = vsel %vm259, %v3081, 0
    %3088 = vmatprep.subr.bf16.mxu0 0
    %3089 = vmatpush1.bf16.xpose.msra.mxu0 0
    %3090 = vmatprep.subr.bf16.mxu0 0
    %3091 = vmatpush1.bf16.xpose.msra.mxu0 0
    %3092 = vmatprep.subr.bf16.mxu0 0
    %3093 = vmatpush1.bf16.xpose.msra.mxu0 0
    %3094 = vmatprep.subr.bf16.mxu0 0
    %3095 = vmatpush1.bf16.xpose.msra.mxu0 0
    %3096 = vmatprep.subr.bf16.mxu0 0
    %3097 = vmatpush1.bf16.xpose.msra.mxu0 0
    %3098 = vmatprep.subr.bf16.mxu0 0
    %3099 = vmatpush1.bf16.xpose.msra.mxu0 0
    %3100 = vmatprep.subr.bf16.mxu0 0
    %3101 = vmatpush1.bf16.xpose.msra.mxu0 0
    %3102 = vmatprep.subr.bf16.mxu0 0
    %3103 = vmatpush1.bf16.xpose.msra.mxu0 %v3086
    %3104 = vmatprep.subr.bf16.mxu0 0
    %3105 = vmatpush2.bf16.xpose.msra.mxu0 0
    %3106 = vmatprep.subr.bf16.mxu0 0
    %3107 = vmatpush2.bf16.xpose.msra.mxu0 0
    %3108 = vmatprep.subr.bf16.mxu0 0
    %3109 = vmatpush2.bf16.xpose.msra.mxu0 0
    %3110 = vmatprep.subr.bf16.mxu0 0
    %3111 = vmatpush2.bf16.xpose.msra.mxu0 0
    %3112 = vmatprep.subr.bf16.mxu0 0
    %3113 = vmatpush2.bf16.xpose.msra.mxu0 0
    %3114 = vmatprep.subr.bf16.mxu0 0
    %3115 = vmatpush2.bf16.xpose.msra.mxu0 0
    %3116 = vmatprep.subr.bf16.mxu0 0
    %3117 = vmatpush2.bf16.xpose.msra.mxu0 0
    %3118 = vmatprep.subr.bf16.mxu0 0
    %3119 = vmatpush2.bf16.xpose.msra.mxu0 0
    %3120 = vmatprep.mubr.bf16.mxu0 0
    %3121 = vmatmul.mubr.bf16.gmra.mxu0 %v3083
    %v3122 = vpop.f32.mrf.mxu0
    %v3123 = vadd.f32 0.0, %v3122
    %v3124 = vpop.f32.mrf.mxu0
    %v3125 = vpop.f32.mrf.mxu0
    %v3126 = vpop.f32.mrf.mxu0
    %3127 = vdwg.mxu0
    %v3128 = vmul.f32 %v3123, 0.35355338
    %v3129 = vadd.f32 %v3128, %v89
    %v3130 = vsel %vm308, %v3129, -inf
    %3131 = vmax.xlane.f32.xlu0 %v3130
    %v3132 = vpop.xlane.xlu0 %3131
    %v3133 = vsub.f32 %v3129, %v3132
    %v3134 = vmul.f32 %v3133, 1.442695
    %v3135 = vpow.pop %v3134
    %v3136 = vsel %vm308, %v3135, 0.0
    %3137 = vadd.xlane.f32.xlu0 %v3136
    %v3138 = vpop.xlane.xlu0 %3137
    %v3139 = vrcp.pop %v3138
    %v3140 = vmul.f32 %v3135, %v3139
    %v3141 = vpack.c.bf16 %v3140, %v3140
    %3142 = vrot.lane.b32.xlu0 %v2854, 48
    %v3143 = vpop.permute.xlu0 %3142
    %v3145 = vsel %vm323, %v3141, 0
    %v3148 = vsel %vm327, %v3143, 0
    %3150 = vmatprep.subr.bf16.mxu0 0
    %3151 = vmatpush1.bf16.msra.mxu0 0
    %3152 = vmatprep.subr.bf16.mxu0 0
    %3153 = vmatpush1.bf16.msra.mxu0 0
    %3154 = vmatprep.subr.bf16.mxu0 0
    %3155 = vmatpush1.bf16.msra.mxu0 0
    %3156 = vmatprep.subr.bf16.mxu0 0
    %3157 = vmatpush1.bf16.msra.mxu0 0
    %3158 = vmatprep.subr.bf16.mxu0 0
    %3159 = vmatpush1.bf16.msra.mxu0 0
    %3160 = vmatprep.subr.bf16.mxu0 0
    %3161 = vmatpush1.bf16.msra.mxu0 0
    %3162 = vmatprep.subr.bf16.mxu0 0
    %3163 = vmatpush1.bf16.msra.mxu0 0
    %3164 = vmatprep.subr.bf16.mxu0 0
    %3165 = vmatpush1.bf16.msra.mxu0 %v3148
    %3166 = vmatprep.subr.bf16.mxu0 0
    %3167 = vmatpush2.bf16.msra.mxu0 0
    %3168 = vmatprep.subr.bf16.mxu0 0
    %3169 = vmatpush2.bf16.msra.mxu0 0
    %3170 = vmatprep.subr.bf16.mxu0 0
    %3171 = vmatpush2.bf16.msra.mxu0 0
    %3172 = vmatprep.subr.bf16.mxu0 0
    %3173 = vmatpush2.bf16.msra.mxu0 0
    %3174 = vmatprep.subr.bf16.mxu0 0
    %3175 = vmatpush2.bf16.msra.mxu0 0
    %3176 = vmatprep.subr.bf16.mxu0 0
    %3177 = vmatpush2.bf16.msra.mxu0 0
    %3178 = vmatprep.subr.bf16.mxu0 0
    %3179 = vmatpush2.bf16.msra.mxu0 0
    %3180 = vmatprep.subr.bf16.mxu0 0
    %3181 = vmatpush2.bf16.msra.mxu0 0
    %3182 = vmatprep.mubr.bf16.mxu0 0
    %3183 = vmatmul.mubr.bf16.gmra.mxu0 %v3145
    %v3184 = vpop.f32.mrf.mxu0
    %v3185 = vadd.f32 0.0, %v3184
    %v3186 = vpop.f32.mrf.mxu0
    %v3187 = vpop.f32.mrf.mxu0
    %v3188 = vpop.f32.mrf.mxu0
    %3189 = vdwg.mxu0
    %3190 = vrot.lane.b32.xlu0 %v2854, 104
    %v3191 = vpop.permute.xlu0 %3190
    %3192 = vrot.lane.b32.xlu0 %v2854, 72
    %v3193 = vpop.permute.xlu0 %3192
    %v3195 = vsel %vm259, %v3191, 0
    %v3198 = vsel %vm259, %v3193, 0
    %3200 = vmatprep.subr.bf16.mxu0 0
    %3201 = vmatpush1.bf16.xpose.msra.mxu0 0
    %3202 = vmatprep.subr.bf16.mxu0 0
    %3203 = vmatpush1.bf16.xpose.msra.mxu0 0
    %3204 = vmatprep.subr.bf16.mxu0 0
    %3205 = vmatpush1.bf16.xpose.msra.mxu0 0
    %3206 = vmatprep.subr.bf16.mxu0 0
    %3207 = vmatpush1.bf16.xpose.msra.mxu0 0
    %3208 = vmatprep.subr.bf16.mxu0 0
    %3209 = vmatpush1.bf16.xpose.msra.mxu0 0
    %3210 = vmatprep.subr.bf16.mxu0 0
    %3211 = vmatpush1.bf16.xpose.msra.mxu0 0
    %3212 = vmatprep.subr.bf16.mxu0 0
    %3213 = vmatpush1.bf16.xpose.msra.mxu0 0
    %3214 = vmatprep.subr.bf16.mxu0 0
    %3215 = vmatpush1.bf16.xpose.msra.mxu0 %v3198
    %3216 = vmatprep.subr.bf16.mxu0 0
    %3217 = vmatpush2.bf16.xpose.msra.mxu0 0
    %3218 = vmatprep.subr.bf16.mxu0 0
    %3219 = vmatpush2.bf16.xpose.msra.mxu0 0
    %3220 = vmatprep.subr.bf16.mxu0 0
    %3221 = vmatpush2.bf16.xpose.msra.mxu0 0
    %3222 = vmatprep.subr.bf16.mxu0 0
    %3223 = vmatpush2.bf16.xpose.msra.mxu0 0
    %3224 = vmatprep.subr.bf16.mxu0 0
    %3225 = vmatpush2.bf16.xpose.msra.mxu0 0
    %3226 = vmatprep.subr.bf16.mxu0 0
    %3227 = vmatpush2.bf16.xpose.msra.mxu0 0
    %3228 = vmatprep.subr.bf16.mxu0 0
    %3229 = vmatpush2.bf16.xpose.msra.mxu0 0
    %3230 = vmatprep.subr.bf16.mxu0 0
    %3231 = vmatpush2.bf16.xpose.msra.mxu0 0
    %3232 = vmatprep.mubr.bf16.mxu0 0
    %3233 = vmatmul.mubr.bf16.gmra.mxu0 %v3195
    %v3234 = vpop.f32.mrf.mxu0
    %v3235 = vadd.f32 0.0, %v3234
    %v3236 = vpop.f32.mrf.mxu0
    %v3237 = vpop.f32.mrf.mxu0
    %v3238 = vpop.f32.mrf.mxu0
    %3239 = vdwg.mxu0
    %v3240 = vmul.f32 %v3235, 0.35355338
    %v3241 = vadd.f32 %v3240, %v89
    %v3242 = vsel %vm308, %v3241, -inf
    %3243 = vmax.xlane.f32.xlu0 %v3242
    %v3244 = vpop.xlane.xlu0 %3243
    %v3245 = vsub.f32 %v3241, %v3244
    %v3246 = vmul.f32 %v3245, 1.442695
    %v3247 = vpow.pop %v3246
    %v3248 = vsel %vm308, %v3247, 0.0
    %3249 = vadd.xlane.f32.xlu0 %v3248
    %v3250 = vpop.xlane.xlu0 %3249
    %v3251 = vrcp.pop %v3250
    %v3252 = vmul.f32 %v3247, %v3251
    %v3253 = vpack.c.bf16 %v3252, %v3252
    %3254 = vrot.lane.b32.xlu0 %v2854, 40
    %v3255 = vpop.permute.xlu0 %3254
    %v3257 = vsel %vm323, %v3253, 0
    %v3260 = vsel %vm327, %v3255, 0
    %3262 = vmatprep.subr.bf16.mxu0 0
    %3263 = vmatpush1.bf16.msra.mxu0 0
    %3264 = vmatprep.subr.bf16.mxu0 0
    %3265 = vmatpush1.bf16.msra.mxu0 0
    %3266 = vmatprep.subr.bf16.mxu0 0
    %3267 = vmatpush1.bf16.msra.mxu0 0
    %3268 = vmatprep.subr.bf16.mxu0 0
    %3269 = vmatpush1.bf16.msra.mxu0 0
    %3270 = vmatprep.subr.bf16.mxu0 0
    %3271 = vmatpush1.bf16.msra.mxu0 0
    %3272 = vmatprep.subr.bf16.mxu0 0
    %3273 = vmatpush1.bf16.msra.mxu0 0
    %3274 = vmatprep.subr.bf16.mxu0 0
    %3275 = vmatpush1.bf16.msra.mxu0 0
    %3276 = vmatprep.subr.bf16.mxu0 0
    %3277 = vmatpush1.bf16.msra.mxu0 %v3260
    %3278 = vmatprep.subr.bf16.mxu0 0
    %3279 = vmatpush2.bf16.msra.mxu0 0
    %3280 = vmatprep.subr.bf16.mxu0 0
    %3281 = vmatpush2.bf16.msra.mxu0 0
    %3282 = vmatprep.subr.bf16.mxu0 0
    %3283 = vmatpush2.bf16.msra.mxu0 0
    %3284 = vmatprep.subr.bf16.mxu0 0
    %3285 = vmatpush2.bf16.msra.mxu0 0
    %3286 = vmatprep.subr.bf16.mxu0 0
    %3287 = vmatpush2.bf16.msra.mxu0 0
    %3288 = vmatprep.subr.bf16.mxu0 0
    %3289 = vmatpush2.bf16.msra.mxu0 0
    %3290 = vmatprep.subr.bf16.mxu0 0
    %3291 = vmatpush2.bf16.msra.mxu0 0
    %3292 = vmatprep.subr.bf16.mxu0 0
    %3293 = vmatpush2.bf16.msra.mxu0 0
    %3294 = vmatprep.mubr.bf16.mxu0 0
    %3295 = vmatmul.mubr.bf16.gmra.mxu0 %v3257
    %v3296 = vpop.f32.mrf.mxu0
    %v3297 = vadd.f32 0.0, %v3296
    %v3298 = vpop.f32.mrf.mxu0
    %v3299 = vpop.f32.mrf.mxu0
    %v3300 = vpop.f32.mrf.mxu0
    %3301 = vdwg.mxu0
    %3303 = vrot.lane.b32.xlu0 %v3073, 8
    %v3304 = vpop.permute.xlu0 %3303
    %3307 = vrot.lane.b32.xlu0 %v3185, 16
    %v3308 = vpop.permute.xlu0 %3307
    %3311 = vrot.lane.b32.xlu0 %v3297, 24
    %v3312 = vpop.permute.xlu0 %3311
    %v3314 = vsel %vm259, %v2961, %v3304
    %v3315 = vsel %vm720, %v3314, %v3308
    %v3316 = vsel %vm722, %v3315, %v3312
    %s3317 = scalar_lea.vmem %s5, 8
    %v3318 = vld [vmem:[%s3317] sm:$0x3f]
    %v3319 = vpack.c.bf16 %v3316, %v3316
    %s3320 = scalar_lea.vmem %s4, 16
    %v3321 = vld [vmem:[%s3320] sm:$0xf]
    %v3322 = vld [vmem:[%s3320 + $0x4] sm:$0xf]
    %v3323 = vld [vmem:[%s3320 + $0x8] sm:$0xf]
    %v3324 = vld [vmem:[%s3320 + $0xc] sm:$0xf]
    %v3325 = vlaneseq
    %v3326 = vshrl.u32 %v3325, 7
    %v3327 = vsub.s32 0, %v3326
    %v3328 = vrot.slane %v3318, %v3327
    %v3333 = vunpack.c.l.b16 %v3321
    %v3334 = vunpack.c.l.b16 %v3322
    %v3335 = vunpack.c.l.b16 %v3323
    %v3336 = vunpack.c.l.b16 %v3324
    %v3337 = vpack.c.b16 %v3334, %v3333
    %v3338 = vpack.c.b16 %v3336, %v3335
    %v3342 = vsel %vm211, %v3319, 0
    %3344 = vmatprep.subr.bf16.mxu0 0
    %3345 = vmatpush1.bf16.msra.mxu0 0
    %3346 = vmatprep.subr.bf16.mxu0 0
    %3347 = vmatpush1.bf16.msra.mxu0 0
    %3348 = vmatprep.subr.bf16.mxu0 0
    %3349 = vmatpush1.bf16.msra.mxu0 0
    %3350 = vmatprep.subr.bf16.mxu0 0
    %3351 = vmatpush1.bf16.msra.mxu0 0
    %3352 = vmatprep.subr.bf16.mxu0 0
    %3353 = vmatpush1.bf16.msra.mxu0 0
    %3354 = vmatprep.subr.bf16.mxu0 0
    %3355 = vmatpush1.bf16.msra.mxu0 0
    %3356 = vmatprep.subr.bf16.mxu0 0
    %3357 = vmatpush1.bf16.msra.mxu0 %v3338
    %3358 = vmatprep.subr.bf16.mxu0 0
    %3359 = vmatpush1.bf16.msra.mxu0 %v3337
    %3360 = vmatprep.subr.bf16.mxu0 0
    %3361 = vmatpush2.bf16.msra.mxu0 0
    %3362 = vmatprep.subr.bf16.mxu0 0
    %3363 = vmatpush2.bf16.msra.mxu0 0
    %3364 = vmatprep.subr.bf16.mxu0 0
    %3365 = vmatpush2.bf16.msra.mxu0 0
    %3366 = vmatprep.subr.bf16.mxu0 0
    %3367 = vmatpush2.bf16.msra.mxu0 0
    %3368 = vmatprep.subr.bf16.mxu0 0
    %3369 = vmatpush2.bf16.msra.mxu0 0
    %3370 = vmatprep.subr.bf16.mxu0 0
    %3371 = vmatpush2.bf16.msra.mxu0 0
    %3372 = vmatprep.subr.bf16.mxu0 0
    %3373 = vmatpush2.bf16.msra.mxu0 0
    %3374 = vmatprep.subr.bf16.mxu0 0
    %3375 = vmatpush2.bf16.msra.mxu0 0
    %3376 = vmatprep.mubr.bf16.mxu0 0
    %3377 = vmatmul.mubr.bf16.gmra.mxu0 %v3342
    %v3378 = vpop.f32.mrf.mxu0
    %v3379 = vadd.f32 %v3328, %v3378
    %v3380 = vpop.f32.mrf.mxu0
    %v3381 = vpop.f32.mrf.mxu0
    %v3382 = vpop.f32.mrf.mxu0
    %3383 = vdwg.mxu0
    %v3385 = vcombine.high %v3379, %v3379
    %v3387 = vunpack.c.l.s4 1966171168
    %v3388 = vunpack.c.0.s8 %v3387
    %v3389 = vlaneseq
    %v3390 = vshrl.u32 %v3389, 7
    %v3391 = vsub.s32 %v3388, %v3390
    %v3392 = vrot.slane %v3379, %v3391
    %v3394 = vunpack.c.l.s4 1966171168
    %v3395 = vunpack.c.0.s8 %v3394
    %v3396 = vlaneseq
    %v3397 = vshrl.u32 %v3396, 7
    %v3398 = vsub.s32 %v3395, %v3397
    %v3399 = vrot.slane %v3385, %v3398
    %v3400 = vcombine.high %v3392, %v3392
    %v3401 = vcombine.high %v3399, %v3399
    %v3403 = vunpack.c.l.s4 1966171168
    %v3404 = vunpack.c.0.s8 %v3403
    %v3405 = vlaneseq
    %v3406 = vshrl.u32 %v3405, 7
    %v3407 = vsub.s32 %v3404, %v3406
    %v3408 = vrot.slane %v3392, %v3407
    %v3410 = vunpack.c.l.s4 1966171168
    %v3411 = vunpack.c.0.s8 %v3410
    %v3412 = vlaneseq
    %v3413 = vshrl.u32 %v3412, 7
    %v3414 = vsub.s32 %v3411, %v3413
    %v3415 = vrot.slane %v3399, %v3414
    %v3417 = vunpack.c.l.s4 1966171168
    %v3418 = vunpack.c.0.s8 %v3417
    %v3419 = vlaneseq
    %v3420 = vshrl.u32 %v3419, 7
    %v3421 = vsub.s32 %v3418, %v3420
    %v3422 = vrot.slane %v3400, %v3421
    %v3424 = vunpack.c.l.s4 1966171168
    %v3425 = vunpack.c.0.s8 %v3424
    %v3426 = vlaneseq
    %v3427 = vshrl.u32 %v3426, 7
    %v3428 = vsub.s32 %v3425, %v3427
    %v3429 = vrot.slane %v3401, %v3428
    %v3430 = vcombine.high %v3408, %v3408
    %v3431 = vcombine.high %v3422, %v3422
    %v3438 = vadd.f32 %v2732, %v3408
    %v3439 = vadd.f32 %v2733, %v3422
    %v3440 = vadd.f32 %v2734, %v3430
    %v3441 = vadd.f32 %v2735, %v3431
    %v3442 = vadd.f32 %v2736, %v3415
    %v3443 = vadd.f32 %v2737, %v3429
    %v3450 = vcombine.low %v3438, %v3439
    %v3451 = vcombine.low %v3440, %v3441
    %v3452 = vcombine.low %v3442, %v3443
    %v3454 = vunpack.c.l.s4 1966171168
    %v3455 = vunpack.c.0.s8 %v3454
    %v3456 = vlaneseq
    %v3457 = vshrl.u32 %v3456, 7
    %v3458 = vsub.s32 %v3455, %v3457
    %v3459 = vrot.slane %v3450, %v3458
    %v3461 = vunpack.c.l.s4 1966171168
    %v3462 = vunpack.c.0.s8 %v3461
    %v3463 = vlaneseq
    %v3464 = vshrl.u32 %v3463, 7
    %v3465 = vsub.s32 %v3462, %v3464
    %v3466 = vrot.slane %v3451, %v3465
    %v3468 = vunpack.c.l.s4 1966171168
    %v3469 = vunpack.c.0.s8 %v3468
    %v3470 = vlaneseq
    %v3471 = vshrl.u32 %v3470, 7
    %v3472 = vsub.s32 %v3469, %v3471
    %v3473 = vrot.slane %v3452, %v3472
    %v3474 = vcombine.low %v3459, %v3466
    %v3476 = vunpack.c.l.s4 1966171168
    %v3477 = vunpack.c.0.s8 %v3476
    %v3478 = vlaneseq
    %v3479 = vshrl.u32 %v3478, 7
    %v3480 = vsub.s32 %v3477, %v3479
    %v3481 = vrot.slane %v3474, %v3480
    %v3483 = vunpack.c.l.s4 1966171168
    %v3484 = vunpack.c.0.s8 %v3483
    %v3485 = vlaneseq
    %v3486 = vshrl.u32 %v3485, 7
    %v3487 = vsub.s32 %v3484, %v3486
    %v3488 = vrot.slane %v3473, %v3487
    %v3489 = vcombine.low %v3481, %v3488
    %v3491 = vsel %vm896, %v3489, 0.0
    %3492 = vadd.xlane.f32.xlu0 %v3491
    %v3493 = vpop.xlane.xlu0 %3492
    %v3494 = vmul.f32 %v3493, %v900
    %v3496 = vlaneseq
    %v3497 = vshrl.u32 %v3496, 7
    %v3498 = vsub.s32 0, %v3497
    %v3499 = vrot.slane %v3494, %v3498
    %v3500 = vlaneseq
    %v3501 = vshrl.u32 %v3500, 7
    %v3502 = vsub.s32 1, %v3501
    %v3503 = vrot.slane %v3494, %v3502
    %v3504 = vlaneseq
    %v3505 = vshrl.u32 %v3504, 7
    %v3506 = vsub.s32 2, %v3505
    %v3507 = vrot.slane %v3494, %v3506
    %v3508 = vlaneseq
    %v3509 = vshrl.u32 %v3508, 7
    %v3510 = vsub.s32 3, %v3509
    %v3511 = vrot.slane %v3494, %v3510
    %v3512 = vlaneseq
    %v3513 = vshrl.u32 %v3512, 7
    %v3514 = vsub.s32 4, %v3513
    %v3515 = vrot.slane %v3494, %v3514
    %v3516 = vlaneseq
    %v3517 = vshrl.u32 %v3516, 7
    %v3518 = vsub.s32 5, %v3517
    %v3519 = vrot.slane %v3494, %v3518
    %v3526 = vsub.f32 %v3438, %v3499
    %v3527 = vsub.f32 %v3439, %v3503
    %v3528 = vsub.f32 %v3440, %v3507
    %v3529 = vsub.f32 %v3441, %v3511
    %v3530 = vsub.f32 %v3442, %v3515
    %v3531 = vsub.f32 %v3443, %v3519
    %v3532 = vmul.f32 %v3526, %v3526
    %v3533 = vmul.f32 %v3527, %v3527
    %v3534 = vmul.f32 %v3528, %v3528
    %v3535 = vmul.f32 %v3529, %v3529
    %v3536 = vmul.f32 %v3530, %v3530
    %v3537 = vmul.f32 %v3531, %v3531
    %v3544 = vcombine.low %v3532, %v3533
    %v3545 = vcombine.low %v3534, %v3535
    %v3546 = vcombine.low %v3536, %v3537
    %v3548 = vunpack.c.l.s4 1966171168
    %v3549 = vunpack.c.0.s8 %v3548
    %v3550 = vlaneseq
    %v3551 = vshrl.u32 %v3550, 7
    %v3552 = vsub.s32 %v3549, %v3551
    %v3553 = vrot.slane %v3544, %v3552
    %v3555 = vunpack.c.l.s4 1966171168
    %v3556 = vunpack.c.0.s8 %v3555
    %v3557 = vlaneseq
    %v3558 = vshrl.u32 %v3557, 7
    %v3559 = vsub.s32 %v3556, %v3558
    %v3560 = vrot.slane %v3545, %v3559
    %v3562 = vunpack.c.l.s4 1966171168
    %v3563 = vunpack.c.0.s8 %v3562
    %v3564 = vlaneseq
    %v3565 = vshrl.u32 %v3564, 7
    %v3566 = vsub.s32 %v3563, %v3565
    %v3567 = vrot.slane %v3546, %v3566
    %v3568 = vcombine.low %v3553, %v3560
    %v3570 = vunpack.c.l.s4 1966171168
    %v3571 = vunpack.c.0.s8 %v3570
    %v3572 = vlaneseq
    %v3573 = vshrl.u32 %v3572, 7
    %v3574 = vsub.s32 %v3571, %v3573
    %v3575 = vrot.slane %v3568, %v3574
    %v3577 = vunpack.c.l.s4 1966171168
    %v3578 = vunpack.c.0.s8 %v3577
    %v3579 = vlaneseq
    %v3580 = vshrl.u32 %v3579, 7
    %v3581 = vsub.s32 %v3578, %v3580
    %v3582 = vrot.slane %v3567, %v3581
    %v3583 = vcombine.low %v3575, %v3582
    %v3585 = vsel %vm896, %v3583, 0.0
    %3586 = vadd.xlane.f32.xlu0 %v3585
    %v3587 = vpop.xlane.xlu0 %3586
    %v3588 = vmul.f32 %v3587, %v900
    %v3589 = vadd.f32 %v3588, 1e-05
    %v3590 = vrsqrt.pop %v3589
    %v3592 = vlaneseq
    %v3593 = vshrl.u32 %v3592, 7
    %v3594 = vsub.s32 0, %v3593
    %v3595 = vrot.slane %v3590, %v3594
    %v3596 = vlaneseq
    %v3597 = vshrl.u32 %v3596, 7
    %v3598 = vsub.s32 1, %v3597
    %v3599 = vrot.slane %v3590, %v3598
    %v3600 = vlaneseq
    %v3601 = vshrl.u32 %v3600, 7
    %v3602 = vsub.s32 2, %v3601
    %v3603 = vrot.slane %v3590, %v3602
    %v3604 = vlaneseq
    %v3605 = vshrl.u32 %v3604, 7
    %v3606 = vsub.s32 3, %v3605
    %v3607 = vrot.slane %v3590, %v3606
    %v3608 = vlaneseq
    %v3609 = vshrl.u32 %v3608, 7
    %v3610 = vsub.s32 4, %v3609
    %v3611 = vrot.slane %v3590, %v3610
    %v3612 = vlaneseq
    %v3613 = vshrl.u32 %v3612, 7
    %v3614 = vsub.s32 5, %v3613
    %v3615 = vrot.slane %v3590, %v3614
    %v3622 = vmul.f32 %v3526, %v3595
    %v3623 = vmul.f32 %v3527, %v3599
    %v3624 = vmul.f32 %v3528, %v3603
    %v3625 = vmul.f32 %v3529, %v3607
    %v3626 = vmul.f32 %v3530, %v3611
    %v3627 = vmul.f32 %v3531, %v3615
    %v3628 = vlaneseq
    %v3629 = vshrl.u32 %v3628, 7
    %v3630 = vsub.s32 1, %v3629
    %v3631 = vrot.slane %v3318, %v3630
    %v3633 = vcombine.high %v3631, %v3631
    %v3635 = vunpack.c.l.s4 1966171168
    %v3636 = vunpack.c.0.s8 %v3635
    %v3637 = vlaneseq
    %v3638 = vshrl.u32 %v3637, 7
    %v3639 = vsub.s32 %v3636, %v3638
    %v3640 = vrot.slane %v3631, %v3639
    %v3642 = vunpack.c.l.s4 1966171168
    %v3643 = vunpack.c.0.s8 %v3642
    %v3644 = vlaneseq
    %v3645 = vshrl.u32 %v3644, 7
    %v3646 = vsub.s32 %v3643, %v3645
    %v3647 = vrot.slane %v3633, %v3646
    %v3648 = vcombine.high %v3640, %v3640
    %v3649 = vcombine.high %v3647, %v3647
    %v3651 = vunpack.c.l.s4 1966171168
    %v3652 = vunpack.c.0.s8 %v3651
    %v3653 = vlaneseq
    %v3654 = vshrl.u32 %v3653, 7
    %v3655 = vsub.s32 %v3652, %v3654
    %v3656 = vrot.slane %v3640, %v3655
    %v3658 = vunpack.c.l.s4 1966171168
    %v3659 = vunpack.c.0.s8 %v3658
    %v3660 = vlaneseq
    %v3661 = vshrl.u32 %v3660, 7
    %v3662 = vsub.s32 %v3659, %v3661
    %v3663 = vrot.slane %v3647, %v3662
    %v3665 = vunpack.c.l.s4 1966171168
    %v3666 = vunpack.c.0.s8 %v3665
    %v3667 = vlaneseq
    %v3668 = vshrl.u32 %v3667, 7
    %v3669 = vsub.s32 %v3666, %v3668
    %v3670 = vrot.slane %v3648, %v3669
    %v3672 = vunpack.c.l.s4 1966171168
    %v3673 = vunpack.c.0.s8 %v3672
    %v3674 = vlaneseq
    %v3675 = vshrl.u32 %v3674, 7
    %v3676 = vsub.s32 %v3673, %v3675
    %v3677 = vrot.slane %v3649, %v3676
    %v3678 = vcombine.high %v3656, %v3656
    %v3679 = vcombine.high %v3670, %v3670
    %v3686 = vmul.f32 %v3622, %v3656
    %v3687 = vmul.f32 %v3623, %v3670
    %v3688 = vmul.f32 %v3624, %v3678
    %v3689 = vmul.f32 %v3625, %v3679
    %v3690 = vmul.f32 %v3626, %v3663
    %v3691 = vmul.f32 %v3627, %v3677
    %v3692 = vlaneseq
    %v3693 = vshrl.u32 %v3692, 7
    %v3694 = vsub.s32 2, %v3693
    %v3695 = vrot.slane %v3318, %v3694
    %v3697 = vcombine.high %v3695, %v3695
    %v3699 = vunpack.c.l.s4 1966171168
    %v3700 = vunpack.c.0.s8 %v3699
    %v3701 = vlaneseq
    %v3702 = vshrl.u32 %v3701, 7
    %v3703 = vsub.s32 %v3700, %v3702
    %v3704 = vrot.slane %v3695, %v3703
    %v3706 = vunpack.c.l.s4 1966171168
    %v3707 = vunpack.c.0.s8 %v3706
    %v3708 = vlaneseq
    %v3709 = vshrl.u32 %v3708, 7
    %v3710 = vsub.s32 %v3707, %v3709
    %v3711 = vrot.slane %v3697, %v3710
    %v3712 = vcombine.high %v3704, %v3704
    %v3713 = vcombine.high %v3711, %v3711
    %v3715 = vunpack.c.l.s4 1966171168
    %v3716 = vunpack.c.0.s8 %v3715
    %v3717 = vlaneseq
    %v3718 = vshrl.u32 %v3717, 7
    %v3719 = vsub.s32 %v3716, %v3718
    %v3720 = vrot.slane %v3704, %v3719
    %v3722 = vunpack.c.l.s4 1966171168
    %v3723 = vunpack.c.0.s8 %v3722
    %v3724 = vlaneseq
    %v3725 = vshrl.u32 %v3724, 7
    %v3726 = vsub.s32 %v3723, %v3725
    %v3727 = vrot.slane %v3711, %v3726
    %v3729 = vunpack.c.l.s4 1966171168
    %v3730 = vunpack.c.0.s8 %v3729
    %v3731 = vlaneseq
    %v3732 = vshrl.u32 %v3731, 7
    %v3733 = vsub.s32 %v3730, %v3732
    %v3734 = vrot.slane %v3712, %v3733
    %v3736 = vunpack.c.l.s4 1966171168
    %v3737 = vunpack.c.0.s8 %v3736
    %v3738 = vlaneseq
    %v3739 = vshrl.u32 %v3738, 7
    %v3740 = vsub.s32 %v3737, %v3739
    %v3741 = vrot.slane %v3713, %v3740
    %v3742 = vcombine.high %v3720, %v3720
    %v3743 = vcombine.high %v3734, %v3734
    %v3750 = vadd.f32 %v3686, %v3720
    %v3751 = vadd.f32 %v3687, %v3734
    %v3752 = vadd.f32 %v3688, %v3742
    %v3753 = vadd.f32 %v3689, %v3743
    %v3754 = vadd.f32 %v3690, %v3727
    %v3755 = vadd.f32 %v3691, %v3741
    %v3762 = vcombine.low %v3750, %v3751
    %v3763 = vcombine.low %v3752, %v3753
    %v3764 = vcombine.low %v3754, %v3755
    %v3766 = vunpack.c.l.s4 1966171168
    %v3767 = vunpack.c.0.s8 %v3766
    %v3768 = vlaneseq
    %v3769 = vshrl.u32 %v3768, 7
    %v3770 = vsub.s32 %v3767, %v3769
    %v3771 = vrot.slane %v3762, %v3770
    %v3773 = vunpack.c.l.s4 1966171168
    %v3774 = vunpack.c.0.s8 %v3773
    %v3775 = vlaneseq
    %v3776 = vshrl.u32 %v3775, 7
    %v3777 = vsub.s32 %v3774, %v3776
    %v3778 = vrot.slane %v3763, %v3777
    %v3780 = vunpack.c.l.s4 1966171168
    %v3781 = vunpack.c.0.s8 %v3780
    %v3782 = vlaneseq
    %v3783 = vshrl.u32 %v3782, 7
    %v3784 = vsub.s32 %v3781, %v3783
    %v3785 = vrot.slane %v3764, %v3784
    %v3786 = vcombine.low %v3771, %v3778
    %v3788 = vunpack.c.l.s4 1966171168
    %v3789 = vunpack.c.0.s8 %v3788
    %v3790 = vlaneseq
    %v3791 = vshrl.u32 %v3790, 7
    %v3792 = vsub.s32 %v3789, %v3791
    %v3793 = vrot.slane %v3786, %v3792
    %v3795 = vunpack.c.l.s4 1966171168
    %v3796 = vunpack.c.0.s8 %v3795
    %v3797 = vlaneseq
    %v3798 = vshrl.u32 %v3797, 7
    %v3799 = vsub.s32 %v3796, %v3798
    %v3800 = vrot.slane %v3785, %v3799
    %v3801 = vcombine.low %v3793, %v3800
    %v3803 = vpack.c.bf16 %v3801, %v3801
    %s3804 = scalar_lea.vmem [#allocation5], 256
    %v3805 = vld [vmem:[%s3804] sm:$0xff]
    %v3806 = vld [vmem:[%s3804 + $0x8] sm:$0xff]
    %v3807 = vld [vmem:[%s3804 + $0x10] sm:$0xff]
    %v3808 = vld [vmem:[%s3804 + $0x18] sm:$0xff]
    %v3809 = vld [vmem:[%s3804 + $0x20] sm:$0xff]
    %v3810 = vld [vmem:[%s3804 + $0x28] sm:$0xff]
    %v3811 = vld [vmem:[%s3804 + $0x30] sm:$0xff]
    %v3812 = vld [vmem:[%s3804 + $0x38] sm:$0xff]
    %v3813 = vld [vmem:[%s3804 + $0x40] sm:$0xff]
    %v3814 = vld [vmem:[%s3804 + $0x48] sm:$0xff]
    %v3815 = vld [vmem:[%s3804 + $0x50] sm:$0xff]
    %v3816 = vld [vmem:[%s3804 + $0x58] sm:$0xff]
    %v3817 = vld [vmem:[%s3804 + $0x60] sm:$0xff]
    %v3818 = vld [vmem:[%s3804 + $0x68] sm:$0xff]
    %v3819 = vld [vmem:[%s3804 + $0x70] sm:$0xff]
    %v3820 = vld [vmem:[%s3804 + $0x78] sm:$0xff]
    %v3821 = vld [vmem:[%s3804 + $0x80] sm:$0xff]
    %v3822 = vld [vmem:[%s3804 + $0x88] sm:$0xff]
    %v3823 = vld [vmem:[%s3804 + $0x90] sm:$0xff]
    %v3824 = vld [vmem:[%s3804 + $0x98] sm:$0xff]
    %v3825 = vld [vmem:[%s3804 + $0xa0] sm:$0xff]
    %v3826 = vld [vmem:[%s3804 + $0xa8] sm:$0xff]
    %v3827 = vld [vmem:[%s3804 + $0xb0] sm:$0xff]
    %v3828 = vld [vmem:[%s3804 + $0xb8] sm:$0xff]
    %v3829 = vld [vmem:[%s3804 + $0xc0] sm:$0xff]
    %v3830 = vld [vmem:[%s3804 + $0xc8] sm:$0xff]
    %v3831 = vld [vmem:[%s3804 + $0xd0] sm:$0xff]
    %v3832 = vld [vmem:[%s3804 + $0xd8] sm:$0xff]
    %v3833 = vld [vmem:[%s3804 + $0xe0] sm:$0xff]
    %v3834 = vld [vmem:[%s3804 + $0xe8] sm:$0xff]
    %v3835 = vld [vmem:[%s3804 + $0xf0] sm:$0xff]
    %v3836 = vld [vmem:[%s3804 + $0xf8] sm:$0xff]
    %s3837 = scalar_lea.vmem [#allocation7], 16
    %v3838 = vld [vmem:[%s3837] sm:$0xff]
    %v3839 = vld [vmem:[%s3837 + $0x8] sm:$0xff]
    %v3842 = vlaneseq
    %v3843 = vshrl.u32 %v3842, 7
    %v3844 = vsub.s32 0, %v3843
    %v3845 = vrot.slane %v3838, %v3844
    %v3846 = vlaneseq
    %v3847 = vshrl.u32 %v3846, 7
    %v3848 = vsub.s32 1, %v3847
    %v3849 = vrot.slane %v3838, %v3848
    %v3850 = vlaneseq
    %v3851 = vshrl.u32 %v3850, 7
    %v3852 = vsub.s32 2, %v3851
    %v3853 = vrot.slane %v3838, %v3852
    %v3854 = vlaneseq
    %v3855 = vshrl.u32 %v3854, 7
    %v3856 = vsub.s32 3, %v3855
    %v3857 = vrot.slane %v3838, %v3856
    %v3858 = vlaneseq
    %v3859 = vshrl.u32 %v3858, 7
    %v3860 = vsub.s32 4, %v3859
    %v3861 = vrot.slane %v3838, %v3860
    %v3862 = vlaneseq
    %v3863 = vshrl.u32 %v3862, 7
    %v3864 = vsub.s32 5, %v3863
    %v3865 = vrot.slane %v3838, %v3864
    %v3866 = vlaneseq
    %v3867 = vshrl.u32 %v3866, 7
    %v3868 = vsub.s32 6, %v3867
    %v3869 = vrot.slane %v3838, %v3868
    %v3870 = vlaneseq
    %v3871 = vshrl.u32 %v3870, 7
    %v3872 = vsub.s32 7, %v3871
    %v3873 = vrot.slane %v3838, %v3872
    %v3874 = vlaneseq
    %v3875 = vshrl.u32 %v3874, 7
    %v3876 = vsub.s32 0, %v3875
    %v3877 = vrot.slane %v3839, %v3876
    %v3878 = vlaneseq
    %v3879 = vshrl.u32 %v3878, 7
    %v3880 = vsub.s32 1, %v3879
    %v3881 = vrot.slane %v3839, %v3880
    %v3882 = vlaneseq
    %v3883 = vshrl.u32 %v3882, 7
    %v3884 = vsub.s32 2, %v3883
    %v3885 = vrot.slane %v3839, %v3884
    %v3886 = vlaneseq
    %v3887 = vshrl.u32 %v3886, 7
    %v3888 = vsub.s32 3, %v3887
    %v3889 = vrot.slane %v3839, %v3888
    %v3890 = vlaneseq
    %v3891 = vshrl.u32 %v3890, 7
    %v3892 = vsub.s32 4, %v3891
    %v3893 = vrot.slane %v3839, %v3892
    %v3894 = vlaneseq
    %v3895 = vshrl.u32 %v3894, 7
    %v3896 = vsub.s32 5, %v3895
    %v3897 = vrot.slane %v3839, %v3896
    %v3898 = vlaneseq
    %v3899 = vshrl.u32 %v3898, 7
    %v3900 = vsub.s32 6, %v3899
    %v3901 = vrot.slane %v3839, %v3900
    %v3902 = vlaneseq
    %v3903 = vshrl.u32 %v3902, 7
    %v3904 = vsub.s32 7, %v3903
    %v3905 = vrot.slane %v3839, %v3904
    %v3954 = vunpack.c.l.b16 %v3805
    %v3955 = vunpack.c.h.b16 %v3805
    %v3956 = vunpack.c.l.b16 %v3806
    %v3957 = vunpack.c.h.b16 %v3806
    %v3958 = vunpack.c.l.b16 %v3807
    %v3959 = vunpack.c.h.b16 %v3807
    %v3960 = vunpack.c.l.b16 %v3808
    %v3961 = vunpack.c.h.b16 %v3808
    %v3962 = vunpack.c.l.b16 %v3809
    %v3963 = vunpack.c.h.b16 %v3809
    %v3964 = vunpack.c.l.b16 %v3810
    %v3965 = vunpack.c.h.b16 %v3810
    %v3966 = vunpack.c.l.b16 %v3811
    %v3967 = vunpack.c.h.b16 %v3811
    %v3968 = vunpack.c.l.b16 %v3812
    %v3969 = vunpack.c.h.b16 %v3812
    %v3970 = vunpack.c.l.b16 %v3813
    %v3971 = vunpack.c.h.b16 %v3813
    %v3972 = vunpack.c.l.b16 %v3814
    %v3973 = vunpack.c.h.b16 %v3814
    %v3974 = vunpack.c.l.b16 %v3815
    %v3975 = vunpack.c.h.b16 %v3815
    %v3976 = vunpack.c.l.b16 %v3816
    %v3977 = vunpack.c.h.b16 %v3816
    %v3978 = vunpack.c.l.b16 %v3817
    %v3979 = vunpack.c.h.b16 %v3817
    %v3980 = vunpack.c.l.b16 %v3818
    %v3981 = vunpack.c.h.b16 %v3818
    %v3982 = vunpack.c.l.b16 %v3819
    %v3983 = vunpack.c.h.b16 %v3819
    %v3984 = vunpack.c.l.b16 %v3820
    %v3985 = vunpack.c.h.b16 %v3820
    %v3986 = vunpack.c.l.b16 %v3821
    %v3987 = vunpack.c.h.b16 %v3821
    %v3988 = vunpack.c.l.b16 %v3822
    %v3989 = vunpack.c.h.b16 %v3822
    %v3990 = vunpack.c.l.b16 %v3823
    %v3991 = vunpack.c.h.b16 %v3823
    %v3992 = vunpack.c.l.b16 %v3824
    %v3993 = vunpack.c.h.b16 %v3824
    %v3994 = vunpack.c.l.b16 %v3825
    %v3995 = vunpack.c.h.b16 %v3825
    %v3996 = vunpack.c.l.b16 %v3826
    %v3997 = vunpack.c.h.b16 %v3826
    %v3998 = vunpack.c.l.b16 %v3827
    %v3999 = vunpack.c.h.b16 %v3827
    %v4000 = vunpack.c.l.b16 %v3828
    %v4001 = vunpack.c.h.b16 %v3828
    %v4002 = vunpack.c.l.b16 %v3829
    %v4003 = vunpack.c.h.b16 %v3829
    %v4004 = vunpack.c.l.b16 %v3830
    %v4005 = vunpack.c.h.b16 %v3830
    %v4006 = vunpack.c.l.b16 %v3831
    %v4007 = vunpack.c.h.b16 %v3831
    %v4008 = vunpack.c.l.b16 %v3832
    %v4009 = vunpack.c.h.b16 %v3832
    %v4010 = vunpack.c.l.b16 %v3833
    %v4011 = vunpack.c.h.b16 %v3833
    %v4012 = vunpack.c.l.b16 %v3834
    %v4013 = vunpack.c.h.b16 %v3834
    %v4014 = vunpack.c.l.b16 %v3835
    %v4015 = vunpack.c.h.b16 %v3835
    %v4016 = vunpack.c.l.b16 %v3836
    %v4017 = vunpack.c.h.b16 %v3836
    %v4018 = vpack.c.b16 %v3970, %v3954
    %v4019 = vpack.c.b16 %v3971, %v3955
    %v4020 = vpack.c.b16 %v3972, %v3956
    %v4021 = vpack.c.b16 %v3973, %v3957
    %v4022 = vpack.c.b16 %v3974, %v3958
    %v4023 = vpack.c.b16 %v3975, %v3959
    %v4024 = vpack.c.b16 %v3976, %v3960
    %v4025 = vpack.c.b16 %v3977, %v3961
    %v4026 = vpack.c.b16 %v3978, %v3962
    %v4027 = vpack.c.b16 %v3979, %v3963
    %v4028 = vpack.c.b16 %v3980, %v3964
    %v4029 = vpack.c.b16 %v3981, %v3965
    %v4030 = vpack.c.b16 %v3982, %v3966
    %v4031 = vpack.c.b16 %v3983, %v3967
    %v4032 = vpack.c.b16 %v3984, %v3968
    %v4033 = vpack.c.b16 %v3985, %v3969
    %v4034 = vpack.c.b16 %v4002, %v3986
    %v4035 = vpack.c.b16 %v4003, %v3987
    %v4036 = vpack.c.b16 %v4004, %v3988
    %v4037 = vpack.c.b16 %v4005, %v3989
    %v4038 = vpack.c.b16 %v4006, %v3990
    %v4039 = vpack.c.b16 %v4007, %v3991
    %v4040 = vpack.c.b16 %v4008, %v3992
    %v4041 = vpack.c.b16 %v4009, %v3993
    %v4042 = vpack.c.b16 %v4010, %v3994
    %v4043 = vpack.c.b16 %v4011, %v3995
    %v4044 = vpack.c.b16 %v4012, %v3996
    %v4045 = vpack.c.b16 %v4013, %v3997
    %v4046 = vpack.c.b16 %v4014, %v3998
    %v4047 = vpack.c.b16 %v4015, %v3999
    %v4048 = vpack.c.b16 %v4016, %v4000
    %v4049 = vpack.c.b16 %v4017, %v4001
    %v4083 = vsel %vm211, %v3803, 0
    %4085 = vmatprep.subr.bf16.mxu0 0
    %4086 = vmatpush1.bf16.msra.mxu0 0
    %4087 = vmatprep.subr.bf16.mxu0 0
    %4088 = vmatpush1.bf16.msra.mxu0 0
    %4089 = vmatprep.subr.bf16.mxu0 0
    %4090 = vmatpush1.bf16.msra.mxu0 0
    %4091 = vmatprep.subr.bf16.mxu0 0
    %4092 = vmatpush1.bf16.msra.mxu0 0
    %4093 = vmatprep.subr.bf16.mxu0 0
    %4094 = vmatpush1.bf16.msra.mxu0 0
    %4095 = vmatprep.subr.bf16.mxu0 0
    %4096 = vmatpush1.bf16.msra.mxu0 0
    %4097 = vmatprep.subr.bf16.mxu0 %v4035
    %4098 = vmatpush1.bf16.msra.mxu0 %v4034
    %4099 = vmatprep.subr.bf16.mxu0 %v4019
    %4100 = vmatpush1.bf16.msra.mxu0 %v4018
    %4101 = vmatprep.subr.bf16.mxu0 0
    %4102 = vmatpush2.bf16.msra.mxu0 0
    %4103 = vmatprep.subr.bf16.mxu0 0
    %4104 = vmatpush2.bf16.msra.mxu0 0
    %4105 = vmatprep.subr.bf16.mxu0 0
    %4106 = vmatpush2.bf16.msra.mxu0 0
    %4107 = vmatprep.subr.bf16.mxu0 0
    %4108 = vmatpush2.bf16.msra.mxu0 0
    %4109 = vmatprep.subr.bf16.mxu0 0
    %4110 = vmatpush2.bf16.msra.mxu0 0
    %4111 = vmatprep.subr.bf16.mxu0 0
    %4112 = vmatpush2.bf16.msra.mxu0 0
    %4113 = vmatprep.subr.bf16.mxu0 0
    %4114 = vmatpush2.bf16.msra.mxu0 0
    %4115 = vmatprep.subr.bf16.mxu0 0
    %4116 = vmatpush2.bf16.msra.mxu0 0
    %4117 = vmatprep.mubr.bf16.mxu0 0
    %4118 = vmatmul.mubr.bf16.gmra.mxu0 %v4083
    %v4119 = vpop.f32.mrf.mxu0
    %v4120 = vadd.f32 %v3845, %v4119
    %v4121 = vpop.f32.mrf.mxu0
    %v4122 = vadd.f32 %v3849, %v4121
    %v4123 = vpop.f32.mrf.mxu0
    %v4124 = vpop.f32.mrf.mxu0
    %4125 = vdwg.mxu0
    %4126 = vmatprep.subr.bf16.mxu0 0
    %4127 = vmatpush1.bf16.msra.mxu0 0
    %4128 = vmatprep.subr.bf16.mxu0 0
    %4129 = vmatpush1.bf16.msra.mxu0 0
    %4130 = vmatprep.subr.bf16.mxu0 0
    %4131 = vmatpush1.bf16.msra.mxu0 0
    %4132 = vmatprep.subr.bf16.mxu0 0
    %4133 = vmatpush1.bf16.msra.mxu0 0
    %4134 = vmatprep.subr.bf16.mxu0 0
    %4135 = vmatpush1.bf16.msra.mxu0 0
    %4136 = vmatprep.subr.bf16.mxu0 0
    %4137 = vmatpush1.bf16.msra.mxu0 0
    %4138 = vmatprep.subr.bf16.mxu0 %v4037
    %4139 = vmatpush1.bf16.msra.mxu0 %v4036
    %4140 = vmatprep.subr.bf16.mxu0 %v4021
    %4141 = vmatpush1.bf16.msra.mxu0 %v4020
    %4142 = vmatprep.subr.bf16.mxu0 0
    %4143 = vmatpush2.bf16.msra.mxu0 0
    %4144 = vmatprep.subr.bf16.mxu0 0
    %4145 = vmatpush2.bf16.msra.mxu0 0
    %4146 = vmatprep.subr.bf16.mxu0 0
    %4147 = vmatpush2.bf16.msra.mxu0 0
    %4148 = vmatprep.subr.bf16.mxu0 0
    %4149 = vmatpush2.bf16.msra.mxu0 0
    %4150 = vmatprep.subr.bf16.mxu0 0
    %4151 = vmatpush2.bf16.msra.mxu0 0
    %4152 = vmatprep.subr.bf16.mxu0 0
    %4153 = vmatpush2.bf16.msra.mxu0 0
    %4154 = vmatprep.subr.bf16.mxu0 0
    %4155 = vmatpush2.bf16.msra.mxu0 0
    %4156 = vmatprep.subr.bf16.mxu0 0
    %4157 = vmatpush2.bf16.msra.mxu0 0
    %4158 = vmatprep.mubr.bf16.mxu0 0
    %4159 = vmatmul.mubr.bf16.gmra.mxu0 %v4083
    %v4160 = vpop.f32.mrf.mxu0
    %v4161 = vadd.f32 %v3853, %v4160
    %v4162 = vpop.f32.mrf.mxu0
    %v4163 = vadd.f32 %v3857, %v4162
    %v4164 = vpop.f32.mrf.mxu0
    %v4165 = vpop.f32.mrf.mxu0
    %4166 = vdwg.mxu0
    %4167 = vmatprep.subr.bf16.mxu0 0
    %4168 = vmatpush1.bf16.msra.mxu0 0
    %4169 = vmatprep.subr.bf16.mxu0 0
    %4170 = vmatpush1.bf16.msra.mxu0 0
    %4171 = vmatprep.subr.bf16.mxu0 0
    %4172 = vmatpush1.bf16.msra.mxu0 0
    %4173 = vmatprep.subr.bf16.mxu0 0
    %4174 = vmatpush1.bf16.msra.mxu0 0
    %4175 = vmatprep.subr.bf16.mxu0 0
    %4176 = vmatpush1.bf16.msra.mxu0 0
    %4177 = vmatprep.subr.bf16.mxu0 0
    %4178 = vmatpush1.bf16.msra.mxu0 0
    %4179 = vmatprep.subr.bf16.mxu0 %v4039
    %4180 = vmatpush1.bf16.msra.mxu0 %v4038
    %4181 = vmatprep.subr.bf16.mxu0 %v4023
    %4182 = vmatpush1.bf16.msra.mxu0 %v4022
    %4183 = vmatprep.subr.bf16.mxu0 0
    %4184 = vmatpush2.bf16.msra.mxu0 0
    %4185 = vmatprep.subr.bf16.mxu0 0
    %4186 = vmatpush2.bf16.msra.mxu0 0
    %4187 = vmatprep.subr.bf16.mxu0 0
    %4188 = vmatpush2.bf16.msra.mxu0 0
    %4189 = vmatprep.subr.bf16.mxu0 0
    %4190 = vmatpush2.bf16.msra.mxu0 0
    %4191 = vmatprep.subr.bf16.mxu0 0
    %4192 = vmatpush2.bf16.msra.mxu0 0
    %4193 = vmatprep.subr.bf16.mxu0 0
    %4194 = vmatpush2.bf16.msra.mxu0 0
    %4195 = vmatprep.subr.bf16.mxu0 0
    %4196 = vmatpush2.bf16.msra.mxu0 0
    %4197 = vmatprep.subr.bf16.mxu0 0
    %4198 = vmatpush2.bf16.msra.mxu0 0
    %4199 = vmatprep.mubr.bf16.mxu0 0
    %4200 = vmatmul.mubr.bf16.gmra.mxu0 %v4083
    %v4201 = vpop.f32.mrf.mxu0
    %v4202 = vadd.f32 %v3861, %v4201
    %v4203 = vpop.f32.mrf.mxu0
    %v4204 = vadd.f32 %v3865, %v4203
    %v4205 = vpop.f32.mrf.mxu0
    %v4206 = vpop.f32.mrf.mxu0
    %4207 = vdwg.mxu0
    %4208 = vmatprep.subr.bf16.mxu0 0
    %4209 = vmatpush1.bf16.msra.mxu0 0
    %4210 = vmatprep.subr.bf16.mxu0 0
    %4211 = vmatpush1.bf16.msra.mxu0 0
    %4212 = vmatprep.subr.bf16.mxu0 0
    %4213 = vmatpush1.bf16.msra.mxu0 0
    %4214 = vmatprep.subr.bf16.mxu0 0
    %4215 = vmatpush1.bf16.msra.mxu0 0
    %4216 = vmatprep.subr.bf16.mxu0 0
    %4217 = vmatpush1.bf16.msra.mxu0 0
    %4218 = vmatprep.subr.bf16.mxu0 0
    %4219 = vmatpush1.bf16.msra.mxu0 0
    %4220 = vmatprep.subr.bf16.mxu0 %v4041
    %4221 = vmatpush1.bf16.msra.mxu0 %v4040
    %4222 = vmatprep.subr.bf16.mxu0 %v4025
    %4223 = vmatpush1.bf16.msra.mxu0 %v4024
    %4224 = vmatprep.subr.bf16.mxu0 0
    %4225 = vmatpush2.bf16.msra.mxu0 0
    %4226 = vmatprep.subr.bf16.mxu0 0
    %4227 = vmatpush2.bf16.msra.mxu0 0
    %4228 = vmatprep.subr.bf16.mxu0 0
    %4229 = vmatpush2.bf16.msra.mxu0 0
    %4230 = vmatprep.subr.bf16.mxu0 0
    %4231 = vmatpush2.bf16.msra.mxu0 0
    %4232 = vmatprep.subr.bf16.mxu0 0
    %4233 = vmatpush2.bf16.msra.mxu0 0
    %4234 = vmatprep.subr.bf16.mxu0 0
    %4235 = vmatpush2.bf16.msra.mxu0 0
    %4236 = vmatprep.subr.bf16.mxu0 0
    %4237 = vmatpush2.bf16.msra.mxu0 0
    %4238 = vmatprep.subr.bf16.mxu0 0
    %4239 = vmatpush2.bf16.msra.mxu0 0
    %4240 = vmatprep.mubr.bf16.mxu0 0
    %4241 = vmatmul.mubr.bf16.gmra.mxu0 %v4083
    %v4242 = vpop.f32.mrf.mxu0
    %v4243 = vadd.f32 %v3869, %v4242
    %v4244 = vpop.f32.mrf.mxu0
    %v4245 = vadd.f32 %v3873, %v4244
    %v4246 = vpop.f32.mrf.mxu0
    %v4247 = vpop.f32.mrf.mxu0
    %4248 = vdwg.mxu0
    %4249 = vmatprep.subr.bf16.mxu0 0
    %4250 = vmatpush1.bf16.msra.mxu0 0
    %4251 = vmatprep.subr.bf16.mxu0 0
    %4252 = vmatpush1.bf16.msra.mxu0 0
    %4253 = vmatprep.subr.bf16.mxu0 0
    %4254 = vmatpush1.bf16.msra.mxu0 0
    %4255 = vmatprep.subr.bf16.mxu0 0
    %4256 = vmatpush1.bf16.msra.mxu0 0
    %4257 = vmatprep.subr.bf16.mxu0 0
    %4258 = vmatpush1.bf16.msra.mxu0 0
    %4259 = vmatprep.subr.bf16.mxu0 0
    %4260 = vmatpush1.bf16.msra.mxu0 0
    %4261 = vmatprep.subr.bf16.mxu0 %v4043
    %4262 = vmatpush1.bf16.msra.mxu0 %v4042
    %4263 = vmatprep.subr.bf16.mxu0 %v4027
    %4264 = vmatpush1.bf16.msra.mxu0 %v4026
    %4265 = vmatprep.subr.bf16.mxu0 0
    %4266 = vmatpush2.bf16.msra.mxu0 0
    %4267 = vmatprep.subr.bf16.mxu0 0
    %4268 = vmatpush2.bf16.msra.mxu0 0
    %4269 = vmatprep.subr.bf16.mxu0 0
    %4270 = vmatpush2.bf16.msra.mxu0 0
    %4271 = vmatprep.subr.bf16.mxu0 0
    %4272 = vmatpush2.bf16.msra.mxu0 0
    %4273 = vmatprep.subr.bf16.mxu0 0
    %4274 = vmatpush2.bf16.msra.mxu0 0
    %4275 = vmatprep.subr.bf16.mxu0 0
    %4276 = vmatpush2.bf16.msra.mxu0 0
    %4277 = vmatprep.subr.bf16.mxu0 0
    %4278 = vmatpush2.bf16.msra.mxu0 0
    %4279 = vmatprep.subr.bf16.mxu0 0
    %4280 = vmatpush2.bf16.msra.mxu0 0
    %4281 = vmatprep.mubr.bf16.mxu0 0
    %4282 = vmatmul.mubr.bf16.gmra.mxu0 %v4083
    %v4283 = vpop.f32.mrf.mxu0
    %v4284 = vadd.f32 %v3877, %v4283
    %v4285 = vpop.f32.mrf.mxu0
    %v4286 = vadd.f32 %v3881, %v4285
    %v4287 = vpop.f32.mrf.mxu0
    %v4288 = vpop.f32.mrf.mxu0
    %4289 = vdwg.mxu0
    %4290 = vmatprep.subr.bf16.mxu0 0
    %4291 = vmatpush1.bf16.msra.mxu0 0
    %4292 = vmatprep.subr.bf16.mxu0 0
    %4293 = vmatpush1.bf16.msra.mxu0 0
    %4294 = vmatprep.subr.bf16.mxu0 0
    %4295 = vmatpush1.bf16.msra.mxu0 0
    %4296 = vmatprep.subr.bf16.mxu0 0
    %4297 = vmatpush1.bf16.msra.mxu0 0
    %4298 = vmatprep.subr.bf16.mxu0 0
    %4299 = vmatpush1.bf16.msra.mxu0 0
    %4300 = vmatprep.subr.bf16.mxu0 0
    %4301 = vmatpush1.bf16.msra.mxu0 0
    %4302 = vmatprep.subr.bf16.mxu0 %v4045
    %4303 = vmatpush1.bf16.msra.mxu0 %v4044
    %4304 = vmatprep.subr.bf16.mxu0 %v4029
    %4305 = vmatpush1.bf16.msra.mxu0 %v4028
    %4306 = vmatprep.subr.bf16.mxu0 0
    %4307 = vmatpush2.bf16.msra.mxu0 0
    %4308 = vmatprep.subr.bf16.mxu0 0
    %4309 = vmatpush2.bf16.msra.mxu0 0
    %4310 = vmatprep.subr.bf16.mxu0 0
    %4311 = vmatpush2.bf16.msra.mxu0 0
    %4312 = vmatprep.subr.bf16.mxu0 0
    %4313 = vmatpush2.bf16.msra.mxu0 0
    %4314 = vmatprep.subr.bf16.mxu0 0
    %4315 = vmatpush2.bf16.msra.mxu0 0
    %4316 = vmatprep.subr.bf16.mxu0 0
    %4317 = vmatpush2.bf16.msra.mxu0 0
    %4318 = vmatprep.subr.bf16.mxu0 0
    %4319 = vmatpush2.bf16.msra.mxu0 0
    %4320 = vmatprep.subr.bf16.mxu0 0
    %4321 = vmatpush2.bf16.msra.mxu0 0
    %4322 = vmatprep.mubr.bf16.mxu0 0
    %4323 = vmatmul.mubr.bf16.gmra.mxu0 %v4083
    %v4324 = vpop.f32.mrf.mxu0
    %v4325 = vadd.f32 %v3885, %v4324
    %v4326 = vpop.f32.mrf.mxu0
    %v4327 = vadd.f32 %v3889, %v4326
    %v4328 = vpop.f32.mrf.mxu0
    %v4329 = vpop.f32.mrf.mxu0
    %4330 = vdwg.mxu0
    %4331 = vmatprep.subr.bf16.mxu0 0
    %4332 = vmatpush1.bf16.msra.mxu0 0
    %4333 = vmatprep.subr.bf16.mxu0 0
    %4334 = vmatpush1.bf16.msra.mxu0 0
    %4335 = vmatprep.subr.bf16.mxu0 0
    %4336 = vmatpush1.bf16.msra.mxu0 0
    %4337 = vmatprep.subr.bf16.mxu0 0
    %4338 = vmatpush1.bf16.msra.mxu0 0
    %4339 = vmatprep.subr.bf16.mxu0 0
    %4340 = vmatpush1.bf16.msra.mxu0 0
    %4341 = vmatprep.subr.bf16.mxu0 0
    %4342 = vmatpush1.bf16.msra.mxu0 0
    %4343 = vmatprep.subr.bf16.mxu0 %v4047
    %4344 = vmatpush1.bf16.msra.mxu0 %v4046
    %4345 = vmatprep.subr.bf16.mxu0 %v4031
    %4346 = vmatpush1.bf16.msra.mxu0 %v4030
    %4347 = vmatprep.subr.bf16.mxu0 0
    %4348 = vmatpush2.bf16.msra.mxu0 0
    %4349 = vmatprep.subr.bf16.mxu0 0
    %4350 = vmatpush2.bf16.msra.mxu0 0
    %4351 = vmatprep.subr.bf16.mxu0 0
    %4352 = vmatpush2.bf16.msra.mxu0 0
    %4353 = vmatprep.subr.bf16.mxu0 0
    %4354 = vmatpush2.bf16.msra.mxu0 0
    %4355 = vmatprep.subr.bf16.mxu0 0
    %4356 = vmatpush2.bf16.msra.mxu0 0
    %4357 = vmatprep.subr.bf16.mxu0 0
    %4358 = vmatpush2.bf16.msra.mxu0 0
    %4359 = vmatprep.subr.bf16.mxu0 0
    %4360 = vmatpush2.bf16.msra.mxu0 0
    %4361 = vmatprep.subr.bf16.mxu0 0
    %4362 = vmatpush2.bf16.msra.mxu0 0
    %4363 = vmatprep.mubr.bf16.mxu0 0
    %4364 = vmatmul.mubr.bf16.gmra.mxu0 %v4083
    %v4365 = vpop.f32.mrf.mxu0
    %v4366 = vadd.f32 %v3893, %v4365
    %v4367 = vpop.f32.mrf.mxu0
    %v4368 = vadd.f32 %v3897, %v4367
    %v4369 = vpop.f32.mrf.mxu0
    %v4370 = vpop.f32.mrf.mxu0
    %4371 = vdwg.mxu0
    %4372 = vmatprep.subr.bf16.mxu0 0
    %4373 = vmatpush1.bf16.msra.mxu0 0
    %4374 = vmatprep.subr.bf16.mxu0 0
    %4375 = vmatpush1.bf16.msra.mxu0 0
    %4376 = vmatprep.subr.bf16.mxu0 0
    %4377 = vmatpush1.bf16.msra.mxu0 0
    %4378 = vmatprep.subr.bf16.mxu0 0
    %4379 = vmatpush1.bf16.msra.mxu0 0
    %4380 = vmatprep.subr.bf16.mxu0 0
    %4381 = vmatpush1.bf16.msra.mxu0 0
    %4382 = vmatprep.subr.bf16.mxu0 0
    %4383 = vmatpush1.bf16.msra.mxu0 0
    %4384 = vmatprep.subr.bf16.mxu0 %v4049
    %4385 = vmatpush1.bf16.msra.mxu0 %v4048
    %4386 = vmatprep.subr.bf16.mxu0 %v4033
    %4387 = vmatpush1.bf16.msra.mxu0 %v4032
    %4388 = vmatprep.subr.bf16.mxu0 0
    %4389 = vmatpush2.bf16.msra.mxu0 0
    %4390 = vmatprep.subr.bf16.mxu0 0
    %4391 = vmatpush2.bf16.msra.mxu0 0
    %4392 = vmatprep.subr.bf16.mxu0 0
    %4393 = vmatpush2.bf16.msra.mxu0 0
    %4394 = vmatprep.subr.bf16.mxu0 0
    %4395 = vmatpush2.bf16.msra.mxu0 0
    %4396 = vmatprep.subr.bf16.mxu0 0
    %4397 = vmatpush2.bf16.msra.mxu0 0
    %4398 = vmatprep.subr.bf16.mxu0 0
    %4399 = vmatpush2.bf16.msra.mxu0 0
    %4400 = vmatprep.subr.bf16.mxu0 0
    %4401 = vmatpush2.bf16.msra.mxu0 0
    %4402 = vmatprep.subr.bf16.mxu0 0
    %4403 = vmatpush2.bf16.msra.mxu0 0
    %4404 = vmatprep.mubr.bf16.mxu0 0
    %4405 = vmatmul.mubr.bf16.gmra.mxu0 %v4083
    %v4406 = vpop.f32.mrf.mxu0
    %v4407 = vadd.f32 %v3901, %v4406
    %v4408 = vpop.f32.mrf.mxu0
    %v4409 = vadd.f32 %v3905, %v4408
    %v4410 = vpop.f32.mrf.mxu0
    %v4411 = vpop.f32.mrf.mxu0
    %4412 = vdwg.mxu0
    %v4413 = vmax.f32 %v4120, 0.0
    %v4414 = vmax.f32 %v4122, 0.0
    %v4415 = vmax.f32 %v4161, 0.0
    %v4416 = vmax.f32 %v4163, 0.0
    %v4417 = vmax.f32 %v4202, 0.0
    %v4418 = vmax.f32 %v4204, 0.0
    %v4419 = vmax.f32 %v4243, 0.0
    %v4420 = vmax.f32 %v4245, 0.0
    %v4421 = vmax.f32 %v4284, 0.0
    %v4422 = vmax.f32 %v4286, 0.0
    %v4423 = vmax.f32 %v4325, 0.0
    %v4424 = vmax.f32 %v4327, 0.0
    %v4425 = vmax.f32 %v4366, 0.0
    %v4426 = vmax.f32 %v4368, 0.0
    %v4427 = vmax.f32 %v4407, 0.0
    %v4428 = vmax.f32 %v4409, 0.0
    %v4429 = vpack.c.bf16 %v4413, %v4413
    %v4430 = vpack.c.bf16 %v4414, %v4414
    %v4431 = vpack.c.bf16 %v4415, %v4415
    %v4432 = vpack.c.bf16 %v4416, %v4416
    %v4433 = vpack.c.bf16 %v4417, %v4417
    %v4434 = vpack.c.bf16 %v4418, %v4418
    %v4435 = vpack.c.bf16 %v4419, %v4419
    %v4436 = vpack.c.bf16 %v4420, %v4420
    %v4437 = vpack.c.bf16 %v4421, %v4421
    %v4438 = vpack.c.bf16 %v4422, %v4422
    %v4439 = vpack.c.bf16 %v4423, %v4423
    %v4440 = vpack.c.bf16 %v4424, %v4424
    %v4441 = vpack.c.bf16 %v4425, %v4425
    %v4442 = vpack.c.bf16 %v4426, %v4426
    %v4443 = vpack.c.bf16 %v4427, %v4427
    %v4444 = vpack.c.bf16 %v4428, %v4428
    %s4445 = scalar_lea.vmem [#allocation8], 256
    %v4446 = vld [vmem:[%s4445] sm:$0xff]
    %v4447 = vld [vmem:[%s4445 + $0x8] sm:$0xff]
    %v4448 = vld [vmem:[%s4445 + $0x10] sm:$0xff]
    %v4449 = vld [vmem:[%s4445 + $0x18] sm:$0xff]
    %v4450 = vld [vmem:[%s4445 + $0x20] sm:$0xff]
    %v4451 = vld [vmem:[%s4445 + $0x28] sm:$0xff]
    %v4452 = vld [vmem:[%s4445 + $0x30] sm:$0xff]
    %v4453 = vld [vmem:[%s4445 + $0x38] sm:$0xff]
    %v4454 = vld [vmem:[%s4445 + $0x40] sm:$0xff]
    %v4455 = vld [vmem:[%s4445 + $0x48] sm:$0xff]
    %v4456 = vld [vmem:[%s4445 + $0x50] sm:$0xff]
    %v4457 = vld [vmem:[%s4445 + $0x58] sm:$0xff]
    %v4458 = vld [vmem:[%s4445 + $0x60] sm:$0xff]
    %v4459 = vld [vmem:[%s4445 + $0x68] sm:$0xff]
    %v4460 = vld [vmem:[%s4445 + $0x70] sm:$0xff]
    %v4461 = vld [vmem:[%s4445 + $0x78] sm:$0xff]
    %v4462 = vld [vmem:[%s4445 + $0x80] sm:$0xff]
    %v4463 = vld [vmem:[%s4445 + $0x88] sm:$0xff]
    %v4464 = vld [vmem:[%s4445 + $0x90] sm:$0xff]
    %v4465 = vld [vmem:[%s4445 + $0x98] sm:$0xff]
    %v4466 = vld [vmem:[%s4445 + $0xa0] sm:$0xff]
    %v4467 = vld [vmem:[%s4445 + $0xa8] sm:$0xff]
    %v4468 = vld [vmem:[%s4445 + $0xb0] sm:$0xff]
    %v4469 = vld [vmem:[%s4445 + $0xb8] sm:$0xff]
    %v4470 = vld [vmem:[%s4445 + $0xc0] sm:$0xff]
    %v4471 = vld [vmem:[%s4445 + $0xc8] sm:$0xff]
    %v4472 = vld [vmem:[%s4445 + $0xd0] sm:$0xff]
    %v4473 = vld [vmem:[%s4445 + $0xd8] sm:$0xff]
    %v4474 = vld [vmem:[%s4445 + $0xe0] sm:$0xff]
    %v4475 = vld [vmem:[%s4445 + $0xe8] sm:$0xff]
    %v4476 = vld [vmem:[%s4445 + $0xf0] sm:$0xff]
    %v4477 = vld [vmem:[%s4445 + $0xf8] sm:$0xff]
    %v4478 = vlaneseq
    %v4479 = vshrl.u32 %v4478, 7
    %v4480 = vsub.s32 3, %v4479
    %v4481 = vrot.slane %v3318, %v4480
    %v4514 = vunpack.c.l.b16 %v4446
    %v4515 = vunpack.c.h.b16 %v4446
    %v4516 = vunpack.c.l.b16 %v4447
    %v4517 = vunpack.c.h.b16 %v4447
    %v4518 = vunpack.c.l.b16 %v4448
    %v4519 = vunpack.c.h.b16 %v4448
    %v4520 = vunpack.c.l.b16 %v4449
    %v4521 = vunpack.c.h.b16 %v4449
    %v4522 = vunpack.c.l.b16 %v4450
    %v4523 = vunpack.c.h.b16 %v4450
    %v4524 = vunpack.c.l.b16 %v4451
    %v4525 = vunpack.c.h.b16 %v4451
    %v4526 = vunpack.c.l.b16 %v4452
    %v4527 = vunpack.c.h.b16 %v4452
    %v4528 = vunpack.c.l.b16 %v4453
    %v4529 = vunpack.c.h.b16 %v4453
    %v4530 = vunpack.c.l.b16 %v4454
    %v4531 = vunpack.c.h.b16 %v4454
    %v4532 = vunpack.c.l.b16 %v4455
    %v4533 = vunpack.c.h.b16 %v4455
    %v4534 = vunpack.c.l.b16 %v4456
    %v4535 = vunpack.c.h.b16 %v4456
    %v4536 = vunpack.c.l.b16 %v4457
    %v4537 = vunpack.c.h.b16 %v4457
    %v4538 = vunpack.c.l.b16 %v4458
    %v4539 = vunpack.c.h.b16 %v4458
    %v4540 = vunpack.c.l.b16 %v4459
    %v4541 = vunpack.c.h.b16 %v4459
    %v4542 = vunpack.c.l.b16 %v4460
    %v4543 = vunpack.c.h.b16 %v4460
    %v4544 = vunpack.c.l.b16 %v4461
    %v4545 = vunpack.c.h.b16 %v4461
    %v4546 = vunpack.c.l.b16 %v4462
    %v4547 = vunpack.c.h.b16 %v4462
    %v4548 = vunpack.c.l.b16 %v4463
    %v4549 = vunpack.c.h.b16 %v4463
    %v4550 = vunpack.c.l.b16 %v4464
    %v4551 = vunpack.c.h.b16 %v4464
    %v4552 = vunpack.c.l.b16 %v4465
    %v4553 = vunpack.c.h.b16 %v4465
    %v4554 = vunpack.c.l.b16 %v4466
    %v4555 = vunpack.c.h.b16 %v4466
    %v4556 = vunpack.c.l.b16 %v4467
    %v4557 = vunpack.c.h.b16 %v4467
    %v4558 = vunpack.c.l.b16 %v4468
    %v4559 = vunpack.c.h.b16 %v4468
    %v4560 = vunpack.c.l.b16 %v4469
    %v4561 = vunpack.c.h.b16 %v4469
    %v4562 = vunpack.c.l.b16 %v4470
    %v4563 = vunpack.c.h.b16 %v4470
    %v4564 = vunpack.c.l.b16 %v4471
    %v4565 = vunpack.c.h.b16 %v4471
    %v4566 = vunpack.c.l.b16 %v4472
    %v4567 = vunpack.c.h.b16 %v4472
    %v4568 = vunpack.c.l.b16 %v4473
    %v4569 = vunpack.c.h.b16 %v4473
    %v4570 = vunpack.c.l.b16 %v4474
    %v4571 = vunpack.c.h.b16 %v4474
    %v4572 = vunpack.c.l.b16 %v4475
    %v4573 = vunpack.c.h.b16 %v4475
    %v4574 = vunpack.c.l.b16 %v4476
    %v4575 = vunpack.c.h.b16 %v4476
    %v4576 = vunpack.c.l.b16 %v4477
    %v4577 = vunpack.c.h.b16 %v4477
    %v4578 = vpack.c.b16 %v4530, %v4514
    %v4579 = vpack.c.b16 %v4531, %v4515
    %v4580 = vpack.c.b16 %v4532, %v4516
    %v4581 = vpack.c.b16 %v4533, %v4517
    %v4582 = vpack.c.b16 %v4534, %v4518
    %v4583 = vpack.c.b16 %v4535, %v4519
    %v4584 = vpack.c.b16 %v4536, %v4520
    %v4585 = vpack.c.b16 %v4537, %v4521
    %v4586 = vpack.c.b16 %v4538, %v4522
    %v4587 = vpack.c.b16 %v4539, %v4523
    %v4588 = vpack.c.b16 %v4540, %v4524
    %v4589 = vpack.c.b16 %v4541, %v4525
    %v4590 = vpack.c.b16 %v4542, %v4526
    %v4591 = vpack.c.b16 %v4543, %v4527
    %v4592 = vpack.c.b16 %v4544, %v4528
    %v4593 = vpack.c.b16 %v4545, %v4529
    %v4594 = vpack.c.b16 %v4562, %v4546
    %v4595 = vpack.c.b16 %v4563, %v4547
    %v4596 = vpack.c.b16 %v4564, %v4548
    %v4597 = vpack.c.b16 %v4565, %v4549
    %v4598 = vpack.c.b16 %v4566, %v4550
    %v4599 = vpack.c.b16 %v4567, %v4551
    %v4600 = vpack.c.b16 %v4568, %v4552
    %v4601 = vpack.c.b16 %v4569, %v4553
    %v4602 = vpack.c.b16 %v4570, %v4554
    %v4603 = vpack.c.b16 %v4571, %v4555
    %v4604 = vpack.c.b16 %v4572, %v4556
    %v4605 = vpack.c.b16 %v4573, %v4557
    %v4606 = vpack.c.b16 %v4574, %v4558
    %v4607 = vpack.c.b16 %v4575, %v4559
    %v4608 = vpack.c.b16 %v4576, %v4560
    %v4609 = vpack.c.b16 %v4577, %v4561
    %4642 = vmatprep.subr.bf16.mxu0 0
    %4643 = vmatpush1.bf16.xpose.msra.mxu0 0
    %4644 = vmatprep.subr.bf16.mxu0 0
    %4645 = vmatpush1.bf16.xpose.msra.mxu0 0
    %4646 = vmatprep.subr.bf16.mxu0 0
    %4647 = vmatpush1.bf16.xpose.msra.mxu0 0
    %4648 = vmatprep.subr.bf16.mxu0 0
    %4649 = vmatpush1.bf16.xpose.msra.mxu0 0
    %4650 = vmatprep.subr.bf16.mxu0 0
    %4651 = vmatpush1.bf16.xpose.msra.mxu0 0
    %4652 = vmatprep.subr.bf16.mxu0 0
    %4653 = vmatpush1.bf16.xpose.msra.mxu0 0
    %4654 = vmatprep.subr.bf16.mxu0 %v4595
    %4655 = vmatpush1.bf16.xpose.msra.mxu0 %v4594
    %4656 = vmatprep.subr.bf16.mxu0 %v4579
    %4657 = vmatpush1.bf16.xpose.msra.mxu0 %v4578
    %4658 = vmatprep.subr.bf16.mxu0 0
    %4659 = vmatpush2.bf16.xpose.msra.mxu0 0
    %4660 = vmatprep.subr.bf16.mxu0 0
    %4661 = vmatpush2.bf16.xpose.msra.mxu0 0
    %4662 = vmatprep.subr.bf16.mxu0 0
    %4663 = vmatpush2.bf16.xpose.msra.mxu0 0
    %4664 = vmatprep.subr.bf16.mxu0 0
    %4665 = vmatpush2.bf16.xpose.msra.mxu0 0
    %4666 = vmatprep.subr.bf16.mxu0 0
    %4667 = vmatpush2.bf16.xpose.msra.mxu0 0
    %4668 = vmatprep.subr.bf16.mxu0 0
    %4669 = vmatpush2.bf16.xpose.msra.mxu0 0
    %4670 = vmatprep.subr.bf16.mxu0 0
    %4671 = vmatpush2.bf16.xpose.msra.mxu0 0
    %4672 = vmatprep.subr.bf16.mxu0 0
    %4673 = vmatpush2.bf16.xpose.msra.mxu0 0
    %4674 = vmatprep.mubr.bf16.mxu0 %v4430
    %4675 = vmatmul.mubr.bf16.gmra.mxu0 %v4429
    %v4676 = vpop.f32.mrf.mxu0
    %v4677 = vadd.f32 %v4481, %v4676
    %v4678 = vpop.f32.mrf.mxu0
    %v4679 = vpop.f32.mrf.mxu0
    %v4680 = vpop.f32.mrf.mxu0
    %4681 = vdwg.mxu0
    %4682 = vmatprep.subr.bf16.mxu0 0
    %4683 = vmatpush1.bf16.xpose.msra.mxu0 0
    %4684 = vmatprep.subr.bf16.mxu0 0
    %4685 = vmatpush1.bf16.xpose.msra.mxu0 0
    %4686 = vmatprep.subr.bf16.mxu0 0
    %4687 = vmatpush1.bf16.xpose.msra.mxu0 0
    %4688 = vmatprep.subr.bf16.mxu0 0
    %4689 = vmatpush1.bf16.xpose.msra.mxu0 0
    %4690 = vmatprep.subr.bf16.mxu0 0
    %4691 = vmatpush1.bf16.xpose.msra.mxu0 0
    %4692 = vmatprep.subr.bf16.mxu0 0
    %4693 = vmatpush1.bf16.xpose.msra.mxu0 0
    %4694 = vmatprep.subr.bf16.mxu0 %v4597
    %4695 = vmatpush1.bf16.xpose.msra.mxu0 %v4596
    %4696 = vmatprep.subr.bf16.mxu0 %v4581
    %4697 = vmatpush1.bf16.xpose.msra.mxu0 %v4580
    %4698 = vmatprep.subr.bf16.mxu0 0
    %4699 = vmatpush2.bf16.xpose.msra.mxu0 0
    %4700 = vmatprep.subr.bf16.mxu0 0
    %4701 = vmatpush2.bf16.xpose.msra.mxu0 0
    %4702 = vmatprep.subr.bf16.mxu0 0
    %4703 = vmatpush2.bf16.xpose.msra.mxu0 0
    %4704 = vmatprep.subr.bf16.mxu0 0
    %4705 = vmatpush2.bf16.xpose.msra.mxu0 0
    %4706 = vmatprep.subr.bf16.mxu0 0
    %4707 = vmatpush2.bf16.xpose.msra.mxu0 0
    %4708 = vmatprep.subr.bf16.mxu0 0
    %4709 = vmatpush2.bf16.xpose.msra.mxu0 0
    %4710 = vmatprep.subr.bf16.mxu0 0
    %4711 = vmatpush2.bf16.xpose.msra.mxu0 0
    %4712 = vmatprep.subr.bf16.mxu0 0
    %4713 = vmatpush2.bf16.xpose.msra.mxu0 0
    %4714 = vmatprep.mubr.bf16.mxu0 %v4432
    %4715 = vmatmul.mubr.bf16.gmra.mxu0 %v4431
    %v4716 = vpop.f32.mrf.mxu0
    %v4717 = vadd.f32 %v4677, %v4716
    %v4718 = vpop.f32.mrf.mxu0
    %v4719 = vpop.f32.mrf.mxu0
    %v4720 = vpop.f32.mrf.mxu0
    %4721 = vdwg.mxu0
    %4722 = vmatprep.subr.bf16.mxu0 0
    %4723 = vmatpush1.bf16.xpose.msra.mxu0 0
    %4724 = vmatprep.subr.bf16.mxu0 0
    %4725 = vmatpush1.bf16.xpose.msra.mxu0 0
    %4726 = vmatprep.subr.bf16.mxu0 0
    %4727 = vmatpush1.bf16.xpose.msra.mxu0 0
    %4728 = vmatprep.subr.bf16.mxu0 0
    %4729 = vmatpush1.bf16.xpose.msra.mxu0 0
    %4730 = vmatprep.subr.bf16.mxu0 0
    %4731 = vmatpush1.bf16.xpose.msra.mxu0 0
    %4732 = vmatprep.subr.bf16.mxu0 0
    %4733 = vmatpush1.bf16.xpose.msra.mxu0 0
    %4734 = vmatprep.subr.bf16.mxu0 %v4599
    %4735 = vmatpush1.bf16.xpose.msra.mxu0 %v4598
    %4736 = vmatprep.subr.bf16.mxu0 %v4583
    %4737 = vmatpush1.bf16.xpose.msra.mxu0 %v4582
    %4738 = vmatprep.subr.bf16.mxu0 0
    %4739 = vmatpush2.bf16.xpose.msra.mxu0 0
    %4740 = vmatprep.subr.bf16.mxu0 0
    %4741 = vmatpush2.bf16.xpose.msra.mxu0 0
    %4742 = vmatprep.subr.bf16.mxu0 0
    %4743 = vmatpush2.bf16.xpose.msra.mxu0 0
    %4744 = vmatprep.subr.bf16.mxu0 0
    %4745 = vmatpush2.bf16.xpose.msra.mxu0 0
    %4746 = vmatprep.subr.bf16.mxu0 0
    %4747 = vmatpush2.bf16.xpose.msra.mxu0 0
    %4748 = vmatprep.subr.bf16.mxu0 0
    %4749 = vmatpush2.bf16.xpose.msra.mxu0 0
    %4750 = vmatprep.subr.bf16.mxu0 0
    %4751 = vmatpush2.bf16.xpose.msra.mxu0 0
    %4752 = vmatprep.subr.bf16.mxu0 0
    %4753 = vmatpush2.bf16.xpose.msra.mxu0 0
    %4754 = vmatprep.mubr.bf16.mxu0 %v4434
    %4755 = vmatmul.mubr.bf16.gmra.mxu0 %v4433
    %v4756 = vpop.f32.mrf.mxu0
    %v4757 = vadd.f32 %v4717, %v4756
    %v4758 = vpop.f32.mrf.mxu0
    %v4759 = vpop.f32.mrf.mxu0
    %v4760 = vpop.f32.mrf.mxu0
    %4761 = vdwg.mxu0
    %4762 = vmatprep.subr.bf16.mxu0 0
    %4763 = vmatpush1.bf16.xpose.msra.mxu0 0
    %4764 = vmatprep.subr.bf16.mxu0 0
    %4765 = vmatpush1.bf16.xpose.msra.mxu0 0
    %4766 = vmatprep.subr.bf16.mxu0 0
    %4767 = vmatpush1.bf16.xpose.msra.mxu0 0
    %4768 = vmatprep.subr.bf16.mxu0 0
    %4769 = vmatpush1.bf16.xpose.msra.mxu0 0
    %4770 = vmatprep.subr.bf16.mxu0 0
    %4771 = vmatpush1.bf16.xpose.msra.mxu0 0
    %4772 = vmatprep.subr.bf16.mxu0 0
    %4773 = vmatpush1.bf16.xpose.msra.mxu0 0
    %4774 = vmatprep.subr.bf16.mxu0 %v4601
    %4775 = vmatpush1.bf16.xpose.msra.mxu0 %v4600
    %4776 = vmatprep.subr.bf16.mxu0 %v4585
    %4777 = vmatpush1.bf16.xpose.msra.mxu0 %v4584
    %4778 = vmatprep.subr.bf16.mxu0 0
    %4779 = vmatpush2.bf16.xpose.msra.mxu0 0
    %4780 = vmatprep.subr.bf16.mxu0 0
    %4781 = vmatpush2.bf16.xpose.msra.mxu0 0
    %4782 = vmatprep.subr.bf16.mxu0 0
    %4783 = vmatpush2.bf16.xpose.msra.mxu0 0
    %4784 = vmatprep.subr.bf16.mxu0 0
    %4785 = vmatpush2.bf16.xpose.msra.mxu0 0
    %4786 = vmatprep.subr.bf16.mxu0 0
    %4787 = vmatpush2.bf16.xpose.msra.mxu0 0
    %4788 = vmatprep.subr.bf16.mxu0 0
    %4789 = vmatpush2.bf16.xpose.msra.mxu0 0
    %4790 = vmatprep.subr.bf16.mxu0 0
    %4791 = vmatpush2.bf16.xpose.msra.mxu0 0
    %4792 = vmatprep.subr.bf16.mxu0 0
    %4793 = vmatpush2.bf16.xpose.msra.mxu0 0
    %4794 = vmatprep.mubr.bf16.mxu0 %v4436
    %4795 = vmatmul.mubr.bf16.gmra.mxu0 %v4435
    %v4796 = vpop.f32.mrf.mxu0
    %v4797 = vadd.f32 %v4757, %v4796
    %v4798 = vpop.f32.mrf.mxu0
    %v4799 = vpop.f32.mrf.mxu0
    %v4800 = vpop.f32.mrf.mxu0
    %4801 = vdwg.mxu0
    %4802 = vmatprep.subr.bf16.mxu0 0
    %4803 = vmatpush1.bf16.xpose.msra.mxu0 0
    %4804 = vmatprep.subr.bf16.mxu0 0
    %4805 = vmatpush1.bf16.xpose.msra.mxu0 0
    %4806 = vmatprep.subr.bf16.mxu0 0
    %4807 = vmatpush1.bf16.xpose.msra.mxu0 0
    %4808 = vmatprep.subr.bf16.mxu0 0
    %4809 = vmatpush1.bf16.xpose.msra.mxu0 0
    %4810 = vmatprep.subr.bf16.mxu0 0
    %4811 = vmatpush1.bf16.xpose.msra.mxu0 0
    %4812 = vmatprep.subr.bf16.mxu0 0
    %4813 = vmatpush1.bf16.xpose.msra.mxu0 0
    %4814 = vmatprep.subr.bf16.mxu0 %v4603
    %4815 = vmatpush1.bf16.xpose.msra.mxu0 %v4602
    %4816 = vmatprep.subr.bf16.mxu0 %v4587
    %4817 = vmatpush1.bf16.xpose.msra.mxu0 %v4586
    %4818 = vmatprep.subr.bf16.mxu0 0
    %4819 = vmatpush2.bf16.xpose.msra.mxu0 0
    %4820 = vmatprep.subr.bf16.mxu0 0
    %4821 = vmatpush2.bf16.xpose.msra.mxu0 0
    %4822 = vmatprep.subr.bf16.mxu0 0
    %4823 = vmatpush2.bf16.xpose.msra.mxu0 0
    %4824 = vmatprep.subr.bf16.mxu0 0
    %4825 = vmatpush2.bf16.xpose.msra.mxu0 0
    %4826 = vmatprep.subr.bf16.mxu0 0
    %4827 = vmatpush2.bf16.xpose.msra.mxu0 0
    %4828 = vmatprep.subr.bf16.mxu0 0
    %4829 = vmatpush2.bf16.xpose.msra.mxu0 0
    %4830 = vmatprep.subr.bf16.mxu0 0
    %4831 = vmatpush2.bf16.xpose.msra.mxu0 0
    %4832 = vmatprep.subr.bf16.mxu0 0
    %4833 = vmatpush2.bf16.xpose.msra.mxu0 0
    %4834 = vmatprep.mubr.bf16.mxu0 %v4438
    %4835 = vmatmul.mubr.bf16.gmra.mxu0 %v4437
    %v4836 = vpop.f32.mrf.mxu0
    %v4837 = vadd.f32 %v4797, %v4836
    %v4838 = vpop.f32.mrf.mxu0
    %v4839 = vpop.f32.mrf.mxu0
    %v4840 = vpop.f32.mrf.mxu0
    %4841 = vdwg.mxu0
    %4842 = vmatprep.subr.bf16.mxu0 0
    %4843 = vmatpush1.bf16.xpose.msra.mxu0 0
    %4844 = vmatprep.subr.bf16.mxu0 0
    %4845 = vmatpush1.bf16.xpose.msra.mxu0 0
    %4846 = vmatprep.subr.bf16.mxu0 0
    %4847 = vmatpush1.bf16.xpose.msra.mxu0 0
    %4848 = vmatprep.subr.bf16.mxu0 0
    %4849 = vmatpush1.bf16.xpose.msra.mxu0 0
    %4850 = vmatprep.subr.bf16.mxu0 0
    %4851 = vmatpush1.bf16.xpose.msra.mxu0 0
    %4852 = vmatprep.subr.bf16.mxu0 0
    %4853 = vmatpush1.bf16.xpose.msra.mxu0 0
    %4854 = vmatprep.subr.bf16.mxu0 %v4605
    %4855 = vmatpush1.bf16.xpose.msra.mxu0 %v4604
    %4856 = vmatprep.subr.bf16.mxu0 %v4589
    %4857 = vmatpush1.bf16.xpose.msra.mxu0 %v4588
    %4858 = vmatprep.subr.bf16.mxu0 0
    %4859 = vmatpush2.bf16.xpose.msra.mxu0 0
    %4860 = vmatprep.subr.bf16.mxu0 0
    %4861 = vmatpush2.bf16.xpose.msra.mxu0 0
    %4862 = vmatprep.subr.bf16.mxu0 0
    %4863 = vmatpush2.bf16.xpose.msra.mxu0 0
    %4864 = vmatprep.subr.bf16.mxu0 0
    %4865 = vmatpush2.bf16.xpose.msra.mxu0 0
    %4866 = vmatprep.subr.bf16.mxu0 0
    %4867 = vmatpush2.bf16.xpose.msra.mxu0 0
    %4868 = vmatprep.subr.bf16.mxu0 0
    %4869 = vmatpush2.bf16.xpose.msra.mxu0 0
    %4870 = vmatprep.subr.bf16.mxu0 0
    %4871 = vmatpush2.bf16.xpose.msra.mxu0 0
    %4872 = vmatprep.subr.bf16.mxu0 0
    %4873 = vmatpush2.bf16.xpose.msra.mxu0 0
    %4874 = vmatprep.mubr.bf16.mxu0 %v4440
    %4875 = vmatmul.mubr.bf16.gmra.mxu0 %v4439
    %v4876 = vpop.f32.mrf.mxu0
    %v4877 = vadd.f32 %v4837, %v4876
    %v4878 = vpop.f32.mrf.mxu0
    %v4879 = vpop.f32.mrf.mxu0
    %v4880 = vpop.f32.mrf.mxu0
    %4881 = vdwg.mxu0
    %4882 = vmatprep.subr.bf16.mxu0 0
    %4883 = vmatpush1.bf16.xpose.msra.mxu0 0
    %4884 = vmatprep.subr.bf16.mxu0 0
    %4885 = vmatpush1.bf16.xpose.msra.mxu0 0
    %4886 = vmatprep.subr.bf16.mxu0 0
    %4887 = vmatpush1.bf16.xpose.msra.mxu0 0
    %4888 = vmatprep.subr.bf16.mxu0 0
    %4889 = vmatpush1.bf16.xpose.msra.mxu0 0
    %4890 = vmatprep.subr.bf16.mxu0 0
    %4891 = vmatpush1.bf16.xpose.msra.mxu0 0
    %4892 = vmatprep.subr.bf16.mxu0 0
    %4893 = vmatpush1.bf16.xpose.msra.mxu0 0
    %4894 = vmatprep.subr.bf16.mxu0 %v4607
    %4895 = vmatpush1.bf16.xpose.msra.mxu0 %v4606
    %4896 = vmatprep.subr.bf16.mxu0 %v4591
    %4897 = vmatpush1.bf16.xpose.msra.mxu0 %v4590
    %4898 = vmatprep.subr.bf16.mxu0 0
    %4899 = vmatpush2.bf16.xpose.msra.mxu0 0
    %4900 = vmatprep.subr.bf16.mxu0 0
    %4901 = vmatpush2.bf16.xpose.msra.mxu0 0
    %4902 = vmatprep.subr.bf16.mxu0 0
    %4903 = vmatpush2.bf16.xpose.msra.mxu0 0
    %4904 = vmatprep.subr.bf16.mxu0 0
    %4905 = vmatpush2.bf16.xpose.msra.mxu0 0
    %4906 = vmatprep.subr.bf16.mxu0 0
    %4907 = vmatpush2.bf16.xpose.msra.mxu0 0
    %4908 = vmatprep.subr.bf16.mxu0 0
    %4909 = vmatpush2.bf16.xpose.msra.mxu0 0
    %4910 = vmatprep.subr.bf16.mxu0 0
    %4911 = vmatpush2.bf16.xpose.msra.mxu0 0
    %4912 = vmatprep.subr.bf16.mxu0 0
    %4913 = vmatpush2.bf16.xpose.msra.mxu0 0
    %4914 = vmatprep.mubr.bf16.mxu0 %v4442
    %4915 = vmatmul.mubr.bf16.gmra.mxu0 %v4441
    %v4916 = vpop.f32.mrf.mxu0
    %v4917 = vadd.f32 %v4877, %v4916
    %v4918 = vpop.f32.mrf.mxu0
    %v4919 = vpop.f32.mrf.mxu0
    %v4920 = vpop.f32.mrf.mxu0
    %4921 = vdwg.mxu0
    %4922 = vmatprep.subr.bf16.mxu0 0
    %4923 = vmatpush1.bf16.xpose.msra.mxu0 0
    %4924 = vmatprep.subr.bf16.mxu0 0
    %4925 = vmatpush1.bf16.xpose.msra.mxu0 0
    %4926 = vmatprep.subr.bf16.mxu0 0
    %4927 = vmatpush1.bf16.xpose.msra.mxu0 0
    %4928 = vmatprep.subr.bf16.mxu0 0
    %4929 = vmatpush1.bf16.xpose.msra.mxu0 0
    %4930 = vmatprep.subr.bf16.mxu0 0
    %4931 = vmatpush1.bf16.xpose.msra.mxu0 0
    %4932 = vmatprep.subr.bf16.mxu0 0
    %4933 = vmatpush1.bf16.xpose.msra.mxu0 0
    %4934 = vmatprep.subr.bf16.mxu0 %v4609
    %4935 = vmatpush1.bf16.xpose.msra.mxu0 %v4608
    %4936 = vmatprep.subr.bf16.mxu0 %v4593
    %4937 = vmatpush1.bf16.xpose.msra.mxu0 %v4592
    %4938 = vmatprep.subr.bf16.mxu0 0
    %4939 = vmatpush2.bf16.xpose.msra.mxu0 0
    %4940 = vmatprep.subr.bf16.mxu0 0
    %4941 = vmatpush2.bf16.xpose.msra.mxu0 0
    %4942 = vmatprep.subr.bf16.mxu0 0
    %4943 = vmatpush2.bf16.xpose.msra.mxu0 0
    %4944 = vmatprep.subr.bf16.mxu0 0
    %4945 = vmatpush2.bf16.xpose.msra.mxu0 0
    %4946 = vmatprep.subr.bf16.mxu0 0
    %4947 = vmatpush2.bf16.xpose.msra.mxu0 0
    %4948 = vmatprep.subr.bf16.mxu0 0
    %4949 = vmatpush2.bf16.xpose.msra.mxu0 0
    %4950 = vmatprep.subr.bf16.mxu0 0
    %4951 = vmatpush2.bf16.xpose.msra.mxu0 0
    %4952 = vmatprep.subr.bf16.mxu0 0
    %4953 = vmatpush2.bf16.xpose.msra.mxu0 0
    %4954 = vmatprep.mubr.bf16.mxu0 %v4444
    %4955 = vmatmul.mubr.bf16.gmra.mxu0 %v4443
    %v4956 = vpop.f32.mrf.mxu0
    %v4957 = vadd.f32 %v4917, %v4956
    %v4958 = vpop.f32.mrf.mxu0
    %v4959 = vpop.f32.mrf.mxu0
    %v4960 = vpop.f32.mrf.mxu0
    %4961 = vdwg.mxu0
    %v4963 = vcombine.high %v4957, %v4957
    %v4965 = vunpack.c.l.s4 1966171168
    %v4966 = vunpack.c.0.s8 %v4965
    %v4967 = vlaneseq
    %v4968 = vshrl.u32 %v4967, 7
    %v4969 = vsub.s32 %v4966, %v4968
    %v4970 = vrot.slane %v4957, %v4969
    %v4972 = vunpack.c.l.s4 1966171168
    %v4973 = vunpack.c.0.s8 %v4972
    %v4974 = vlaneseq
    %v4975 = vshrl.u32 %v4974, 7
    %v4976 = vsub.s32 %v4973, %v4975
    %v4977 = vrot.slane %v4963, %v4976
    %v4978 = vcombine.high %v4970, %v4970
    %v4979 = vcombine.high %v4977, %v4977
    %v4981 = vunpack.c.l.s4 1966171168
    %v4982 = vunpack.c.0.s8 %v4981
    %v4983 = vlaneseq
    %v4984 = vshrl.u32 %v4983, 7
    %v4985 = vsub.s32 %v4982, %v4984
    %v4986 = vrot.slane %v4970, %v4985
    %v4988 = vunpack.c.l.s4 1966171168
    %v4989 = vunpack.c.0.s8 %v4988
    %v4990 = vlaneseq
    %v4991 = vshrl.u32 %v4990, 7
    %v4992 = vsub.s32 %v4989, %v4991
    %v4993 = vrot.slane %v4977, %v4992
    %v4995 = vunpack.c.l.s4 1966171168
    %v4996 = vunpack.c.0.s8 %v4995
    %v4997 = vlaneseq
    %v4998 = vshrl.u32 %v4997, 7
    %v4999 = vsub.s32 %v4996, %v4998
    %v5000 = vrot.slane %v4978, %v4999
    %v5002 = vunpack.c.l.s4 1966171168
    %v5003 = vunpack.c.0.s8 %v5002
    %v5004 = vlaneseq
    %v5005 = vshrl.u32 %v5004, 7
    %v5006 = vsub.s32 %v5003, %v5005
    %v5007 = vrot.slane %v4979, %v5006
    %v5008 = vcombine.high %v4986, %v4986
    %v5009 = vcombine.high %v5000, %v5000
    %v5016 = vadd.f32 %v3750, %v4986
    %v5017 = vadd.f32 %v3751, %v5000
    %v5018 = vadd.f32 %v3752, %v5008
    %v5019 = vadd.f32 %v3753, %v5009
    %v5020 = vadd.f32 %v3754, %v4993
    %v5021 = vadd.f32 %v3755, %v5007
    %v5028 = vcombine.low %v5016, %v5017
    %v5029 = vcombine.low %v5018, %v5019
    %v5030 = vcombine.low %v5020, %v5021
    %v5032 = vunpack.c.l.s4 1966171168
    %v5033 = vunpack.c.0.s8 %v5032
    %v5034 = vlaneseq
    %v5035 = vshrl.u32 %v5034, 7
    %v5036 = vsub.s32 %v5033, %v5035
    %v5037 = vrot.slane %v5028, %v5036
    %v5039 = vunpack.c.l.s4 1966171168
    %v5040 = vunpack.c.0.s8 %v5039
    %v5041 = vlaneseq
    %v5042 = vshrl.u32 %v5041, 7
    %v5043 = vsub.s32 %v5040, %v5042
    %v5044 = vrot.slane %v5029, %v5043
    %v5046 = vunpack.c.l.s4 1966171168
    %v5047 = vunpack.c.0.s8 %v5046
    %v5048 = vlaneseq
    %v5049 = vshrl.u32 %v5048, 7
    %v5050 = vsub.s32 %v5047, %v5049
    %v5051 = vrot.slane %v5030, %v5050
    %v5052 = vcombine.low %v5037, %v5044
    %v5054 = vunpack.c.l.s4 1966171168
    %v5055 = vunpack.c.0.s8 %v5054
    %v5056 = vlaneseq
    %v5057 = vshrl.u32 %v5056, 7
    %v5058 = vsub.s32 %v5055, %v5057
    %v5059 = vrot.slane %v5052, %v5058
    %v5061 = vunpack.c.l.s4 1966171168
    %v5062 = vunpack.c.0.s8 %v5061
    %v5063 = vlaneseq
    %v5064 = vshrl.u32 %v5063, 7
    %v5065 = vsub.s32 %v5062, %v5064
    %v5066 = vrot.slane %v5051, %v5065
    %v5067 = vcombine.low %v5059, %v5066
    %v5069 = vsel %vm896, %v5067, 0.0
    %5070 = vadd.xlane.f32.xlu0 %v5069
    %v5071 = vpop.xlane.xlu0 %5070
    %v5072 = vmul.f32 %v5071, %v900
    %v5074 = vlaneseq
    %v5075 = vshrl.u32 %v5074, 7
    %v5076 = vsub.s32 0, %v5075
    %v5077 = vrot.slane %v5072, %v5076
    %v5078 = vlaneseq
    %v5079 = vshrl.u32 %v5078, 7
    %v5080 = vsub.s32 1, %v5079
    %v5081 = vrot.slane %v5072, %v5080
    %v5082 = vlaneseq
    %v5083 = vshrl.u32 %v5082, 7
    %v5084 = vsub.s32 2, %v5083
    %v5085 = vrot.slane %v5072, %v5084
    %v5086 = vlaneseq
    %v5087 = vshrl.u32 %v5086, 7
    %v5088 = vsub.s32 3, %v5087
    %v5089 = vrot.slane %v5072, %v5088
    %v5090 = vlaneseq
    %v5091 = vshrl.u32 %v5090, 7
    %v5092 = vsub.s32 4, %v5091
    %v5093 = vrot.slane %v5072, %v5092
    %v5094 = vlaneseq
    %v5095 = vshrl.u32 %v5094, 7
    %v5096 = vsub.s32 5, %v5095
    %v5097 = vrot.slane %v5072, %v5096
    %v5104 = vsub.f32 %v5016, %v5077
    %v5105 = vsub.f32 %v5017, %v5081
    %v5106 = vsub.f32 %v5018, %v5085
    %v5107 = vsub.f32 %v5019, %v5089
    %v5108 = vsub.f32 %v5020, %v5093
    %v5109 = vsub.f32 %v5021, %v5097
    %v5110 = vmul.f32 %v5104, %v5104
    %v5111 = vmul.f32 %v5105, %v5105
    %v5112 = vmul.f32 %v5106, %v5106
    %v5113 = vmul.f32 %v5107, %v5107
    %v5114 = vmul.f32 %v5108, %v5108
    %v5115 = vmul.f32 %v5109, %v5109
    %v5122 = vcombine.low %v5110, %v5111
    %v5123 = vcombine.low %v5112, %v5113
    %v5124 = vcombine.low %v5114, %v5115
    %v5126 = vunpack.c.l.s4 1966171168
    %v5127 = vunpack.c.0.s8 %v5126
    %v5128 = vlaneseq
    %v5129 = vshrl.u32 %v5128, 7
    %v5130 = vsub.s32 %v5127, %v5129
    %v5131 = vrot.slane %v5122, %v5130
    %v5133 = vunpack.c.l.s4 1966171168
    %v5134 = vunpack.c.0.s8 %v5133
    %v5135 = vlaneseq
    %v5136 = vshrl.u32 %v5135, 7
    %v5137 = vsub.s32 %v5134, %v5136
    %v5138 = vrot.slane %v5123, %v5137
    %v5140 = vunpack.c.l.s4 1966171168
    %v5141 = vunpack.c.0.s8 %v5140
    %v5142 = vlaneseq
    %v5143 = vshrl.u32 %v5142, 7
    %v5144 = vsub.s32 %v5141, %v5143
    %v5145 = vrot.slane %v5124, %v5144
    %v5146 = vcombine.low %v5131, %v5138
    %v5148 = vunpack.c.l.s4 1966171168
    %v5149 = vunpack.c.0.s8 %v5148
    %v5150 = vlaneseq
    %v5151 = vshrl.u32 %v5150, 7
    %v5152 = vsub.s32 %v5149, %v5151
    %v5153 = vrot.slane %v5146, %v5152
    %v5155 = vunpack.c.l.s4 1966171168
    %v5156 = vunpack.c.0.s8 %v5155
    %v5157 = vlaneseq
    %v5158 = vshrl.u32 %v5157, 7
    %v5159 = vsub.s32 %v5156, %v5158
    %v5160 = vrot.slane %v5145, %v5159
    %v5161 = vcombine.low %v5153, %v5160
    %v5163 = vsel %vm896, %v5161, 0.0
    %5164 = vadd.xlane.f32.xlu0 %v5163
    %v5165 = vpop.xlane.xlu0 %5164
    %v5166 = vmul.f32 %v5165, %v900
    %v5167 = vadd.f32 %v5166, 1e-05
    %v5168 = vrsqrt.pop %v5167
    %v5170 = vlaneseq
    %v5171 = vshrl.u32 %v5170, 7
    %v5172 = vsub.s32 0, %v5171
    %v5173 = vrot.slane %v5168, %v5172
    %v5174 = vlaneseq
    %v5175 = vshrl.u32 %v5174, 7
    %v5176 = vsub.s32 1, %v5175
    %v5177 = vrot.slane %v5168, %v5176
    %v5178 = vlaneseq
    %v5179 = vshrl.u32 %v5178, 7
    %v5180 = vsub.s32 2, %v5179
    %v5181 = vrot.slane %v5168, %v5180
    %v5182 = vlaneseq
    %v5183 = vshrl.u32 %v5182, 7
    %v5184 = vsub.s32 3, %v5183
    %v5185 = vrot.slane %v5168, %v5184
    %v5186 = vlaneseq
    %v5187 = vshrl.u32 %v5186, 7
    %v5188 = vsub.s32 4, %v5187
    %v5189 = vrot.slane %v5168, %v5188
    %v5190 = vlaneseq
    %v5191 = vshrl.u32 %v5190, 7
    %v5192 = vsub.s32 5, %v5191
    %v5193 = vrot.slane %v5168, %v5192
    %v5200 = vmul.f32 %v5104, %v5173
    %v5201 = vmul.f32 %v5105, %v5177
    %v5202 = vmul.f32 %v5106, %v5181
    %v5203 = vmul.f32 %v5107, %v5185
    %v5204 = vmul.f32 %v5108, %v5189
    %v5205 = vmul.f32 %v5109, %v5193
    %v5206 = vlaneseq
    %v5207 = vshrl.u32 %v5206, 7
    %v5208 = vsub.s32 4, %v5207
    %v5209 = vrot.slane %v3318, %v5208
    %v5211 = vcombine.high %v5209, %v5209
    %v5213 = vunpack.c.l.s4 1966171168
    %v5214 = vunpack.c.0.s8 %v5213
    %v5215 = vlaneseq
    %v5216 = vshrl.u32 %v5215, 7
    %v5217 = vsub.s32 %v5214, %v5216
    %v5218 = vrot.slane %v5209, %v5217
    %v5220 = vunpack.c.l.s4 1966171168
    %v5221 = vunpack.c.0.s8 %v5220
    %v5222 = vlaneseq
    %v5223 = vshrl.u32 %v5222, 7
    %v5224 = vsub.s32 %v5221, %v5223
    %v5225 = vrot.slane %v5211, %v5224
    %v5226 = vcombine.high %v5218, %v5218
    %v5227 = vcombine.high %v5225, %v5225
    %v5229 = vunpack.c.l.s4 1966171168
    %v5230 = vunpack.c.0.s8 %v5229
    %v5231 = vlaneseq
    %v5232 = vshrl.u32 %v5231, 7
    %v5233 = vsub.s32 %v5230, %v5232
    %v5234 = vrot.slane %v5218, %v5233
    %v5236 = vunpack.c.l.s4 1966171168
    %v5237 = vunpack.c.0.s8 %v5236
    %v5238 = vlaneseq
    %v5239 = vshrl.u32 %v5238, 7
    %v5240 = vsub.s32 %v5237, %v5239
    %v5241 = vrot.slane %v5225, %v5240
    %v5243 = vunpack.c.l.s4 1966171168
    %v5244 = vunpack.c.0.s8 %v5243
    %v5245 = vlaneseq
    %v5246 = vshrl.u32 %v5245, 7
    %v5247 = vsub.s32 %v5244, %v5246
    %v5248 = vrot.slane %v5226, %v5247
    %v5250 = vunpack.c.l.s4 1966171168
    %v5251 = vunpack.c.0.s8 %v5250
    %v5252 = vlaneseq
    %v5253 = vshrl.u32 %v5252, 7
    %v5254 = vsub.s32 %v5251, %v5253
    %v5255 = vrot.slane %v5227, %v5254
    %v5256 = vcombine.high %v5234, %v5234
    %v5257 = vcombine.high %v5248, %v5248
    %v5264 = vmul.f32 %v5200, %v5234
    %v5265 = vmul.f32 %v5201, %v5248
    %v5266 = vmul.f32 %v5202, %v5256
    %v5267 = vmul.f32 %v5203, %v5257
    %v5268 = vmul.f32 %v5204, %v5241
    %v5269 = vmul.f32 %v5205, %v5255
    %v5270 = vlaneseq
    %v5271 = vshrl.u32 %v5270, 7
    %v5272 = vsub.s32 5, %v5271
    %v5273 = vrot.slane %v3318, %v5272
    %v5275 = vcombine.high %v5273, %v5273
    %v5277 = vunpack.c.l.s4 1966171168
    %v5278 = vunpack.c.0.s8 %v5277
    %v5279 = vlaneseq
    %v5280 = vshrl.u32 %v5279, 7
    %v5281 = vsub.s32 %v5278, %v5280
    %v5282 = vrot.slane %v5273, %v5281
    %v5284 = vunpack.c.l.s4 1966171168
    %v5285 = vunpack.c.0.s8 %v5284
    %v5286 = vlaneseq
    %v5287 = vshrl.u32 %v5286, 7
    %v5288 = vsub.s32 %v5285, %v5287
    %v5289 = vrot.slane %v5275, %v5288
    %v5290 = vcombine.high %v5282, %v5282
    %v5291 = vcombine.high %v5289, %v5289
    %v5293 = vunpack.c.l.s4 1966171168
    %v5294 = vunpack.c.0.s8 %v5293
    %v5295 = vlaneseq
    %v5296 = vshrl.u32 %v5295, 7
    %v5297 = vsub.s32 %v5294, %v5296
    %v5298 = vrot.slane %v5282, %v5297
    %v5300 = vunpack.c.l.s4 1966171168
    %v5301 = vunpack.c.0.s8 %v5300
    %v5302 = vlaneseq
    %v5303 = vshrl.u32 %v5302, 7
    %v5304 = vsub.s32 %v5301, %v5303
    %v5305 = vrot.slane %v5289, %v5304
    %v5307 = vunpack.c.l.s4 1966171168
    %v5308 = vunpack.c.0.s8 %v5307
    %v5309 = vlaneseq
    %v5310 = vshrl.u32 %v5309, 7
    %v5311 = vsub.s32 %v5308, %v5310
    %v5312 = vrot.slane %v5290, %v5311
    %v5314 = vunpack.c.l.s4 1966171168
    %v5315 = vunpack.c.0.s8 %v5314
    %v5316 = vlaneseq
    %v5317 = vshrl.u32 %v5316, 7
    %v5318 = vsub.s32 %v5315, %v5317
    %v5319 = vrot.slane %v5291, %v5318
    %v5320 = vcombine.high %v5298, %v5298
    %v5321 = vcombine.high %v5312, %v5312
    %v5328 = vadd.f32 %v5264, %v5298
    %v5329 = vadd.f32 %v5265, %v5312
    %v5330 = vadd.f32 %v5266, %v5320
    %v5331 = vadd.f32 %v5267, %v5321
    %v5332 = vadd.f32 %v5268, %v5305
    %v5333 = vadd.f32 %v5269, %v5319
    %v5340 = vcombine.low %v5328, %v5329
    %v5342 = vunpack.c.l.s4 1966171168
    %v5343 = vunpack.c.0.s8 %v5342
    %v5344 = vlaneseq
    %v5345 = vshrl.u32 %v5344, 7
    %v5346 = vsub.s32 %v5343, %v5345
    %v5347 = vrot.slane %v5340, %v5346
    %v5349 = vunpack.c.l.s4 1966171168
    %v5350 = vunpack.c.0.s8 %v5349
    %v5351 = vlaneseq
    %v5352 = vshrl.u32 %v5351, 7
    %v5353 = vsub.s32 %v5350, %v5352
    %v5354 = vrot.slane %v5330, %v5353
    %v5355 = vcombine.low %v5347, %v5354
    %v5357 = vunpack.c.l.s4 1966171168
    %v5358 = vunpack.c.0.s8 %v5357
    %v5359 = vlaneseq
    %v5360 = vshrl.u32 %v5359, 7
    %v5361 = vsub.s32 %v5358, %v5360
    %v5362 = vrot.slane %v5355, %v5361
    %v5363 = vcombine.low %v5331, %v5332
    %v5365 = vunpack.c.l.s4 1966171168
    %v5366 = vunpack.c.0.s8 %v5365
    %v5367 = vlaneseq
    %v5368 = vshrl.u32 %v5367, 7
    %v5369 = vsub.s32 %v5366, %v5368
    %v5370 = vrot.slane %v5363, %v5369
    %v5372 = vunpack.c.l.s4 1966171168
    %v5373 = vunpack.c.0.s8 %v5372
    %v5374 = vlaneseq
    %v5375 = vshrl.u32 %v5374, 7
    %v5376 = vsub.s32 %v5373, %v5375
    %v5377 = vrot.slane %v5333, %v5376
    %v5378 = vcombine.low %v5370, %v5377
    %v5380 = vunpack.c.l.s4 1966171168
    %v5381 = vunpack.c.0.s8 %v5380
    %v5382 = vlaneseq
    %v5383 = vshrl.u32 %v5382, 7
    %v5384 = vsub.s32 %v5381, %v5383
    %v5385 = vrot.slane %v5378, %v5384
    %vm5388 = vcmask 256000
    %v5389 = vsel %vm5388, %v5362, 0.0
    %v5390 = vrot.slane %v5389, 4
    %v5391 = vadd.f32 %v5389, %v5390
    %v5392 = vrot.slane %v5391, 2
    %v5393 = vadd.f32 %v5391, %v5392
    %v5394 = vrot.slane %v5393, 1
    %v5395 = vadd.f32 %v5393, %v5394
    %v5396 = vsel %vm5388, %v5385, 0.0
    %v5397 = vrot.slane %v5396, 4
    %v5398 = vadd.f32 %v5396, %v5397
    %v5399 = vrot.slane %v5398, 2
    %v5400 = vadd.f32 %v5398, %v5399
    %v5401 = vrot.slane %v5400, 1
    %v5402 = vadd.f32 %v5400, %v5401
    %v5403 = vrcp.pop 3.0
    %v5404 = vmul.f32 %v5395, %v5403
    %v5405 = vmul.f32 %v5402, %v5403
    %vm5408 = vcmask 1041409
    %v5409 = vsel %vm5408, %v5405, %v5404
    %vm5411 = vcmask 254976
    %5412 = vst.msk [vmem:[#allocation10] sm:$0x3] %vm5411, %v5409
    // Predicated region
    $region54: #{_forward_jit.1} parent=1 // pred_check
      _
    $region55: #{_forward_jit.1} parent=1 // pred_check_branch
      %5414 = sbr.rel (0) target = $region57
    $region56: #{_forward_jit.1} parent=1 // pred_region
      %s5416 = ssub.s32 32, 32
      %5417 = vsyncadd [#allocation4], %s5416
      %s5419 = sshll.u32 [#allocation10], 4
      %s5420 = int_to_ptr.vmem [resolvable:$true] %s5419
      %5422 = dma.vmem_to_hbm [thread:$0]  %s5420, 32, %s9, [#allocation4]
    $region57: #{_forward_jit.1} parent=1 // pred_fallthru
      _
    // Predicated region
    $region58: #{_forward_jit.1} parent=1 // pred_check
      _
    $region59: #{_forward_jit.1} parent=1 // pred_check_branch
      %5424 = sbr.rel (0) target = $region61
    $region60: #{_forward_jit.1} parent=1 // pred_region
      %5425 = dma.done [#allocation4], 32
    $region61: #{_forward_jit.1} parent=1 // pred_fallthru
      _
    %5426 = vsyncpa [#allocation3], 1
    %5427 = vsyncpa [#allocation6], 1
    %5428 = vsyncpa [#allocation9], 1
    %5429 = vsyncpa [#allocation4], 1

</llo_original>
